<compile_context>
chip_gen: v7x
topology: tpu7x:2x2x1
jax: 0.10.0
libtpu: 0.0.40
codegen_flags: <defaults>
</compile_context>

<pallas_src>
import jax
import jax.numpy as jnp
from jax.experimental import pallas as pl
from jax.experimental.pallas import tpu as pltpu


# ----------------------------------------------------------------------------
# Pallas kernel: fused (per-K-column scale/shift/leaky) input transform + matmul
# ----------------------------------------------------------------------------
def _fused_matmul_kernel(a_ref, b_ref, scale_ref, shift_ref, alpha_ref,
                         o_ref, acc_ref):
    """acc += leaky(A*scale + shift, alpha) @ B   (transform per K column, f32 acc)."""
    k = pl.program_id(2)

    @pl.when(k == 0)
    def _():
        acc_ref[...] = jnp.zeros_like(acc_ref)

    a = a_ref[...].astype(jnp.float32) * scale_ref[...] + shift_ref[...]
    a = jnp.where(a > 0, a, alpha_ref[...] * a)        # per-column leaky slope
    acc_ref[...] += jnp.dot(a.astype(jnp.bfloat16), b_ref[...],
                            preferred_element_type=jnp.float32)

    @pl.when(k == pl.num_programs(2) - 1)
    def _():
        o_ref[...] = acc_ref[...]


def _rup(x, m):
    return ((x + m - 1) // m) * m


def _pick_tiles(M, K, N):
    """Large tiles, but bounded so the double-buffered working set stays ~<=16 MiB."""
    kp = _rup(K, 128)
    np_ = _rup(N, 128)
    tk = min(4096, kp)
    tn = min(2048, np_)
    while 2 * tk * tn * 2 > 10 * (1 << 20) and tn > 128:        # bf16 B double-buffer
        tn = max(128, (tn // 2) // 128 * 128)
    tm = min(_rup(M, 8), 2048)

    def vmem(tm_):
        # 2x (bf16 A + bf16 B + f32 out) + f32 accumulator
        return 2 * (tm_ * tk * 2 + tk * tn * 2 + tm_ * tn * 4) + tm_ * tn * 4

    while vmem(tm) > 16 * (1 << 20) and tm > 8:
        tm = max(8, _rup(tm // 2, 8))
    return tm, tk, tn


def fused_matmul(a, b, k_scale, k_shift, k_alpha):
    """f32[M,N] = leaky(a * k_scale + k_shift, k_alpha) @ b.

    a: [M,K] float, b: [K,N] weight matrix (cast to bf16), k_*: per-K-column f32
    vectors folding the previous layer's BatchNorm/bias + LeakyReLU/ReLU.
    """
    M, K = a.shape
    K2, N = b.shape
    assert K == K2
    tm, tk, tn = _pick_tiles(M, K, N)
    Mp = _rup(M, tm)
    Kp = _rup(_rup(K, 128), tk)
    Np = _rup(_rup(N, 128), tn)

    a_p = jnp.pad(a, ((0, Mp - M), (0, Kp - K))).astype(jnp.bfloat16)
    b_p = jnp.pad(b.astype(jnp.bfloat16), ((0, Kp - K), (0, Np - N)))
    sc = jnp.pad(k_scale.astype(jnp.float32), (0, Kp - K)).reshape(1, Kp)
    sh = jnp.pad(k_shift.astype(jnp.float32), (0, Kp - K)).reshape(1, Kp)
    al = jnp.pad(k_alpha.astype(jnp.float32), (0, Kp - K)).reshape(1, Kp)

    grid = (Mp // tm, Np // tn, Kp // tk)
    out = pl.pallas_call(
        _fused_matmul_kernel,
        out_shape=jax.ShapeDtypeStruct((Mp, Np), jnp.float32),
        grid_spec=pltpu.PrefetchScalarGridSpec(
            num_scalar_prefetch=0,
            grid=grid,
            in_specs=[
                pl.BlockSpec((tm, tk), lambda i, j, k: (i, k)),
                pl.BlockSpec((tk, tn), lambda i, j, k: (k, j)),
                pl.BlockSpec((1, tk), lambda i, j, k: (0, k)),
                pl.BlockSpec((1, tk), lambda i, j, k: (0, k)),
                pl.BlockSpec((1, tk), lambda i, j, k: (0, k)),
            ],
            out_specs=pl.BlockSpec((tm, tn), lambda i, j, k: (i, j)),
            scratch_shapes=[pltpu.VMEM((tm, tn), jnp.float32)],
        ),
        compiler_params=pltpu.CompilerParams(
            dimension_semantics=("parallel", "parallel", "arbitrary"),
            vmem_limit_bytes=32 * 1024 * 1024),
    )(a_p, b_p, sc, sh, al)
    return out[:M, :N]


# ----------------------------------------------------------------------------
# Small JAX glue: im2col for k=4,s=2,p=1 conv (NHWC) and convT overlap-add
# ----------------------------------------------------------------------------
def _im2col_down(x, pad_mode="reflect"):
    """x:[N,H,W,C] -> ([N*OH*OW, C*16], (N,OH,OW)); K index = c*16 + kh*4 + kw."""
    N, H, W, C = x.shape
    OH, OW = H // 2, W // 2
    xp = jnp.pad(x, ((0, 0), (1, 1), (1, 1), (0, 0)), mode=pad_mode)
    cols = [xp[:, kh:kh + 2 * OH:2, kw:kw + 2 * OW:2, :]
            for kh in range(4) for kw in range(4)]
    p = jnp.stack(cols, axis=-1)                     # [N,OH,OW,C,16]
    return p.reshape(N * OH * OW, C * 16), (N, OH, OW)


def _overlap_add(p, n, h, w, cout):
    """Scatter-add the 4x4 per-input-pixel patches of ConvTranspose2d(k=4,s=2,p=1).

    p: [n*h*w, 16*cout] with column = (kh*4+kw)*cout + co  ->  [n, 2h, 2w, cout].
    Output row 2i+0 gets (kh=1 @ i) + (kh=3 @ i-1); row 2i+1 gets (kh=2 @ i) + (kh=0 @ i+1).
    """
    p = p.reshape(n, h, w, 4, 4, cout)
    zr = jnp.zeros((n, 1, w, 4, cout), p.dtype)
    r0 = p[:, :, :, 1] + jnp.concatenate([zr, p[:, :-1, :, 3]], axis=1)
    r1 = p[:, :, :, 2] + jnp.concatenate([p[:, 1:, :, 0], zr], axis=1)
    zc = jnp.zeros((n, h, 1, cout), p.dtype)

    def cmix(r):
        c0 = r[:, :, :, 1] + jnp.concatenate([zc, r[:, :, :-1, 3]], axis=2)
        c1 = r[:, :, :, 2] + jnp.concatenate([r[:, :, 1:, 0], zc], axis=2)
        return c0, c1

    c00, c01 = cmix(r0)
    c10, c11 = cmix(r1)
    even = jnp.stack([c00, c01], axis=3)             # [n,h,w,2,c]
    odd = jnp.stack([c10, c11], axis=3)
    y = jnp.stack([even, odd], axis=2)               # [n,h,2,w,2,c]
    return y.reshape(n, 2 * h, 2 * w, cout)


def _bn_vectors(y, gamma, beta, eps=1e-5):
    """Training-mode BatchNorm2d folded into per-channel (scale, shift)."""
    y32 = y.astype(jnp.float32)
    mean = jnp.mean(y32, axis=(0, 1, 2))
    var = jnp.mean(jnp.square(y32 - mean), axis=(0, 1, 2))
    scale = gamma / jnp.sqrt(var + eps)
    shift = beta - mean * scale
    return scale, shift


def _identity_tf(c):
    return (jnp.ones((c,), jnp.float32),
            jnp.zeros((c,), jnp.float32),
            jnp.ones((c,), jnp.float32))             # alpha=1 -> identity for x<0


def _concat_tf(tf_a, tf_b):
    return tuple(jnp.concatenate([a, b]) for a, b in zip(tf_a, tf_b))


# ----------------------------------------------------------------------------
# Conv building blocks (each = one fused Pallas matmul)
# ----------------------------------------------------------------------------
def _conv_down(x_raw, in_tf, w_mat, pad_mode="reflect"):
    """Conv2d(4,2,1) applied to transform(x_raw); returns RAW conv output [N,OH,OW,Cout]."""
    scale, shift, alpha = in_tf
    a, (n, oh, ow) = _im2col_down(x_raw, pad_mode)
    y = fused_matmul(a, w_mat,
                     jnp.repeat(scale, 16), jnp.repeat(shift, 16),
                     jnp.repeat(alpha, 16))
    return y.reshape(n, oh, ow, w_mat.shape[1])


def _conv_up(x_raw, in_tf, wt_mat):
    """ConvTranspose2d(4,2,1) applied to transform(x_raw); returns RAW output [N,2H,2W,Cout]."""
    scale, shift, alpha = in_tf
    n, h, w, cin = x_raw.shape
    cout = wt_mat.shape[1] // 16
    p = fused_matmul(x_raw.reshape(n * h * w, cin), wt_mat, scale, shift, alpha)
    return _overlap_add(p, n, h, w, cout)


# ----------------------------------------------------------------------------
# Parameters & forward
# ----------------------------------------------------------------------------
ENC_CH = [(64, 128), (128, 256), (256, 512), (512, 512),
          (512, 512), (512, 512), (512, 512)]
DEC_CH = [(512, 512), (1024, 512), (1024, 512), (1024, 512),
          (1024, 256), (512, 128), (256, 64)]


def init_params(key, in_chs):
    keys = iter(jax.random.split(key, 64))

    def conv_w(co, ci):
        return 0.05 * jax.random.normal(next(keys), (co, ci, 4, 4), jnp.float32)

    def convt_w(ci, co):
        return 0.05 * jax.random.normal(next(keys), (ci, co, 4, 4), jnp.float32)

    def bn(c):
        g = 1.0 + 0.01 * jax.random.normal(next(keys), (c,), jnp.float32)
        b = 0.01 * jax.random.normal(next(keys), (c,), jnp.float32)
        return g, b

    params = {
        "enc_in_w": conv_w(64, in_chs),
        "enc_in_b": 0.01 * jax.random.normal(next(keys), (64,), jnp.float32),
    }
    for i, (ci, co) in enumerate(ENC_CH, 1):
        params[f"enc{i}_w"] = conv_w(co, ci)
        params[f"enc{i}_g"], params[f"enc{i}_b"] = bn(co)
    for i, (ci, co) in enumerate(DEC_CH, 1):
        params[f"dec{i}_w"] = convt_w(ci, co)
        params[f"dec{i}_g"], params[f"dec{i}_b"] = bn(co)
    params["dec_out_w"] = convt_w(128, in_chs)
    params["dec_out_b"] = 0.01 * jax.random.normal(next(keys), (in_chs,), jnp.float32)
    return params


def prepare_weights(params):
    """Hoisted once: conv -> [Cin*16, Cout] bf16; convT -> [Cin, 16*Cout] bf16."""
    w = {}
    cw = params["enc_in_w"]
    w["enc_in"] = cw.reshape(cw.shape[0], -1).T.astype(jnp.bfloat16)
    for i in range(1, 8):
        cw = params[f"enc{i}_w"]
        w[f"enc{i}"] = cw.reshape(cw.shape[0], -1).T.astype(jnp.bfloat16)
    for i in range(1, 8):
        tw = params[f"dec{i}_w"]
        w[f"dec{i}"] = tw.transpose(0, 2, 3, 1).reshape(tw.shape[0], -1).astype(jnp.bfloat16)
    tw = params["dec_out_w"]
    w["dec_out"] = tw.transpose(0, 2, 3, 1).reshape(tw.shape[0], -1).astype(jnp.bfloat16)
    return w


def unet_forward(params, x):
    _, _, height, width = x.shape
    if (height, width) != (256, 256):
        raise Exception(
            f"The input images need to be 256x256, and it has been fed an "
            f"image of size {height}x{width}")

    w = prepare_weights(params)
    xh = jnp.transpose(x, (0, 2, 3, 1))              # NCHW -> NHWC (once)

    # --- encoder ------------------------------------------------------------
    # Raw (pre-BN / pre-activation) outputs are stored; each layer's BN + bias +
    # LeakyReLU(0.2) is applied inside the consumer's Pallas matmul.
    e_raw = [None] * 8
    e_tf = [None] * 8
    in_chs = xh.shape[-1]
    e_raw[0] = _conv_down(xh, _identity_tf(in_chs), w["enc_in"], pad_mode="reflect")
    c0 = e_raw[0].shape[-1]
    e_tf[0] = (jnp.ones((c0,), jnp.float32),
               params["enc_in_b"].astype(jnp.float32),
               jnp.full((c0,), 0.2, jnp.float32))
    for i in range(1, 8):
        e_raw[i] = _conv_down(e_raw[i - 1], e_tf[i - 1], w[f"enc{i}"],
                              pad_mode="reflect")
        s, b = _bn_vectors(e_raw[i], params[f"enc{i}_g"], params[f"enc{i}_b"])
        e_tf[i] = (s, b, jnp.full((s.shape[0],), 0.2, jnp.float32))

    # --- decoder ------------------------------------------------------------
    # TODO(synk): nn.Dropout(0.5) inside GenUpsampling is stochastic (train mode);
    # treated as identity (eval semantics).
    d_raw = _conv_up(e_raw[7], e_tf[7], w["dec1"])
    s, b = _bn_vectors(d_raw, params["dec1_g"], params["dec1_b"])
    d_tf = (s, b, jnp.zeros_like(s))                 # ReLU == leaky with alpha 0
    for i, skip in zip(range(2, 8), [6, 5, 4, 3, 2, 1]):
        x_cat = jnp.concatenate([d_raw, e_raw[skip]], axis=-1)
        tf_cat = _concat_tf(d_tf, e_tf[skip])
        d_raw = _conv_up(x_cat, tf_cat, w[f"dec{i}"])
        s, b = _bn_vectors(d_raw, params[f"dec{i}_g"], params[f"dec{i}_b"])
        d_tf = (s, b, jnp.zeros_like(s))

    # --- output layer: ConvTranspose(+bias) -> Tanh ---------------------------
    x_cat = jnp.concatenate([d_raw, e_raw[0]], axis=-1)
    tf_cat = _concat_tf(d_tf, e_tf[0])
    y = _conv_up(x_cat, tf_cat, w["dec_out"])
    y = jnp.tanh(y + params["dec_out_b"].astype(jnp.float32))
    return jnp.transpose(y, (0, 3, 1, 2))            # NHWC -> NCHW


if __name__ == "__main__":
    key = jax.random.PRNGKey(0)
    kx, kp = jax.random.split(key)
    in_chs = 3
    # The module hard-requires 256x256 spatial input (8 downsampling stages), so
    # this is the smallest consistent shape; batch/channels kept minimal.
    x = jax.random.normal(kx, (1, in_chs, 256, 256), jnp.float32)
    params = init_params(kp, in_chs)

    out = jax.block_until_ready(unet_forward(params, x))

    assert out.shape == (1, in_chs, 256, 256), out.shape
    assert bool(jnp.all(jnp.isfinite(out)))
    assert bool(jnp.all(jnp.abs(out) <= 1.0 + 1e-6))   # tanh output range
    print("KERNEL_OK")
</pallas_src>

<mosaic_0001>
module attributes {stable_mosaic.version = 11 : i64} {
  func.func @_fused_matmul_kernel(%arg0: i32, %arg1: i32, %arg2: i32, %arg3: memref<2048x128xbf16, #tpu.memory_space<vmem>>, %arg4: memref<128x128xbf16, #tpu.memory_space<vmem>>, %arg5: memref<1x128xf32, #tpu.memory_space<vmem>>, %arg6: memref<1x128xf32, #tpu.memory_space<vmem>>, %arg7: memref<1x128xf32, #tpu.memory_space<vmem>>, %arg8: memref<2048x128xf32, #tpu.memory_space<vmem>>, %arg9: memref<2048x128xf32, #tpu.memory_space<vmem>>) attributes {dimension_semantics = [#tpu.dimension_semantics<parallel>, #tpu.dimension_semantics<parallel>, #tpu.dimension_semantics<arbitrary>], iteration_bounds = array<i64: 8, 1, 1>, scalar_prefetch = 0 : i64, scratch_operands = 1 : i64, tpu.core_type = #tpu.core_type<tc>, window_params = [{transform_indices = @transform_0, window_bounds = array<i64: 2048, 128>}, {transform_indices = @transform_1, window_bounds = array<i64: 128, 128>}, {transform_indices = @transform_2, window_bounds = array<i64: 1, 128>}, {transform_indices = @transform_3, window_bounds = array<i64: 1, 128>}, {transform_indices = @transform_4, window_bounds = array<i64: 1, 128>}, {transform_indices = @transform_5, window_bounds = array<i64: 2048, 128>}]} {
    %c0_i32 = arith.constant 0 : i32
    %0 = arith.cmpi eq, %arg2, %c0_i32 : i32
    %1 = arith.extui %0 : i1 to i32
    %c0_i32_0 = arith.constant 0 : i32
    %2 = arith.cmpi ne, %1, %c0_i32_0 : i32
    scf.if %2 {
      %cst_17 = arith.constant 0.000000e+00 : f32
      %26 = vector.broadcast %cst_17 : f32 to vector<2048x128xf32>
      %c0_18 = arith.constant 0 : index
      %c0_19 = arith.constant 0 : index
      %27 = vector.load %arg9[%c0_18, %c0_19] : memref<2048x128xf32, #tpu.memory_space<vmem>>, vector<2048x128xf32>
      tpu.vector_store %arg9[%c0_18, %c0_19], %26 {strides = array<i32>} : memref<2048x128xf32, #tpu.memory_space<vmem>>, vector<2048x128xf32>,
    } else {
    }
    %c0 = arith.constant 0 : index
    %c0_1 = arith.constant 0 : index
    %3 = vector.load %arg3[%c0, %c0_1] : memref<2048x128xbf16, #tpu.memory_space<vmem>>, vector<2048x128xbf16>
    %4 = arith.extf %3 : vector<2048x128xbf16> to vector<2048x128xf32>
    %c0_2 = arith.constant 0 : index
    %c0_3 = arith.constant 0 : index
    %5 = vector.load %arg5[%c0_2, %c0_3] : memref<1x128xf32, #tpu.memory_space<vmem>>, vector<1x128xf32>
    %6 = vector.broadcast %5 : vector<1x128xf32> to vector<2048x128xf32>
    %7 = arith.mulf %4, %6 : vector<2048x128xf32>
    %c0_4 = arith.constant 0 : index
    %c0_5 = arith.constant 0 : index
    %8 = vector.load %arg6[%c0_4, %c0_5] : memref<1x128xf32, #tpu.memory_space<vmem>>, vector<1x128xf32>
    %9 = vector.broadcast %8 : vector<1x128xf32> to vector<2048x128xf32>
    %10 = arith.addf %7, %9 : vector<2048x128xf32>
    %cst = arith.constant 0.000000e+00 : f32
    %11 = vector.broadcast %cst : f32 to vector<2048x128xf32>
    %12 = arith.cmpf ogt, %10, %11 : vector<2048x128xf32>
    %c0_6 = arith.constant 0 : index
    %c0_7 = arith.constant 0 : index
    %13 = vector.load %arg7[%c0_6, %c0_7] : memref<1x128xf32, #tpu.memory_space<vmem>>, vector<1x128xf32>
    %14 = vector.broadcast %13 : vector<1x128xf32> to vector<2048x128xf32>
    %15 = arith.mulf %14, %10 : vector<2048x128xf32>
    %16 = arith.select %12, %10, %15 : vector<2048x128xi1>, vector<2048x128xf32>
    %c0_8 = arith.constant 0 : index
    %c0_9 = arith.constant 0 : index
    %17 = vector.load %arg9[%c0_8, %c0_9] : memref<2048x128xf32, #tpu.memory_space<vmem>>, vector<2048x128xf32>
    %18 = arith.truncf %16 : vector<2048x128xf32> to vector<2048x128xbf16>
    %c0_10 = arith.constant 0 : index
    %c0_11 = arith.constant 0 : index
    %19 = vector.load %arg4[%c0_10, %c0_11] : memref<128x128xbf16, #tpu.memory_space<vmem>>, vector<128x128xbf16>
    %cst_12 = arith.constant dense<0.000000e+00> : vector<2048x128xf32>
    %20 = tpu.matmul %18, %19, %cst_12 {dimension_numbers = #tpu.dot_dimension_numbers<[1], [0], [0], [1], [0, 0, 1, 1], [], []>} : vector<2048x128xbf16>, vector<128x128xbf16>, vector<2048x128xf32> -> vector<2048x128xf32>
    %21 = arith.addf %17, %20 : vector<2048x128xf32>
    %c0_13 = arith.constant 0 : index
    %c0_14 = arith.constant 0 : index
    %22 = vector.load %arg9[%c0_13, %c0_14] : memref<2048x128xf32, #tpu.memory_space<vmem>>, vector<2048x128xf32>
    tpu.vector_store %arg9[%c0_13, %c0_14], %21 {strides = array<i32>} : memref<2048x128xf32, #tpu.memory_space<vmem>>, vector<2048x128xf32>,
    %c0_i32_15 = arith.constant 0 : i32
    %23 = arith.cmpi eq, %arg2, %c0_i32_15 : i32
    %24 = arith.extui %23 : i1 to i32
    %c0_i32_16 = arith.constant 0 : i32
    %25 = arith.cmpi ne, %24, %c0_i32_16 : i32
    scf.if %25 {
      %c0_17 = arith.constant 0 : index
      %c0_18 = arith.constant 0 : index
      %26 = vector.load %arg9[%c0_17, %c0_18] : memref<2048x128xf32, #tpu.memory_space<vmem>>, vector<2048x128xf32>
      %c0_19 = arith.constant 0 : index
      %c0_20 = arith.constant 0 : index
      %27 = vector.load %arg8[%c0_19, %c0_20] : memref<2048x128xf32, #tpu.memory_space<vmem>>, vector<2048x128xf32>
      tpu.vector_store %arg8[%c0_19, %c0_20], %26 {strides = array<i32>} : memref<2048x128xf32, #tpu.memory_space<vmem>>, vector<2048x128xf32>,
    } else {
    }
    return
  }
  func.func @transform_0(%arg0: i32, %arg1: i32, %arg2: i32) -> (i32, i32) {
    %c0_i32 = arith.constant 0 : i32
    return %arg0, %arg2 : i32, i32
  }
  func.func @transform_1(%arg0: i32, %arg1: i32, %arg2: i32) -> (i32, i32) {
    %c0_i32 = arith.constant 0 : i32
    return %arg2, %arg1 : i32, i32
  }
  func.func @transform_2(%arg0: i32, %arg1: i32, %arg2: i32) -> (i32, i32) {
    %c0_i32 = arith.constant 0 : i32
    %c0_i32_0 = arith.constant 0 : i32
    return %c0_i32, %arg2 : i32, i32
  }
  func.func @transform_3(%arg0: i32, %arg1: i32, %arg2: i32) -> (i32, i32) {
    %c0_i32 = arith.constant 0 : i32
    %c0_i32_0 = arith.constant 0 : i32
    return %c0_i32, %arg2 : i32, i32
  }
  func.func @transform_4(%arg0: i32, %arg1: i32, %arg2: i32) -> (i32, i32) {
    %c0_i32 = arith.constant 0 : i32
    %c0_i32_0 = arith.constant 0 : i32
    return %c0_i32, %arg2 : i32, i32
  }
  func.func @transform_5(%arg0: i32, %arg1: i32, %arg2: i32) -> (i32, i32) {
    %c0_i32 = arith.constant 0 : i32
    return %arg0, %arg1 : i32, i32
  }
}

</mosaic_0001>

<llo_original>
// kernel: tpu_custom_call.1
$region0: #{tpu_custom_call.1}
  #allocation0 [shape = 'u32[]', space=smem, size = 0x4, offset = 0x4, fixed_abs, tag = 'smem constant byte address 0x4 - core index']
  #allocation1 [shape = 'u32[144,128]{1,0:T(1,128)}', space=vmem, size = 0x12000, scoped, tag = 'internal scratch']
  #allocation2 [shape = 'f32[2048,128]{1,0:T(8,128)}', space=vmem, size = 0x100000, scoped, tag = 'scratch operand']
  %s0 = inlined_call_operand.hbm [shape: bf16[16384,128], index: 0, kind: input, shape index: {}]
  %s1 = inlined_call_operand.hbm [shape: bf16[128,128], index: 1, kind: input, shape index: {}]
  %s2 = inlined_call_operand.hbm [shape: f32[1,128], index: 2, kind: input, shape index: {}]
  %s3 = inlined_call_operand.hbm [shape: f32[1,128], index: 3, kind: input, shape index: {}]
  %s4 = inlined_call_operand.hbm [shape: f32[1,128], index: 4, kind: input, shape index: {}]
  %s5 = inlined_call_operand.hbm [shape: f32[16384,128], index: 5, kind: output, shape index: {}]
  %s6 = sld [smem:[#allocation0]]
  $region81: #{tpu_custom_call.1} parent=0
    _
  %s8 = ssub.s32 1, %s6
  %s9 = scalar_select 0, %s8, %s6
  $region1: #{tpu_custom_call.1} parent=0
    #allocation3 [shape = 'u8[1048576]{0}', space=vmem, size = 0x100000, scoped, tag = 'input window, operand 0']
    #allocation4 [shape = 's32[2]{0}', space=sflag, size = 0x8, scoped, tag = 'scoped memory for tpu_custom_call.1']
    #allocation5 [shape = 's32[2]{0}', space=sflag, size = 0x8, scoped, tag = 'scoped memory for tpu_custom_call.1']
    #allocation6 [shape = 'u8[32768]{0}', space=vmem, size = 0x8000, scoped, tag = 'input window, operand 1, single buffered']
    #allocation7 [shape = 's32[1]{0}', space=sflag, size = 0x4, scoped, tag = 'scoped memory for tpu_custom_call.1']
    #allocation8 [shape = 'u8[512]{0}', space=vmem, size = 0x400, scoped, tag = 'input window, operand 2, single buffered']
    #allocation9 [shape = 'u8[512]{0}', space=vmem, size = 0x400, scoped, tag = 'input window, operand 3, single buffered']
    #allocation10 [shape = 's32[1]{0}', space=sflag, size = 0x4, scoped, tag = 'scoped memory for tpu_custom_call.1']
    #allocation11 [shape = 'u8[512]{0}', space=vmem, size = 0x400, scoped, tag = 'input window, operand 4, single buffered']
    #allocation12 [shape = 'u8[2097152]{0}', space=vmem, size = 0x200000, scoped, tag = 'output window, operand 0']
    %10 = vsyncpa [#allocation4], 0
    %s11 = scalar_lea.sflag [#allocation4], 1
    %12 = vsyncpa %s11, 0
    %13 = vsyncpa [#allocation7], 0
    %14 = vsyncpa [#allocation10], 0
    %15 = vsyncpa [#allocation5], 0
    %s16 = scalar_lea.sflag [#allocation5], 1
    %17 = vsyncpa %s16, 0
    loop: start=0, step=1, limit=10
    $region2: #{tpu_custom_call.1} parent=1 // loop_pre_header
      _
    $region3: #{tpu_custom_call.1} parent=1 // loop_header
      %s19 = sphi 0, %s23
      %p20 = scmp.ge.s32.totalorder %s19, 10
      %s26 = sphi 0, %s45
      %s27 = sphi 0, %s41
      %s28 = sphi 0, %s37
      %s29 = sphi 0, %s26
      %s30 = sphi 0, %s27
      %s31 = sphi 0, %s28
      %s32 = sphi 0, %s29
      %s33 = sphi 0, %s30
      %s34 = sphi 0, %s31
      %s50 = sphi 0, %s52
      %s53 = sphi 0, %s50
      %s54 = sphi 0, %s53
      %s70 = sphi 0, %s54
      %s78 = sphi 0, %s80
      %s81 = sphi 0, %s78
      %s82 = sphi 0, %s81
      %s98 = sphi 0, %s82
      %s104 = sphi 0, %s106
      %s107 = sphi 0, %s104
      %s108 = sphi 0, %s107
      %s124 = sphi 0, %s108
      %s130 = sphi 0, %s132
      %s133 = sphi 0, %s130
      %s134 = sphi 0, %s133
      %s150 = sphi 0, %s134
      %s156 = sphi 0, %s158
      %s159 = sphi 0, %s156
      %s160 = sphi 0, %s159
      %s176 = sphi 0, %s160
      %s184 = sphi 0, %s186
      %s187 = sphi 0, %s184
      %s188 = sphi 0, %s187
      %s204 = sphi 0, %s188
    $region4: #{tpu_custom_call.1} parent=1 // loop_header_branch
      %22 = sbr.rel (%p20) target = $region8
    $region5: #{tpu_custom_call.1} parent=1 // loop_body
      %s24 = ssub.s32 %s19, 1
      %s25 = ssub.s32 %s19, 2
      %s35 = sadd.s32 1, %s28
      %p36 = scmp.ge.s32.totalorder %s35, 1
      %s37 = scalar_select %p36, 0, %s35
      %s38 = sadd.s32 1, %s27
      %s39 = scalar_select %p36, %s38, %s27
      %p40 = scmp.ge.s32.totalorder %s39, 1
      %s41 = scalar_select %p40, 0, %s39
      %s42 = sadd.s32 1, %s26
      %s43 = scalar_select %p40, %s42, %s26
      %p44 = scmp.ge.s32.totalorder %s43, 8
      %s45 = scalar_select %p44, 0, %s43
      %s46 = ssub.s32 %s26, %s45
      %s47 = ssub.s32 %s28, %s37
      %s48 = sor.u32 %s46, %s47
      %p49 = scmp.eq.s32.totalorder %s48, 0
      %s51 = sadd.s32 %s50, 1
      %s52 = scalar_select %p49, %s50, %s51
      %p55 = pneg %p49
      %p56 = scmp.eq.s32.totalorder %s19, 7
      %p57 = por %p55, %p56
      %p58 = scmp.ne.s32.totalorder %s50, %s53
      %p59 = scmp.eq.s32.totalorder %s19, 0
      %p60 = por %p58, %p59
      %p61 = scmp.ne.s32.totalorder %s50, %s53
      %p62 = scmp.eq.s32.totalorder %s24, 7
      %p63 = por %p61, %p62
      %p64 = scmp.ne.s32.totalorder %s53, %s54
      %p65 = scmp.eq.s32.totalorder %s24, 0
      %p66 = por %p64, %p65
      %p67 = scmp.ne.s32.totalorder %s53, %s54
      %p68 = scmp.eq.s32.totalorder %s25, 7
      %p69 = por %p67, %p68
      %p71 = scmp.ne.s32.totalorder %s54, %s70
      %p72 = scmp.eq.s32.totalorder %s25, 0
      %p73 = por %p71, %p72
      %s74 = ssub.s32 %s28, %s37
      %s75 = ssub.s32 %s27, %s41
      %s76 = sor.u32 %s74, %s75
      %p77 = scmp.eq.s32.totalorder %s76, 0
      %s79 = sadd.s32 %s78, 1
      %s80 = scalar_select %p77, %s78, %s79
      %p83 = pneg %p77
      %p84 = scmp.eq.s32.totalorder %s19, 7
      %p85 = por %p83, %p84
      %p86 = scmp.ne.s32.totalorder %s78, %s81
      %p87 = scmp.eq.s32.totalorder %s19, 0
      %p88 = por %p86, %p87
      %p89 = scmp.ne.s32.totalorder %s78, %s81
      %p90 = scmp.eq.s32.totalorder %s24, 7
      %p91 = por %p89, %p90
      %p92 = scmp.ne.s32.totalorder %s81, %s82
      %p93 = scmp.eq.s32.totalorder %s24, 0
      %p94 = por %p92, %p93
      %p95 = scmp.ne.s32.totalorder %s81, %s82
      %p96 = scmp.eq.s32.totalorder %s25, 7
      %p97 = por %p95, %p96
      %p99 = scmp.ne.s32.totalorder %s82, %s98
      %p100 = scmp.eq.s32.totalorder %s25, 0
      %p101 = por %p99, %p100
      %s102 = ssub.s32 %s28, %s37
      %p103 = scmp.eq.s32.totalorder %s102, 0
      %s105 = sadd.s32 %s104, 1
      %s106 = scalar_select %p103, %s104, %s105
      %p109 = pneg %p103
      %p110 = scmp.eq.s32.totalorder %s19, 7
      %p111 = por %p109, %p110
      %p112 = scmp.ne.s32.totalorder %s104, %s107
      %p113 = scmp.eq.s32.totalorder %s19, 0
      %p114 = por %p112, %p113
      %p115 = scmp.ne.s32.totalorder %s104, %s107
      %p116 = scmp.eq.s32.totalorder %s24, 7
      %p117 = por %p115, %p116
      %p118 = scmp.ne.s32.totalorder %s107, %s108
      %p119 = scmp.eq.s32.totalorder %s24, 0
      %p120 = por %p118, %p119
      %p121 = scmp.ne.s32.totalorder %s107, %s108
      %p122 = scmp.eq.s32.totalorder %s25, 7
      %p123 = por %p121, %p122
      %p125 = scmp.ne.s32.totalorder %s108, %s124
      %p126 = scmp.eq.s32.totalorder %s25, 0
      %p127 = por %p125, %p126
      %s128 = ssub.s32 %s28, %s37
      %p129 = scmp.eq.s32.totalorder %s128, 0
      %s131 = sadd.s32 %s130, 1
      %s132 = scalar_select %p129, %s130, %s131
      %p135 = pneg %p129
      %p136 = scmp.eq.s32.totalorder %s19, 7
      %p137 = por %p135, %p136
      %p138 = scmp.ne.s32.totalorder %s130, %s133
      %p139 = scmp.eq.s32.totalorder %s19, 0
      %p140 = por %p138, %p139
      %p141 = scmp.ne.s32.totalorder %s130, %s133
      %p142 = scmp.eq.s32.totalorder %s24, 7
      %p143 = por %p141, %p142
      %p144 = scmp.ne.s32.totalorder %s133, %s134
      %p145 = scmp.eq.s32.totalorder %s24, 0
      %p146 = por %p144, %p145
      %p147 = scmp.ne.s32.totalorder %s133, %s134
      %p148 = scmp.eq.s32.totalorder %s25, 7
      %p149 = por %p147, %p148
      %p151 = scmp.ne.s32.totalorder %s134, %s150
      %p152 = scmp.eq.s32.totalorder %s25, 0
      %p153 = por %p151, %p152
      %s154 = ssub.s32 %s28, %s37
      %p155 = scmp.eq.s32.totalorder %s154, 0
      %s157 = sadd.s32 %s156, 1
      %s158 = scalar_select %p155, %s156, %s157
      %p161 = pneg %p155
      %p162 = scmp.eq.s32.totalorder %s19, 7
      %p163 = por %p161, %p162
      %p164 = scmp.ne.s32.totalorder %s156, %s159
      %p165 = scmp.eq.s32.totalorder %s19, 0
      %p166 = por %p164, %p165
      %p167 = scmp.ne.s32.totalorder %s156, %s159
      %p168 = scmp.eq.s32.totalorder %s24, 7
      %p169 = por %p167, %p168
      %p170 = scmp.ne.s32.totalorder %s159, %s160
      %p171 = scmp.eq.s32.totalorder %s24, 0
      %p172 = por %p170, %p171
      %p173 = scmp.ne.s32.totalorder %s159, %s160
      %p174 = scmp.eq.s32.totalorder %s25, 7
      %p175 = por %p173, %p174
      %p177 = scmp.ne.s32.totalorder %s160, %s176
      %p178 = scmp.eq.s32.totalorder %s25, 0
      %p179 = por %p177, %p178
      %s180 = ssub.s32 %s26, %s45
      %s181 = ssub.s32 %s27, %s41
      %s182 = sor.u32 %s180, %s181
      %p183 = scmp.eq.s32.totalorder %s182, 0
      %s185 = sadd.s32 %s184, 1
      %s186 = scalar_select %p183, %s184, %s185
      %p189 = pneg %p183
      %p190 = scmp.eq.s32.totalorder %s19, 7
      %p191 = por %p189, %p190
      %p192 = scmp.ne.s32.totalorder %s184, %s187
      %p193 = scmp.eq.s32.totalorder %s19, 0
      %p194 = por %p192, %p193
      %p195 = scmp.ne.s32.totalorder %s184, %s187
      %p196 = scmp.eq.s32.totalorder %s24, 7
      %p197 = por %p195, %p196
      %p198 = scmp.ne.s32.totalorder %s187, %s188
      %p199 = scmp.eq.s32.totalorder %s24, 0
      %p200 = por %p198, %p199
      %p201 = scmp.ne.s32.totalorder %s187, %s188
      %p202 = scmp.eq.s32.totalorder %s25, 7
      %p203 = por %p201, %p202
      %p205 = scmp.ne.s32.totalorder %s188, %s204
      %p206 = scmp.eq.s32.totalorder %s25, 0
      %p207 = por %p205, %p206
      %p208 = scmp.le.s32.totalorder 1, %s19
      %p209 = scmp.lt.s32.totalorder %s19, 9
      %p210 = pnand %p208, %p209
      %p211 = pneg %p210
      // Predicated region
      $region9: #{tpu_custom_call.1} parent=5 // pred_check
        _
      $region10: #{tpu_custom_call.1} parent=5 // pred_check_branch
        %213 = sbr.rel (%p210) target = $region12
      $region11: #{tpu_custom_call.1} parent=5 // pred_region
        %s214 = ssub.s32 %s19, 1
        // Predicated region
        $region13: #{tpu_custom_call.1} parent=11 // pred_check
          %p215 = pneg %p94
        $region14: #{tpu_custom_call.1} parent=11 // pred_check_branch
          %217 = sbr.rel (%p215) target = $region16
        $region15: #{tpu_custom_call.1} parent=11 // pred_region
          %s218 = smul.u32 16, %s31
          %s220 = ssub.s32 1024, 1024
          %221 = vsyncadd [#allocation7], %s220
          %s222 = sadd.s32 %s30, %s218
          %s223 = smul.addr %s222, 64
          %s224 = scalar_lea.hbm %s1, %s223
          %s225 = sshll.u32 [#allocation6], 4
          %s226 = int_to_ptr.vmem [resolvable:$true] %s225
          %231 = dma.hbm_to_vmem [thread:$0]  %s224, 1024, %s226, [#allocation7], 64, 64, 4
        $region16: #{tpu_custom_call.1} parent=11 // pred_fallthru
          _
        // Predicated region
        $region17: #{tpu_custom_call.1} parent=11 // pred_check
          %p232 = pneg %p120
        $region18: #{tpu_custom_call.1} parent=11 // pred_check_branch
          %234 = sbr.rel (%p232) target = $region20
        $region19: #{tpu_custom_call.1} parent=11 // pred_region
          %s236 = ssub.s32 16, 16
          %237 = vsyncadd [#allocation7], %s236
          %s238 = smul.addr %s31, 16
          %s239 = scalar_lea.hbm %s2, %s238
          %s241 = sshll.u32 [#allocation8], 4
          %s242 = int_to_ptr.vmem [resolvable:$true] %s241
          %244 = dma.hbm_to_vmem [thread:$0]  %s239, 16, %s242, [#allocation7]
        $region20: #{tpu_custom_call.1} parent=11 // pred_fallthru
          _
        // Predicated region
        $region21: #{tpu_custom_call.1} parent=11 // pred_check
          %p245 = pneg %p146
        $region22: #{tpu_custom_call.1} parent=11 // pred_check_branch
          %247 = sbr.rel (%p245) target = $region24
        $region23: #{tpu_custom_call.1} parent=11 // pred_region
          %s249 = ssub.s32 16, 16
          %250 = vsyncadd [#allocation10], %s249
          %s251 = smul.addr %s31, 16
          %s252 = scalar_lea.hbm %s3, %s251
          %s254 = sshll.u32 [#allocation9], 4
          %s255 = int_to_ptr.vmem [resolvable:$true] %s254
          %257 = dma.hbm_to_vmem [thread:$0]  %s252, 16, %s255, [#allocation10]
        $region24: #{tpu_custom_call.1} parent=11 // pred_fallthru
          _
        // Predicated region
        $region25: #{tpu_custom_call.1} parent=11 // pred_check
          %p258 = pneg %p172
        $region26: #{tpu_custom_call.1} parent=11 // pred_check_branch
          %260 = sbr.rel (%p258) target = $region28
        $region27: #{tpu_custom_call.1} parent=11 // pred_region
          %s262 = ssub.s32 16, 16
          %263 = vsyncadd [#allocation10], %s262
          %s264 = smul.addr %s31, 16
          %s265 = scalar_lea.hbm %s4, %s264
          %s267 = sshll.u32 [#allocation11], 4
          %s268 = int_to_ptr.vmem [resolvable:$true] %s267
          %270 = dma.hbm_to_vmem [thread:$0]  %s265, 16, %s268, [#allocation10]
        $region28: #{tpu_custom_call.1} parent=11 // pred_fallthru
          _
      $region12: #{tpu_custom_call.1} parent=5 // pred_fallthru
        _
      %p271 = scmp.lt.s32.totalorder %s19, 8
      // Predicated region
      $region29: #{tpu_custom_call.1} parent=5 // pred_check
        %p272 = pneg %p271
      $region30: #{tpu_custom_call.1} parent=5 // pred_check_branch
        %274 = sbr.rel (%p272) target = $region32
      $region31: #{tpu_custom_call.1} parent=5 // pred_region
        // Predicated region
        $region33: #{tpu_custom_call.1} parent=31 // pred_check
          %p275 = pneg %p60
        $region34: #{tpu_custom_call.1} parent=31 // pred_check_branch
          %277 = sbr.rel (%p275) target = $region36
        $region35: #{tpu_custom_call.1} parent=31 // pred_region
          %s278 = sand.u32 %s50, 1
          %s279 = scalar_lea.sflag [#allocation4], %s278
          %s280 = sand.u32 %s50, 1
          %s281 = smul.addr %s280, 1024
          %s282 = scalar_lea.vmem [#allocation3], %s281
          %s283 = smul.u32 256, %s26
          %s285 = ssub.s32 16384, 16384
          %286 = vsyncadd %s279, %s285
          %s287 = sadd.s32 %s28, %s283
          %s288 = smul.addr %s287, 64
          %s289 = scalar_lea.hbm %s0, %s288
          %s290 = sshll.u32 %s282, 4
          %s291 = int_to_ptr.vmem [resolvable:$true] %s290
          %296 = dma.hbm_to_vmem [thread:$0]  %s289, 16384, %s291, %s279, 64, 64, 4
        $region36: #{tpu_custom_call.1} parent=31 // pred_fallthru
          _
      $region32: #{tpu_custom_call.1} parent=5 // pred_fallthru
        _
      %p297 = scmp.le.s32.totalorder 1, %s19
      %p298 = scmp.lt.s32.totalorder %s19, 9
      %p299 = pnand %p297, %p298
      %p300 = pneg %p299
      // Predicated region
      $region37: #{tpu_custom_call.1} parent=5 // pred_check
        _
      $region38: #{tpu_custom_call.1} parent=5 // pred_check_branch
        %302 = sbr.rel (%p299) target = $region40
      $region39: #{tpu_custom_call.1} parent=5 // pred_region
        %s303 = ssub.s32 %s19, 1
        %s304 = sand.u32 %s53, 1
        %s305 = scalar_lea.sflag [#allocation4], %s304
        %s306 = sand.u32 %s53, 1
        %s307 = smul.addr %s306, 1024
        %s308 = scalar_lea.vmem [#allocation3], %s307
        // Predicated region
        $region41: #{tpu_custom_call.1} parent=39 // pred_check
          %p309 = pneg %p66
        $region42: #{tpu_custom_call.1} parent=39 // pred_check_branch
          %311 = sbr.rel (%p309) target = $region44
        $region43: #{tpu_custom_call.1} parent=39 // pred_region
          %312 = dma.done %s305, 16384
        $region44: #{tpu_custom_call.1} parent=39 // pred_fallthru
          _
        // Predicated region
        $region45: #{tpu_custom_call.1} parent=39 // pred_check
          %p313 = pneg %p94
        $region46: #{tpu_custom_call.1} parent=39 // pred_check_branch
          %315 = sbr.rel (%p313) target = $region48
        $region47: #{tpu_custom_call.1} parent=39 // pred_region
          %316 = dma.done [#allocation7], 1024
        $region48: #{tpu_custom_call.1} parent=39 // pred_fallthru
          _
        // Predicated region
        $region49: #{tpu_custom_call.1} parent=39 // pred_check
          %p317 = pneg %p120
        $region50: #{tpu_custom_call.1} parent=39 // pred_check_branch
          %319 = sbr.rel (%p317) target = $region52
        $region51: #{tpu_custom_call.1} parent=39 // pred_region
          %320 = dma.done [#allocation7], 16
        $region52: #{tpu_custom_call.1} parent=39 // pred_fallthru
          _
        // Predicated region
        $region53: #{tpu_custom_call.1} parent=39 // pred_check
          %p321 = pneg %p146
        $region54: #{tpu_custom_call.1} parent=39 // pred_check_branch
          %323 = sbr.rel (%p321) target = $region56
        $region55: #{tpu_custom_call.1} parent=39 // pred_region
          %324 = dma.done [#allocation10], 16
        $region56: #{tpu_custom_call.1} parent=39 // pred_fallthru
          _
        // Predicated region
        $region57: #{tpu_custom_call.1} parent=39 // pred_check
          %p325 = pneg %p172
        $region58: #{tpu_custom_call.1} parent=39 // pred_check_branch
          %327 = sbr.rel (%p325) target = $region60
        $region59: #{tpu_custom_call.1} parent=39 // pred_region
          %328 = dma.done [#allocation10], 16
        $region60: #{tpu_custom_call.1} parent=39 // pred_fallthru
          _
        %s329 = sand.u32 %s53, 1
        %s330 = scalar_lea.sflag [#allocation4], %s329
        %s331 = sand.u32 %s53, 1
        %s332 = smul.addr %s331, 1024
        %s333 = scalar_lea.vmem [#allocation3], %s332
        %p334 = pneg %p66
        %p335 = pneg %p63
        %p336 = pneg %p94
        %p337 = pneg %p91
        %p338 = pneg %p120
        %p339 = pneg %p117
        %p340 = pneg %p146
        %p341 = pneg %p143
        %p342 = pneg %p172
        %p343 = pneg %p169
        %p344 = pneg %p200
        %p345 = pneg %p197
        %s346 = sand.u32 %s187, 1
        %s347 = scalar_lea.sflag [#allocation5], %s346
        %s348 = sand.u32 %s187, 1
        %s349 = smul.addr %s348, 2048
        %s350 = scalar_lea.vmem [#allocation12], %s349
        %s351 = smul.u32 256, %s29
        %s352 = smul.u32 16, %s31
        %s353 = smul.u32 256, %s29
        %p355 = scmp.eq.s32.totalorder %s31, 0
        // Predicated region
        $region61: #{tpu_custom_call.1} parent=39 // pred_check
          %p356 = pneg %p355
        $region62: #{tpu_custom_call.1} parent=39 // pred_check_branch
          %358 = sbr.rel (%p356) target = $region64
        $region63: #{tpu_custom_call.1} parent=39 // pred_region
          %359 = vst [vmem:[#allocation2] sm:$0xff] 0.0
          %360 = vst [vmem:[#allocation2 + $0x8] sm:$0xff] 0.0
          %361 = vst [vmem:[#allocation2 + $0x10] sm:$0xff] 0.0
          %362 = vst [vmem:[#allocation2 + $0x18] sm:$0xff] 0.0
          %363 = vst [vmem:[#allocation2 + $0x20] sm:$0xff] 0.0
          %364 = vst [vmem:[#allocation2 + $0x28] sm:$0xff] 0.0
          %365 = vst [vmem:[#allocation2 + $0x30] sm:$0xff] 0.0
          %366 = vst [vmem:[#allocation2 + $0x38] sm:$0xff] 0.0
          %367 = vst [vmem:[#allocation2 + $0x40] sm:$0xff] 0.0
          %368 = vst [vmem:[#allocation2 + $0x48] sm:$0xff] 0.0
          %369 = vst [vmem:[#allocation2 + $0x50] sm:$0xff] 0.0
          %370 = vst [vmem:[#allocation2 + $0x58] sm:$0xff] 0.0
          %371 = vst [vmem:[#allocation2 + $0x60] sm:$0xff] 0.0
          %372 = vst [vmem:[#allocation2 + $0x68] sm:$0xff] 0.0
          %373 = vst [vmem:[#allocation2 + $0x70] sm:$0xff] 0.0
          %374 = vst [vmem:[#allocation2 + $0x78] sm:$0xff] 0.0
          %375 = vst [vmem:[#allocation2 + $0x80] sm:$0xff] 0.0
          %376 = vst [vmem:[#allocation2 + $0x88] sm:$0xff] 0.0
          %377 = vst [vmem:[#allocation2 + $0x90] sm:$0xff] 0.0
          %378 = vst [vmem:[#allocation2 + $0x98] sm:$0xff] 0.0
          %379 = vst [vmem:[#allocation2 + $0xa0] sm:$0xff] 0.0
          %380 = vst [vmem:[#allocation2 + $0xa8] sm:$0xff] 0.0
          %381 = vst [vmem:[#allocation2 + $0xb0] sm:$0xff] 0.0
          %382 = vst [vmem:[#allocation2 + $0xb8] sm:$0xff] 0.0
          %383 = vst [vmem:[#allocation2 + $0xc0] sm:$0xff] 0.0
          %384 = vst [vmem:[#allocation2 + $0xc8] sm:$0xff] 0.0
          %385 = vst [vmem:[#allocation2 + $0xd0] sm:$0xff] 0.0
          %386 = vst [vmem:[#allocation2 + $0xd8] sm:$0xff] 0.0
          %387 = vst [vmem:[#allocation2 + $0xe0] sm:$0xff] 0.0
          %388 = vst [vmem:[#allocation2 + $0xe8] sm:$0xff] 0.0
          %389 = vst [vmem:[#allocation2 + $0xf0] sm:$0xff] 0.0
          %390 = vst [vmem:[#allocation2 + $0xf8] sm:$0xff] 0.0
          %391 = vst [vmem:[#allocation2 + $0x100] sm:$0xff] 0.0
          %392 = vst [vmem:[#allocation2 + $0x108] sm:$0xff] 0.0
          %393 = vst [vmem:[#allocation2 + $0x110] sm:$0xff] 0.0
          %394 = vst [vmem:[#allocation2 + $0x118] sm:$0xff] 0.0
          %395 = vst [vmem:[#allocation2 + $0x120] sm:$0xff] 0.0
          %396 = vst [vmem:[#allocation2 + $0x128] sm:$0xff] 0.0
          %397 = vst [vmem:[#allocation2 + $0x130] sm:$0xff] 0.0
          %398 = vst [vmem:[#allocation2 + $0x138] sm:$0xff] 0.0
          %399 = vst [vmem:[#allocation2 + $0x140] sm:$0xff] 0.0
          %400 = vst [vmem:[#allocation2 + $0x148] sm:$0xff] 0.0
          %401 = vst [vmem:[#allocation2 + $0x150] sm:$0xff] 0.0
          %402 = vst [vmem:[#allocation2 + $0x158] sm:$0xff] 0.0
          %403 = vst [vmem:[#allocation2 + $0x160] sm:$0xff] 0.0
          %404 = vst [vmem:[#allocation2 + $0x168] sm:$0xff] 0.0
          %405 = vst [vmem:[#allocation2 + $0x170] sm:$0xff] 0.0
          %406 = vst [vmem:[#allocation2 + $0x178] sm:$0xff] 0.0
          %407 = vst [vmem:[#allocation2 + $0x180] sm:$0xff] 0.0
          %408 = vst [vmem:[#allocation2 + $0x188] sm:$0xff] 0.0
          %409 = vst [vmem:[#allocation2 + $0x190] sm:$0xff] 0.0
          %410 = vst [vmem:[#allocation2 + $0x198] sm:$0xff] 0.0
          %411 = vst [vmem:[#allocation2 + $0x1a0] sm:$0xff] 0.0
          %412 = vst [vmem:[#allocation2 + $0x1a8] sm:$0xff] 0.0
          %413 = vst [vmem:[#allocation2 + $0x1b0] sm:$0xff] 0.0
          %414 = vst [vmem:[#allocation2 + $0x1b8] sm:$0xff] 0.0
          %415 = vst [vmem:[#allocation2 + $0x1c0] sm:$0xff] 0.0
          %416 = vst [vmem:[#allocation2 + $0x1c8] sm:$0xff] 0.0
          %417 = vst [vmem:[#allocation2 + $0x1d0] sm:$0xff] 0.0
          %418 = vst [vmem:[#allocation2 + $0x1d8] sm:$0xff] 0.0
          %419 = vst [vmem:[#allocation2 + $0x1e0] sm:$0xff] 0.0
          %420 = vst [vmem:[#allocation2 + $0x1e8] sm:$0xff] 0.0
          %421 = vst [vmem:[#allocation2 + $0x1f0] sm:$0xff] 0.0
          %422 = vst [vmem:[#allocation2 + $0x1f8] sm:$0xff] 0.0
          %423 = vst [vmem:[#allocation2 + $0x200] sm:$0xff] 0.0
          %424 = vst [vmem:[#allocation2 + $0x208] sm:$0xff] 0.0
          %425 = vst [vmem:[#allocation2 + $0x210] sm:$0xff] 0.0
          %426 = vst [vmem:[#allocation2 + $0x218] sm:$0xff] 0.0
          %427 = vst [vmem:[#allocation2 + $0x220] sm:$0xff] 0.0
          %428 = vst [vmem:[#allocation2 + $0x228] sm:$0xff] 0.0
          %429 = vst [vmem:[#allocation2 + $0x230] sm:$0xff] 0.0
          %430 = vst [vmem:[#allocation2 + $0x238] sm:$0xff] 0.0
          %431 = vst [vmem:[#allocation2 + $0x240] sm:$0xff] 0.0
          %432 = vst [vmem:[#allocation2 + $0x248] sm:$0xff] 0.0
          %433 = vst [vmem:[#allocation2 + $0x250] sm:$0xff] 0.0
          %434 = vst [vmem:[#allocation2 + $0x258] sm:$0xff] 0.0
          %435 = vst [vmem:[#allocation2 + $0x260] sm:$0xff] 0.0
          %436 = vst [vmem:[#allocation2 + $0x268] sm:$0xff] 0.0
          %437 = vst [vmem:[#allocation2 + $0x270] sm:$0xff] 0.0
          %438 = vst [vmem:[#allocation2 + $0x278] sm:$0xff] 0.0
          %439 = vst [vmem:[#allocation2 + $0x280] sm:$0xff] 0.0
          %440 = vst [vmem:[#allocation2 + $0x288] sm:$0xff] 0.0
          %441 = vst [vmem:[#allocation2 + $0x290] sm:$0xff] 0.0
          %442 = vst [vmem:[#allocation2 + $0x298] sm:$0xff] 0.0
          %443 = vst [vmem:[#allocation2 + $0x2a0] sm:$0xff] 0.0
          %444 = vst [vmem:[#allocation2 + $0x2a8] sm:$0xff] 0.0
          %445 = vst [vmem:[#allocation2 + $0x2b0] sm:$0xff] 0.0
          %446 = vst [vmem:[#allocation2 + $0x2b8] sm:$0xff] 0.0
          %447 = vst [vmem:[#allocation2 + $0x2c0] sm:$0xff] 0.0
          %448 = vst [vmem:[#allocation2 + $0x2c8] sm:$0xff] 0.0
          %449 = vst [vmem:[#allocation2 + $0x2d0] sm:$0xff] 0.0
          %450 = vst [vmem:[#allocation2 + $0x2d8] sm:$0xff] 0.0
          %451 = vst [vmem:[#allocation2 + $0x2e0] sm:$0xff] 0.0
          %452 = vst [vmem:[#allocation2 + $0x2e8] sm:$0xff] 0.0
          %453 = vst [vmem:[#allocation2 + $0x2f0] sm:$0xff] 0.0
          %454 = vst [vmem:[#allocation2 + $0x2f8] sm:$0xff] 0.0
          %455 = vst [vmem:[#allocation2 + $0x300] sm:$0xff] 0.0
          %456 = vst [vmem:[#allocation2 + $0x308] sm:$0xff] 0.0
          %457 = vst [vmem:[#allocation2 + $0x310] sm:$0xff] 0.0
          %458 = vst [vmem:[#allocation2 + $0x318] sm:$0xff] 0.0
          %459 = vst [vmem:[#allocation2 + $0x320] sm:$0xff] 0.0
          %460 = vst [vmem:[#allocation2 + $0x328] sm:$0xff] 0.0
          %461 = vst [vmem:[#allocation2 + $0x330] sm:$0xff] 0.0
          %462 = vst [vmem:[#allocation2 + $0x338] sm:$0xff] 0.0
          %463 = vst [vmem:[#allocation2 + $0x340] sm:$0xff] 0.0
          %464 = vst [vmem:[#allocation2 + $0x348] sm:$0xff] 0.0
          %465 = vst [vmem:[#allocation2 + $0x350] sm:$0xff] 0.0
          %466 = vst [vmem:[#allocation2 + $0x358] sm:$0xff] 0.0
          %467 = vst [vmem:[#allocation2 + $0x360] sm:$0xff] 0.0
          %468 = vst [vmem:[#allocation2 + $0x368] sm:$0xff] 0.0
          %469 = vst [vmem:[#allocation2 + $0x370] sm:$0xff] 0.0
          %470 = vst [vmem:[#allocation2 + $0x378] sm:$0xff] 0.0
          %471 = vst [vmem:[#allocation2 + $0x380] sm:$0xff] 0.0
          %472 = vst [vmem:[#allocation2 + $0x388] sm:$0xff] 0.0
          %473 = vst [vmem:[#allocation2 + $0x390] sm:$0xff] 0.0
          %474 = vst [vmem:[#allocation2 + $0x398] sm:$0xff] 0.0
          %475 = vst [vmem:[#allocation2 + $0x3a0] sm:$0xff] 0.0
          %476 = vst [vmem:[#allocation2 + $0x3a8] sm:$0xff] 0.0
          %477 = vst [vmem:[#allocation2 + $0x3b0] sm:$0xff] 0.0
          %478 = vst [vmem:[#allocation2 + $0x3b8] sm:$0xff] 0.0
          %479 = vst [vmem:[#allocation2 + $0x3c0] sm:$0xff] 0.0
          %480 = vst [vmem:[#allocation2 + $0x3c8] sm:$0xff] 0.0
          %481 = vst [vmem:[#allocation2 + $0x3d0] sm:$0xff] 0.0
          %482 = vst [vmem:[#allocation2 + $0x3d8] sm:$0xff] 0.0
          %483 = vst [vmem:[#allocation2 + $0x3e0] sm:$0xff] 0.0
          %484 = vst [vmem:[#allocation2 + $0x3e8] sm:$0xff] 0.0
          %485 = vst [vmem:[#allocation2 + $0x3f0] sm:$0xff] 0.0
          %486 = vst [vmem:[#allocation2 + $0x3f8] sm:$0xff] 0.0
          %487 = vst [vmem:[#allocation2 + $0x400] sm:$0xff] 0.0
          %488 = vst [vmem:[#allocation2 + $0x408] sm:$0xff] 0.0
          %489 = vst [vmem:[#allocation2 + $0x410] sm:$0xff] 0.0
          %490 = vst [vmem:[#allocation2 + $0x418] sm:$0xff] 0.0
          %491 = vst [vmem:[#allocation2 + $0x420] sm:$0xff] 0.0
          %492 = vst [vmem:[#allocation2 + $0x428] sm:$0xff] 0.0
          %493 = vst [vmem:[#allocation2 + $0x430] sm:$0xff] 0.0
          %494 = vst [vmem:[#allocation2 + $0x438] sm:$0xff] 0.0
          %495 = vst [vmem:[#allocation2 + $0x440] sm:$0xff] 0.0
          %496 = vst [vmem:[#allocation2 + $0x448] sm:$0xff] 0.0
          %497 = vst [vmem:[#allocation2 + $0x450] sm:$0xff] 0.0
          %498 = vst [vmem:[#allocation2 + $0x458] sm:$0xff] 0.0
          %499 = vst [vmem:[#allocation2 + $0x460] sm:$0xff] 0.0
          %500 = vst [vmem:[#allocation2 + $0x468] sm:$0xff] 0.0
          %501 = vst [vmem:[#allocation2 + $0x470] sm:$0xff] 0.0
          %502 = vst [vmem:[#allocation2 + $0x478] sm:$0xff] 0.0
          %503 = vst [vmem:[#allocation2 + $0x480] sm:$0xff] 0.0
          %504 = vst [vmem:[#allocation2 + $0x488] sm:$0xff] 0.0
          %505 = vst [vmem:[#allocation2 + $0x490] sm:$0xff] 0.0
          %506 = vst [vmem:[#allocation2 + $0x498] sm:$0xff] 0.0
          %507 = vst [vmem:[#allocation2 + $0x4a0] sm:$0xff] 0.0
          %508 = vst [vmem:[#allocation2 + $0x4a8] sm:$0xff] 0.0
          %509 = vst [vmem:[#allocation2 + $0x4b0] sm:$0xff] 0.0
          %510 = vst [vmem:[#allocation2 + $0x4b8] sm:$0xff] 0.0
          %511 = vst [vmem:[#allocation2 + $0x4c0] sm:$0xff] 0.0
          %512 = vst [vmem:[#allocation2 + $0x4c8] sm:$0xff] 0.0
          %513 = vst [vmem:[#allocation2 + $0x4d0] sm:$0xff] 0.0
          %514 = vst [vmem:[#allocation2 + $0x4d8] sm:$0xff] 0.0
          %515 = vst [vmem:[#allocation2 + $0x4e0] sm:$0xff] 0.0
          %516 = vst [vmem:[#allocation2 + $0x4e8] sm:$0xff] 0.0
          %517 = vst [vmem:[#allocation2 + $0x4f0] sm:$0xff] 0.0
          %518 = vst [vmem:[#allocation2 + $0x4f8] sm:$0xff] 0.0
          %519 = vst [vmem:[#allocation2 + $0x500] sm:$0xff] 0.0
          %520 = vst [vmem:[#allocation2 + $0x508] sm:$0xff] 0.0
          %521 = vst [vmem:[#allocation2 + $0x510] sm:$0xff] 0.0
          %522 = vst [vmem:[#allocation2 + $0x518] sm:$0xff] 0.0
          %523 = vst [vmem:[#allocation2 + $0x520] sm:$0xff] 0.0
          %524 = vst [vmem:[#allocation2 + $0x528] sm:$0xff] 0.0
          %525 = vst [vmem:[#allocation2 + $0x530] sm:$0xff] 0.0
          %526 = vst [vmem:[#allocation2 + $0x538] sm:$0xff] 0.0
          %527 = vst [vmem:[#allocation2 + $0x540] sm:$0xff] 0.0
          %528 = vst [vmem:[#allocation2 + $0x548] sm:$0xff] 0.0
          %529 = vst [vmem:[#allocation2 + $0x550] sm:$0xff] 0.0
          %530 = vst [vmem:[#allocation2 + $0x558] sm:$0xff] 0.0
          %531 = vst [vmem:[#allocation2 + $0x560] sm:$0xff] 0.0
          %532 = vst [vmem:[#allocation2 + $0x568] sm:$0xff] 0.0
          %533 = vst [vmem:[#allocation2 + $0x570] sm:$0xff] 0.0
          %534 = vst [vmem:[#allocation2 + $0x578] sm:$0xff] 0.0
          %535 = vst [vmem:[#allocation2 + $0x580] sm:$0xff] 0.0
          %536 = vst [vmem:[#allocation2 + $0x588] sm:$0xff] 0.0
          %537 = vst [vmem:[#allocation2 + $0x590] sm:$0xff] 0.0
          %538 = vst [vmem:[#allocation2 + $0x598] sm:$0xff] 0.0
          %539 = vst [vmem:[#allocation2 + $0x5a0] sm:$0xff] 0.0
          %540 = vst [vmem:[#allocation2 + $0x5a8] sm:$0xff] 0.0
          %541 = vst [vmem:[#allocation2 + $0x5b0] sm:$0xff] 0.0
          %542 = vst [vmem:[#allocation2 + $0x5b8] sm:$0xff] 0.0
          %543 = vst [vmem:[#allocation2 + $0x5c0] sm:$0xff] 0.0
          %544 = vst [vmem:[#allocation2 + $0x5c8] sm:$0xff] 0.0
          %545 = vst [vmem:[#allocation2 + $0x5d0] sm:$0xff] 0.0
          %546 = vst [vmem:[#allocation2 + $0x5d8] sm:$0xff] 0.0
          %547 = vst [vmem:[#allocation2 + $0x5e0] sm:$0xff] 0.0
          %548 = vst [vmem:[#allocation2 + $0x5e8] sm:$0xff] 0.0
          %549 = vst [vmem:[#allocation2 + $0x5f0] sm:$0xff] 0.0
          %550 = vst [vmem:[#allocation2 + $0x5f8] sm:$0xff] 0.0
          %551 = vst [vmem:[#allocation2 + $0x600] sm:$0xff] 0.0
          %552 = vst [vmem:[#allocation2 + $0x608] sm:$0xff] 0.0
          %553 = vst [vmem:[#allocation2 + $0x610] sm:$0xff] 0.0
          %554 = vst [vmem:[#allocation2 + $0x618] sm:$0xff] 0.0
          %555 = vst [vmem:[#allocation2 + $0x620] sm:$0xff] 0.0
          %556 = vst [vmem:[#allocation2 + $0x628] sm:$0xff] 0.0
          %557 = vst [vmem:[#allocation2 + $0x630] sm:$0xff] 0.0
          %558 = vst [vmem:[#allocation2 + $0x638] sm:$0xff] 0.0
          %559 = vst [vmem:[#allocation2 + $0x640] sm:$0xff] 0.0
          %560 = vst [vmem:[#allocation2 + $0x648] sm:$0xff] 0.0
          %561 = vst [vmem:[#allocation2 + $0x650] sm:$0xff] 0.0
          %562 = vst [vmem:[#allocation2 + $0x658] sm:$0xff] 0.0
          %563 = vst [vmem:[#allocation2 + $0x660] sm:$0xff] 0.0
          %564 = vst [vmem:[#allocation2 + $0x668] sm:$0xff] 0.0
          %565 = vst [vmem:[#allocation2 + $0x670] sm:$0xff] 0.0
          %566 = vst [vmem:[#allocation2 + $0x678] sm:$0xff] 0.0
          %567 = vst [vmem:[#allocation2 + $0x680] sm:$0xff] 0.0
          %568 = vst [vmem:[#allocation2 + $0x688] sm:$0xff] 0.0
          %569 = vst [vmem:[#allocation2 + $0x690] sm:$0xff] 0.0
          %570 = vst [vmem:[#allocation2 + $0x698] sm:$0xff] 0.0
          %571 = vst [vmem:[#allocation2 + $0x6a0] sm:$0xff] 0.0
          %572 = vst [vmem:[#allocation2 + $0x6a8] sm:$0xff] 0.0
          %573 = vst [vmem:[#allocation2 + $0x6b0] sm:$0xff] 0.0
          %574 = vst [vmem:[#allocation2 + $0x6b8] sm:$0xff] 0.0
          %575 = vst [vmem:[#allocation2 + $0x6c0] sm:$0xff] 0.0
          %576 = vst [vmem:[#allocation2 + $0x6c8] sm:$0xff] 0.0
          %577 = vst [vmem:[#allocation2 + $0x6d0] sm:$0xff] 0.0
          %578 = vst [vmem:[#allocation2 + $0x6d8] sm:$0xff] 0.0
          %579 = vst [vmem:[#allocation2 + $0x6e0] sm:$0xff] 0.0
          %580 = vst [vmem:[#allocation2 + $0x6e8] sm:$0xff] 0.0
          %581 = vst [vmem:[#allocation2 + $0x6f0] sm:$0xff] 0.0
          %582 = vst [vmem:[#allocation2 + $0x6f8] sm:$0xff] 0.0
          %583 = vst [vmem:[#allocation2 + $0x700] sm:$0xff] 0.0
          %584 = vst [vmem:[#allocation2 + $0x708] sm:$0xff] 0.0
          %585 = vst [vmem:[#allocation2 + $0x710] sm:$0xff] 0.0
          %586 = vst [vmem:[#allocation2 + $0x718] sm:$0xff] 0.0
          %587 = vst [vmem:[#allocation2 + $0x720] sm:$0xff] 0.0
          %588 = vst [vmem:[#allocation2 + $0x728] sm:$0xff] 0.0
          %589 = vst [vmem:[#allocation2 + $0x730] sm:$0xff] 0.0
          %590 = vst [vmem:[#allocation2 + $0x738] sm:$0xff] 0.0
          %591 = vst [vmem:[#allocation2 + $0x740] sm:$0xff] 0.0
          %592 = vst [vmem:[#allocation2 + $0x748] sm:$0xff] 0.0
          %593 = vst [vmem:[#allocation2 + $0x750] sm:$0xff] 0.0
          %594 = vst [vmem:[#allocation2 + $0x758] sm:$0xff] 0.0
          %595 = vst [vmem:[#allocation2 + $0x760] sm:$0xff] 0.0
          %596 = vst [vmem:[#allocation2 + $0x768] sm:$0xff] 0.0
          %597 = vst [vmem:[#allocation2 + $0x770] sm:$0xff] 0.0
          %598 = vst [vmem:[#allocation2 + $0x778] sm:$0xff] 0.0
          %599 = vst [vmem:[#allocation2 + $0x780] sm:$0xff] 0.0
          %600 = vst [vmem:[#allocation2 + $0x788] sm:$0xff] 0.0
          %601 = vst [vmem:[#allocation2 + $0x790] sm:$0xff] 0.0
          %602 = vst [vmem:[#allocation2 + $0x798] sm:$0xff] 0.0
          %603 = vst [vmem:[#allocation2 + $0x7a0] sm:$0xff] 0.0
          %604 = vst [vmem:[#allocation2 + $0x7a8] sm:$0xff] 0.0
          %605 = vst [vmem:[#allocation2 + $0x7b0] sm:$0xff] 0.0
          %606 = vst [vmem:[#allocation2 + $0x7b8] sm:$0xff] 0.0
          %607 = vst [vmem:[#allocation2 + $0x7c0] sm:$0xff] 0.0
          %608 = vst [vmem:[#allocation2 + $0x7c8] sm:$0xff] 0.0
          %609 = vst [vmem:[#allocation2 + $0x7d0] sm:$0xff] 0.0
          %610 = vst [vmem:[#allocation2 + $0x7d8] sm:$0xff] 0.0
          %611 = vst [vmem:[#allocation2 + $0x7e0] sm:$0xff] 0.0
          %612 = vst [vmem:[#allocation2 + $0x7e8] sm:$0xff] 0.0
          %613 = vst [vmem:[#allocation2 + $0x7f0] sm:$0xff] 0.0
          %614 = vst [vmem:[#allocation2 + $0x7f8] sm:$0xff] 0.0
        $region64: #{tpu_custom_call.1} parent=39 // pred_fallthru
          _
        %v615 = vld [vmem:[%s308] sm:$0xf]
        %v616 = vld [vmem:[%s308 + $0x4] sm:$0xf]
        %v617 = vld [vmem:[%s308 + $0x8] sm:$0xf]
        %v618 = vld [vmem:[%s308 + $0xc] sm:$0xf]
        %v619 = vld [vmem:[%s308 + $0x10] sm:$0xf]
        %v620 = vld [vmem:[%s308 + $0x14] sm:$0xf]
        %v621 = vld [vmem:[%s308 + $0x18] sm:$0xf]
        %v622 = vld [vmem:[%s308 + $0x1c] sm:$0xf]
        %v623 = vld [vmem:[%s308 + $0x20] sm:$0xf]
        %v624 = vld [vmem:[%s308 + $0x24] sm:$0xf]
        %v625 = vld [vmem:[%s308 + $0x28] sm:$0xf]
        %v626 = vld [vmem:[%s308 + $0x2c] sm:$0xf]
        %v627 = vld [vmem:[%s308 + $0x30] sm:$0xf]
        %v628 = vld [vmem:[%s308 + $0x34] sm:$0xf]
        %v629 = vld [vmem:[%s308 + $0x38] sm:$0xf]
        %v630 = vld [vmem:[%s308 + $0x3c] sm:$0xf]
        %v631 = vld [vmem:[%s308 + $0x40] sm:$0xf]
        %v632 = vld [vmem:[%s308 + $0x44] sm:$0xf]
        %v633 = vld [vmem:[%s308 + $0x48] sm:$0xf]
        %v634 = vld [vmem:[%s308 + $0x4c] sm:$0xf]
        %v635 = vld [vmem:[%s308 + $0x50] sm:$0xf]
        %v636 = vld [vmem:[%s308 + $0x54] sm:$0xf]
        %v637 = vld [vmem:[%s308 + $0x58] sm:$0xf]
        %v638 = vld [vmem:[%s308 + $0x5c] sm:$0xf]
        %v639 = vld [vmem:[%s308 + $0x60] sm:$0xf]
        %v640 = vld [vmem:[%s308 + $0x64] sm:$0xf]
        %v641 = vld [vmem:[%s308 + $0x68] sm:$0xf]
        %v642 = vld [vmem:[%s308 + $0x6c] sm:$0xf]
        %v643 = vld [vmem:[%s308 + $0x70] sm:$0xf]
        %v644 = vld [vmem:[%s308 + $0x74] sm:$0xf]
        %v645 = vld [vmem:[%s308 + $0x78] sm:$0xf]
        %v646 = vld [vmem:[%s308 + $0x7c] sm:$0xf]
        %v647 = vld [vmem:[%s308 + $0x80] sm:$0xf]
        %v648 = vld [vmem:[%s308 + $0x84] sm:$0xf]
        %v649 = vld [vmem:[%s308 + $0x88] sm:$0xf]
        %v650 = vld [vmem:[%s308 + $0x8c] sm:$0xf]
        %v651 = vld [vmem:[%s308 + $0x90] sm:$0xf]
        %v652 = vld [vmem:[%s308 + $0x94] sm:$0xf]
        %v653 = vld [vmem:[%s308 + $0x98] sm:$0xf]
        %v654 = vld [vmem:[%s308 + $0x9c] sm:$0xf]
        %v655 = vld [vmem:[%s308 + $0xa0] sm:$0xf]
        %v656 = vld [vmem:[%s308 + $0xa4] sm:$0xf]
        %v657 = vld [vmem:[%s308 + $0xa8] sm:$0xf]
        %v658 = vld [vmem:[%s308 + $0xac] sm:$0xf]
        %v659 = vld [vmem:[%s308 + $0xb0] sm:$0xf]
        %v660 = vld [vmem:[%s308 + $0xb4] sm:$0xf]
        %v661 = vld [vmem:[%s308 + $0xb8] sm:$0xf]
        %v662 = vld [vmem:[%s308 + $0xbc] sm:$0xf]
        %v663 = vld [vmem:[%s308 + $0xc0] sm:$0xf]
        %v664 = vld [vmem:[%s308 + $0xc4] sm:$0xf]
        %v665 = vld [vmem:[%s308 + $0xc8] sm:$0xf]
        %v666 = vld [vmem:[%s308 + $0xcc] sm:$0xf]
        %v667 = vld [vmem:[%s308 + $0xd0] sm:$0xf]
        %v668 = vld [vmem:[%s308 + $0xd4] sm:$0xf]
        %v669 = vld [vmem:[%s308 + $0xd8] sm:$0xf]
        %v670 = vld [vmem:[%s308 + $0xdc] sm:$0xf]
        %v671 = vld [vmem:[%s308 + $0xe0] sm:$0xf]
        %v672 = vld [vmem:[%s308 + $0xe4] sm:$0xf]
        %v673 = vld [vmem:[%s308 + $0xe8] sm:$0xf]
        %v674 = vld [vmem:[%s308 + $0xec] sm:$0xf]
        %v675 = vld [vmem:[%s308 + $0xf0] sm:$0xf]
        %v676 = vld [vmem:[%s308 + $0xf4] sm:$0xf]
        %v677 = vld [vmem:[%s308 + $0xf8] sm:$0xf]
        %v678 = vld [vmem:[%s308 + $0xfc] sm:$0xf]
        %v679 = vld [vmem:[%s308 + $0x100] sm:$0xf]
        %v680 = vld [vmem:[%s308 + $0x104] sm:$0xf]
        %v681 = vld [vmem:[%s308 + $0x108] sm:$0xf]
        %v682 = vld [vmem:[%s308 + $0x10c] sm:$0xf]
        %v683 = vld [vmem:[%s308 + $0x110] sm:$0xf]
        %v684 = vld [vmem:[%s308 + $0x114] sm:$0xf]
        %v685 = vld [vmem:[%s308 + $0x118] sm:$0xf]
        %v686 = vld [vmem:[%s308 + $0x11c] sm:$0xf]
        %v687 = vld [vmem:[%s308 + $0x120] sm:$0xf]
        %v688 = vld [vmem:[%s308 + $0x124] sm:$0xf]
        %v689 = vld [vmem:[%s308 + $0x128] sm:$0xf]
        %v690 = vld [vmem:[%s308 + $0x12c] sm:$0xf]
        %v691 = vld [vmem:[%s308 + $0x130] sm:$0xf]
        %v692 = vld [vmem:[%s308 + $0x134] sm:$0xf]
        %v693 = vld [vmem:[%s308 + $0x138] sm:$0xf]
        %v694 = vld [vmem:[%s308 + $0x13c] sm:$0xf]
        %v695 = vld [vmem:[%s308 + $0x140] sm:$0xf]
        %v696 = vld [vmem:[%s308 + $0x144] sm:$0xf]
        %v697 = vld [vmem:[%s308 + $0x148] sm:$0xf]
        %v698 = vld [vmem:[%s308 + $0x14c] sm:$0xf]
        %v699 = vld [vmem:[%s308 + $0x150] sm:$0xf]
        %v700 = vld [vmem:[%s308 + $0x154] sm:$0xf]
        %v701 = vld [vmem:[%s308 + $0x158] sm:$0xf]
        %v702 = vld [vmem:[%s308 + $0x15c] sm:$0xf]
        %v703 = vld [vmem:[%s308 + $0x160] sm:$0xf]
        %v704 = vld [vmem:[%s308 + $0x164] sm:$0xf]
        %v705 = vld [vmem:[%s308 + $0x168] sm:$0xf]
        %v706 = vld [vmem:[%s308 + $0x16c] sm:$0xf]
        %v707 = vld [vmem:[%s308 + $0x170] sm:$0xf]
        %v708 = vld [vmem:[%s308 + $0x174] sm:$0xf]
        %v709 = vld [vmem:[%s308 + $0x178] sm:$0xf]
        %v710 = vld [vmem:[%s308 + $0x17c] sm:$0xf]
        %v711 = vld [vmem:[%s308 + $0x180] sm:$0xf]
        %v712 = vld [vmem:[%s308 + $0x184] sm:$0xf]
        %v713 = vld [vmem:[%s308 + $0x188] sm:$0xf]
        %v714 = vld [vmem:[%s308 + $0x18c] sm:$0xf]
        %v715 = vld [vmem:[%s308 + $0x190] sm:$0xf]
        %v716 = vld [vmem:[%s308 + $0x194] sm:$0xf]
        %v717 = vld [vmem:[%s308 + $0x198] sm:$0xf]
        %v718 = vld [vmem:[%s308 + $0x19c] sm:$0xf]
        %v719 = vld [vmem:[%s308 + $0x1a0] sm:$0xf]
        %v720 = vld [vmem:[%s308 + $0x1a4] sm:$0xf]
        %v721 = vld [vmem:[%s308 + $0x1a8] sm:$0xf]
        %v722 = vld [vmem:[%s308 + $0x1ac] sm:$0xf]
        %v723 = vld [vmem:[%s308 + $0x1b0] sm:$0xf]
        %v724 = vld [vmem:[%s308 + $0x1b4] sm:$0xf]
        %v725 = vld [vmem:[%s308 + $0x1b8] sm:$0xf]
        %v726 = vld [vmem:[%s308 + $0x1bc] sm:$0xf]
        %v727 = vld [vmem:[%s308 + $0x1c0] sm:$0xf]
        %v728 = vld [vmem:[%s308 + $0x1c4] sm:$0xf]
        %v729 = vld [vmem:[%s308 + $0x1c8] sm:$0xf]
        %v730 = vld [vmem:[%s308 + $0x1cc] sm:$0xf]
        %v731 = vld [vmem:[%s308 + $0x1d0] sm:$0xf]
        %v732 = vld [vmem:[%s308 + $0x1d4] sm:$0xf]
        %v733 = vld [vmem:[%s308 + $0x1d8] sm:$0xf]
        %v734 = vld [vmem:[%s308 + $0x1dc] sm:$0xf]
        %v735 = vld [vmem:[%s308 + $0x1e0] sm:$0xf]
        %v736 = vld [vmem:[%s308 + $0x1e4] sm:$0xf]
        %v737 = vld [vmem:[%s308 + $0x1e8] sm:$0xf]
        %v738 = vld [vmem:[%s308 + $0x1ec] sm:$0xf]
        %v739 = vld [vmem:[%s308 + $0x1f0] sm:$0xf]
        %v740 = vld [vmem:[%s308 + $0x1f4] sm:$0xf]
        %v741 = vld [vmem:[%s308 + $0x1f8] sm:$0xf]
        %v742 = vld [vmem:[%s308 + $0x1fc] sm:$0xf]
        %v743 = vld [vmem:[%s308 + $0x200] sm:$0xf]
        %v744 = vld [vmem:[%s308 + $0x204] sm:$0xf]
        %v745 = vld [vmem:[%s308 + $0x208] sm:$0xf]
        %v746 = vld [vmem:[%s308 + $0x20c] sm:$0xf]
        %v747 = vld [vmem:[%s308 + $0x210] sm:$0xf]
        %v748 = vld [vmem:[%s308 + $0x214] sm:$0xf]
        %v749 = vld [vmem:[%s308 + $0x218] sm:$0xf]
        %v750 = vld [vmem:[%s308 + $0x21c] sm:$0xf]
        %v751 = vld [vmem:[%s308 + $0x220] sm:$0xf]
        %v752 = vld [vmem:[%s308 + $0x224] sm:$0xf]
        %v753 = vld [vmem:[%s308 + $0x228] sm:$0xf]
        %v754 = vld [vmem:[%s308 + $0x22c] sm:$0xf]
        %v755 = vld [vmem:[%s308 + $0x230] sm:$0xf]
        %v756 = vld [vmem:[%s308 + $0x234] sm:$0xf]
        %v757 = vld [vmem:[%s308 + $0x238] sm:$0xf]
        %v758 = vld [vmem:[%s308 + $0x23c] sm:$0xf]
        %v759 = vld [vmem:[%s308 + $0x240] sm:$0xf]
        %v760 = vld [vmem:[%s308 + $0x244] sm:$0xf]
        %v761 = vld [vmem:[%s308 + $0x248] sm:$0xf]
        %v762 = vld [vmem:[%s308 + $0x24c] sm:$0xf]
        %v763 = vld [vmem:[%s308 + $0x250] sm:$0xf]
        %v764 = vld [vmem:[%s308 + $0x254] sm:$0xf]
        %v765 = vld [vmem:[%s308 + $0x258] sm:$0xf]
        %v766 = vld [vmem:[%s308 + $0x25c] sm:$0xf]
        %v767 = vld [vmem:[%s308 + $0x260] sm:$0xf]
        %v768 = vld [vmem:[%s308 + $0x264] sm:$0xf]
        %v769 = vld [vmem:[%s308 + $0x268] sm:$0xf]
        %v770 = vld [vmem:[%s308 + $0x26c] sm:$0xf]
        %v771 = vld [vmem:[%s308 + $0x270] sm:$0xf]
        %v772 = vld [vmem:[%s308 + $0x274] sm:$0xf]
        %v773 = vld [vmem:[%s308 + $0x278] sm:$0xf]
        %v774 = vld [vmem:[%s308 + $0x27c] sm:$0xf]
        %v775 = vld [vmem:[%s308 + $0x280] sm:$0xf]
        %v776 = vld [vmem:[%s308 + $0x284] sm:$0xf]
        %v777 = vld [vmem:[%s308 + $0x288] sm:$0xf]
        %v778 = vld [vmem:[%s308 + $0x28c] sm:$0xf]
        %v779 = vld [vmem:[%s308 + $0x290] sm:$0xf]
        %v780 = vld [vmem:[%s308 + $0x294] sm:$0xf]
        %v781 = vld [vmem:[%s308 + $0x298] sm:$0xf]
        %v782 = vld [vmem:[%s308 + $0x29c] sm:$0xf]
        %v783 = vld [vmem:[%s308 + $0x2a0] sm:$0xf]
        %v784 = vld [vmem:[%s308 + $0x2a4] sm:$0xf]
        %v785 = vld [vmem:[%s308 + $0x2a8] sm:$0xf]
        %v786 = vld [vmem:[%s308 + $0x2ac] sm:$0xf]
        %v787 = vld [vmem:[%s308 + $0x2b0] sm:$0xf]
        %v788 = vld [vmem:[%s308 + $0x2b4] sm:$0xf]
        %v789 = vld [vmem:[%s308 + $0x2b8] sm:$0xf]
        %v790 = vld [vmem:[%s308 + $0x2bc] sm:$0xf]
        %v791 = vld [vmem:[%s308 + $0x2c0] sm:$0xf]
        %v792 = vld [vmem:[%s308 + $0x2c4] sm:$0xf]
        %v793 = vld [vmem:[%s308 + $0x2c8] sm:$0xf]
        %v794 = vld [vmem:[%s308 + $0x2cc] sm:$0xf]
        %v795 = vld [vmem:[%s308 + $0x2d0] sm:$0xf]
        %v796 = vld [vmem:[%s308 + $0x2d4] sm:$0xf]
        %v797 = vld [vmem:[%s308 + $0x2d8] sm:$0xf]
        %v798 = vld [vmem:[%s308 + $0x2dc] sm:$0xf]
        %v799 = vld [vmem:[%s308 + $0x2e0] sm:$0xf]
        %v800 = vld [vmem:[%s308 + $0x2e4] sm:$0xf]
        %v801 = vld [vmem:[%s308 + $0x2e8] sm:$0xf]
        %v802 = vld [vmem:[%s308 + $0x2ec] sm:$0xf]
        %v803 = vld [vmem:[%s308 + $0x2f0] sm:$0xf]
        %v804 = vld [vmem:[%s308 + $0x2f4] sm:$0xf]
        %v805 = vld [vmem:[%s308 + $0x2f8] sm:$0xf]
        %v806 = vld [vmem:[%s308 + $0x2fc] sm:$0xf]
        %v807 = vld [vmem:[%s308 + $0x300] sm:$0xf]
        %v808 = vld [vmem:[%s308 + $0x304] sm:$0xf]
        %v809 = vld [vmem:[%s308 + $0x308] sm:$0xf]
        %v810 = vld [vmem:[%s308 + $0x30c] sm:$0xf]
        %v811 = vld [vmem:[%s308 + $0x310] sm:$0xf]
        %v812 = vld [vmem:[%s308 + $0x314] sm:$0xf]
        %v813 = vld [vmem:[%s308 + $0x318] sm:$0xf]
        %v814 = vld [vmem:[%s308 + $0x31c] sm:$0xf]
        %v815 = vld [vmem:[%s308 + $0x320] sm:$0xf]
        %v816 = vld [vmem:[%s308 + $0x324] sm:$0xf]
        %v817 = vld [vmem:[%s308 + $0x328] sm:$0xf]
        %v818 = vld [vmem:[%s308 + $0x32c] sm:$0xf]
        %v819 = vld [vmem:[%s308 + $0x330] sm:$0xf]
        %v820 = vld [vmem:[%s308 + $0x334] sm:$0xf]
        %v821 = vld [vmem:[%s308 + $0x338] sm:$0xf]
        %v822 = vld [vmem:[%s308 + $0x33c] sm:$0xf]
        %v823 = vld [vmem:[%s308 + $0x340] sm:$0xf]
        %v824 = vld [vmem:[%s308 + $0x344] sm:$0xf]
        %v825 = vld [vmem:[%s308 + $0x348] sm:$0xf]
        %v826 = vld [vmem:[%s308 + $0x34c] sm:$0xf]
        %v827 = vld [vmem:[%s308 + $0x350] sm:$0xf]
        %v828 = vld [vmem:[%s308 + $0x354] sm:$0xf]
        %v829 = vld [vmem:[%s308 + $0x358] sm:$0xf]
        %v830 = vld [vmem:[%s308 + $0x35c] sm:$0xf]
        %v831 = vld [vmem:[%s308 + $0x360] sm:$0xf]
        %v832 = vld [vmem:[%s308 + $0x364] sm:$0xf]
        %v833 = vld [vmem:[%s308 + $0x368] sm:$0xf]
        %v834 = vld [vmem:[%s308 + $0x36c] sm:$0xf]
        %v835 = vld [vmem:[%s308 + $0x370] sm:$0xf]
        %v836 = vld [vmem:[%s308 + $0x374] sm:$0xf]
        %v837 = vld [vmem:[%s308 + $0x378] sm:$0xf]
        %v838 = vld [vmem:[%s308 + $0x37c] sm:$0xf]
        %v839 = vld [vmem:[%s308 + $0x380] sm:$0xf]
        %v840 = vld [vmem:[%s308 + $0x384] sm:$0xf]
        %v841 = vld [vmem:[%s308 + $0x388] sm:$0xf]
        %v842 = vld [vmem:[%s308 + $0x38c] sm:$0xf]
        %v843 = vld [vmem:[%s308 + $0x390] sm:$0xf]
        %v844 = vld [vmem:[%s308 + $0x394] sm:$0xf]
        %v845 = vld [vmem:[%s308 + $0x398] sm:$0xf]
        %v846 = vld [vmem:[%s308 + $0x39c] sm:$0xf]
        %v847 = vld [vmem:[%s308 + $0x3a0] sm:$0xf]
        %v848 = vld [vmem:[%s308 + $0x3a4] sm:$0xf]
        %v849 = vld [vmem:[%s308 + $0x3a8] sm:$0xf]
        %v850 = vld [vmem:[%s308 + $0x3ac] sm:$0xf]
        %v851 = vld [vmem:[%s308 + $0x3b0] sm:$0xf]
        %v852 = vld [vmem:[%s308 + $0x3b4] sm:$0xf]
        %v853 = vld [vmem:[%s308 + $0x3b8] sm:$0xf]
        %v854 = vld [vmem:[%s308 + $0x3bc] sm:$0xf]
        %v855 = vld [vmem:[%s308 + $0x3c0] sm:$0xf]
        %v856 = vld [vmem:[%s308 + $0x3c4] sm:$0xf]
        %v857 = vld [vmem:[%s308 + $0x3c8] sm:$0xf]
        %v858 = vld [vmem:[%s308 + $0x3cc] sm:$0xf]
        %v859 = vld [vmem:[%s308 + $0x3d0] sm:$0xf]
        %v860 = vld [vmem:[%s308 + $0x3d4] sm:$0xf]
        %v861 = vld [vmem:[%s308 + $0x3d8] sm:$0xf]
        %v862 = vld [vmem:[%s308 + $0x3dc] sm:$0xf]
        %v863 = vld [vmem:[%s308 + $0x3e0] sm:$0xf]
        %v864 = vld [vmem:[%s308 + $0x3e4] sm:$0xf]
        %v865 = vld [vmem:[%s308 + $0x3e8] sm:$0xf]
        %v866 = vld [vmem:[%s308 + $0x3ec] sm:$0xf]
        %v867 = vld [vmem:[%s308 + $0x3f0] sm:$0xf]
        %v868 = vld [vmem:[%s308 + $0x3f4] sm:$0xf]
        %v869 = vld [vmem:[%s308 + $0x3f8] sm:$0xf]
        %v870 = vld [vmem:[%s308 + $0x3fc] sm:$0xf]
        %v871 = vunpack.c.l.bf16 %v615
        %v872 = vunpack.c.l.bf16 %v616
        %v873 = vunpack.c.l.bf16 %v617
        %v874 = vunpack.c.l.bf16 %v618
        %v875 = vunpack.c.l.bf16 %v619
        %v876 = vunpack.c.l.bf16 %v620
        %v877 = vunpack.c.l.bf16 %v621
        %v878 = vunpack.c.l.bf16 %v622
        %v879 = vunpack.c.l.bf16 %v623
        %v880 = vunpack.c.l.bf16 %v624
        %v881 = vunpack.c.l.bf16 %v625
        %v882 = vunpack.c.l.bf16 %v626
        %v883 = vunpack.c.l.bf16 %v627
        %v884 = vunpack.c.l.bf16 %v628
        %v885 = vunpack.c.l.bf16 %v629
        %v886 = vunpack.c.l.bf16 %v630
        %v887 = vunpack.c.l.bf16 %v631
        %v888 = vunpack.c.l.bf16 %v632
        %v889 = vunpack.c.l.bf16 %v633
        %v890 = vunpack.c.l.bf16 %v634
        %v891 = vunpack.c.l.bf16 %v635
        %v892 = vunpack.c.l.bf16 %v636
        %v893 = vunpack.c.l.bf16 %v637
        %v894 = vunpack.c.l.bf16 %v638
        %v895 = vunpack.c.l.bf16 %v639
        %v896 = vunpack.c.l.bf16 %v640
        %v897 = vunpack.c.l.bf16 %v641
        %v898 = vunpack.c.l.bf16 %v642
        %v899 = vunpack.c.l.bf16 %v643
        %v900 = vunpack.c.l.bf16 %v644
        %v901 = vunpack.c.l.bf16 %v645
        %v902 = vunpack.c.l.bf16 %v646
        %v903 = vunpack.c.l.bf16 %v647
        %v904 = vunpack.c.l.bf16 %v648
        %v905 = vunpack.c.l.bf16 %v649
        %v906 = vunpack.c.l.bf16 %v650
        %v907 = vunpack.c.l.bf16 %v651
        %v908 = vunpack.c.l.bf16 %v652
        %v909 = vunpack.c.l.bf16 %v653
        %v910 = vunpack.c.l.bf16 %v654
        %v911 = vunpack.c.l.bf16 %v655
        %v912 = vunpack.c.l.bf16 %v656
        %v913 = vunpack.c.l.bf16 %v657
        %v914 = vunpack.c.l.bf16 %v658
        %v915 = vunpack.c.l.bf16 %v659
        %v916 = vunpack.c.l.bf16 %v660
        %v917 = vunpack.c.l.bf16 %v661
        %v918 = vunpack.c.l.bf16 %v662
        %v919 = vunpack.c.l.bf16 %v663
        %v920 = vunpack.c.l.bf16 %v664
        %v921 = vunpack.c.l.bf16 %v665
        %v922 = vunpack.c.l.bf16 %v666
        %v923 = vunpack.c.l.bf16 %v667
        %v924 = vunpack.c.l.bf16 %v668
        %v925 = vunpack.c.l.bf16 %v669
        %v926 = vunpack.c.l.bf16 %v670
        %v927 = vunpack.c.l.bf16 %v671
        %v928 = vunpack.c.l.bf16 %v672
        %v929 = vunpack.c.l.bf16 %v673
        %v930 = vunpack.c.l.bf16 %v674
        %v931 = vunpack.c.l.bf16 %v675
        %v932 = vunpack.c.l.bf16 %v676
        %v933 = vunpack.c.l.bf16 %v677
        %v934 = vunpack.c.l.bf16 %v678
        %v935 = vunpack.c.l.bf16 %v679
        %v936 = vunpack.c.l.bf16 %v680
        %v937 = vunpack.c.l.bf16 %v681
        %v938 = vunpack.c.l.bf16 %v682
        %v939 = vunpack.c.l.bf16 %v683
        %v940 = vunpack.c.l.bf16 %v684
        %v941 = vunpack.c.l.bf16 %v685
        %v942 = vunpack.c.l.bf16 %v686
        %v943 = vunpack.c.l.bf16 %v687
        %v944 = vunpack.c.l.bf16 %v688
        %v945 = vunpack.c.l.bf16 %v689
        %v946 = vunpack.c.l.bf16 %v690
        %v947 = vunpack.c.l.bf16 %v691
        %v948 = vunpack.c.l.bf16 %v692
        %v949 = vunpack.c.l.bf16 %v693
        %v950 = vunpack.c.l.bf16 %v694
        %v951 = vunpack.c.l.bf16 %v695
        %v952 = vunpack.c.l.bf16 %v696
        %v953 = vunpack.c.l.bf16 %v697
        %v954 = vunpack.c.l.bf16 %v698
        %v955 = vunpack.c.l.bf16 %v699
        %v956 = vunpack.c.l.bf16 %v700
        %v957 = vunpack.c.l.bf16 %v701
        %v958 = vunpack.c.l.bf16 %v702
        %v959 = vunpack.c.l.bf16 %v703
        %v960 = vunpack.c.l.bf16 %v704
        %v961 = vunpack.c.l.bf16 %v705
        %v962 = vunpack.c.l.bf16 %v706
        %v963 = vunpack.c.l.bf16 %v707
        %v964 = vunpack.c.l.bf16 %v708
        %v965 = vunpack.c.l.bf16 %v709
        %v966 = vunpack.c.l.bf16 %v710
        %v967 = vunpack.c.l.bf16 %v711
        %v968 = vunpack.c.l.bf16 %v712
        %v969 = vunpack.c.l.bf16 %v713
        %v970 = vunpack.c.l.bf16 %v714
        %v971 = vunpack.c.l.bf16 %v715
        %v972 = vunpack.c.l.bf16 %v716
        %v973 = vunpack.c.l.bf16 %v717
        %v974 = vunpack.c.l.bf16 %v718
        %v975 = vunpack.c.l.bf16 %v719
        %v976 = vunpack.c.l.bf16 %v720
        %v977 = vunpack.c.l.bf16 %v721
        %v978 = vunpack.c.l.bf16 %v722
        %v979 = vunpack.c.l.bf16 %v723
        %v980 = vunpack.c.l.bf16 %v724
        %v981 = vunpack.c.l.bf16 %v725
        %v982 = vunpack.c.l.bf16 %v726
        %v983 = vunpack.c.l.bf16 %v727
        %v984 = vunpack.c.l.bf16 %v728
        %v985 = vunpack.c.l.bf16 %v729
        %v986 = vunpack.c.l.bf16 %v730
        %v987 = vunpack.c.l.bf16 %v731
        %v988 = vunpack.c.l.bf16 %v732
        %v989 = vunpack.c.l.bf16 %v733
        %v990 = vunpack.c.l.bf16 %v734
        %v991 = vunpack.c.l.bf16 %v735
        %v992 = vunpack.c.l.bf16 %v736
        %v993 = vunpack.c.l.bf16 %v737
        %v994 = vunpack.c.l.bf16 %v738
        %v995 = vunpack.c.l.bf16 %v739
        %v996 = vunpack.c.l.bf16 %v740
        %v997 = vunpack.c.l.bf16 %v741
        %v998 = vunpack.c.l.bf16 %v742
        %v999 = vunpack.c.l.bf16 %v743
        %v1000 = vunpack.c.l.bf16 %v744
        %v1001 = vunpack.c.l.bf16 %v745
        %v1002 = vunpack.c.l.bf16 %v746
        %v1003 = vunpack.c.l.bf16 %v747
        %v1004 = vunpack.c.l.bf16 %v748
        %v1005 = vunpack.c.l.bf16 %v749
        %v1006 = vunpack.c.l.bf16 %v750
        %v1007 = vunpack.c.l.bf16 %v751
        %v1008 = vunpack.c.l.bf16 %v752
        %v1009 = vunpack.c.l.bf16 %v753
        %v1010 = vunpack.c.l.bf16 %v754
        %v1011 = vunpack.c.l.bf16 %v755
        %v1012 = vunpack.c.l.bf16 %v756
        %v1013 = vunpack.c.l.bf16 %v757
        %v1014 = vunpack.c.l.bf16 %v758
        %v1015 = vunpack.c.l.bf16 %v759
        %v1016 = vunpack.c.l.bf16 %v760
        %v1017 = vunpack.c.l.bf16 %v761
        %v1018 = vunpack.c.l.bf16 %v762
        %v1019 = vunpack.c.l.bf16 %v763
        %v1020 = vunpack.c.l.bf16 %v764
        %v1021 = vunpack.c.l.bf16 %v765
        %v1022 = vunpack.c.l.bf16 %v766
        %v1023 = vunpack.c.l.bf16 %v767
        %v1024 = vunpack.c.l.bf16 %v768
        %v1025 = vunpack.c.l.bf16 %v769
        %v1026 = vunpack.c.l.bf16 %v770
        %v1027 = vunpack.c.l.bf16 %v771
        %v1028 = vunpack.c.l.bf16 %v772
        %v1029 = vunpack.c.l.bf16 %v773
        %v1030 = vunpack.c.l.bf16 %v774
        %v1031 = vunpack.c.l.bf16 %v775
        %v1032 = vunpack.c.l.bf16 %v776
        %v1033 = vunpack.c.l.bf16 %v777
        %v1034 = vunpack.c.l.bf16 %v778
        %v1035 = vunpack.c.l.bf16 %v779
        %v1036 = vunpack.c.l.bf16 %v780
        %v1037 = vunpack.c.l.bf16 %v781
        %v1038 = vunpack.c.l.bf16 %v782
        %v1039 = vunpack.c.l.bf16 %v783
        %v1040 = vunpack.c.l.bf16 %v784
        %v1041 = vunpack.c.l.bf16 %v785
        %v1042 = vunpack.c.l.bf16 %v786
        %v1043 = vunpack.c.l.bf16 %v787
        %v1044 = vunpack.c.l.bf16 %v788
        %v1045 = vunpack.c.l.bf16 %v789
        %v1046 = vunpack.c.l.bf16 %v790
        %v1047 = vunpack.c.l.bf16 %v791
        %v1048 = vunpack.c.l.bf16 %v792
        %v1049 = vunpack.c.l.bf16 %v793
        %v1050 = vunpack.c.l.bf16 %v794
        %v1051 = vunpack.c.l.bf16 %v795
        %v1052 = vunpack.c.l.bf16 %v796
        %v1053 = vunpack.c.l.bf16 %v797
        %v1054 = vunpack.c.l.bf16 %v798
        %v1055 = vunpack.c.l.bf16 %v799
        %v1056 = vunpack.c.l.bf16 %v800
        %v1057 = vunpack.c.l.bf16 %v801
        %v1058 = vunpack.c.l.bf16 %v802
        %v1059 = vunpack.c.l.bf16 %v803
        %v1060 = vunpack.c.l.bf16 %v804
        %v1061 = vunpack.c.l.bf16 %v805
        %v1062 = vunpack.c.l.bf16 %v806
        %v1063 = vunpack.c.l.bf16 %v807
        %v1064 = vunpack.c.l.bf16 %v808
        %v1065 = vunpack.c.l.bf16 %v809
        %v1066 = vunpack.c.l.bf16 %v810
        %v1067 = vunpack.c.l.bf16 %v811
        %v1068 = vunpack.c.l.bf16 %v812
        %v1069 = vunpack.c.l.bf16 %v813
        %v1070 = vunpack.c.l.bf16 %v814
        %v1071 = vunpack.c.l.bf16 %v815
        %v1072 = vunpack.c.l.bf16 %v816
        %v1073 = vunpack.c.l.bf16 %v817
        %v1074 = vunpack.c.l.bf16 %v818
        %v1075 = vunpack.c.l.bf16 %v819
        %v1076 = vunpack.c.l.bf16 %v820
        %v1077 = vunpack.c.l.bf16 %v821
        %v1078 = vunpack.c.l.bf16 %v822
        %v1079 = vunpack.c.l.bf16 %v823
        %v1080 = vunpack.c.l.bf16 %v824
        %v1081 = vunpack.c.l.bf16 %v825
        %v1082 = vunpack.c.l.bf16 %v826
        %v1083 = vunpack.c.l.bf16 %v827
        %v1084 = vunpack.c.l.bf16 %v828
        %v1085 = vunpack.c.l.bf16 %v829
        %v1086 = vunpack.c.l.bf16 %v830
        %v1087 = vunpack.c.l.bf16 %v831
        %v1088 = vunpack.c.l.bf16 %v832
        %v1089 = vunpack.c.l.bf16 %v833
        %v1090 = vunpack.c.l.bf16 %v834
        %v1091 = vunpack.c.l.bf16 %v835
        %v1092 = vunpack.c.l.bf16 %v836
        %v1093 = vunpack.c.l.bf16 %v837
        %v1094 = vunpack.c.l.bf16 %v838
        %v1095 = vunpack.c.l.bf16 %v839
        %v1096 = vunpack.c.l.bf16 %v840
        %v1097 = vunpack.c.l.bf16 %v841
        %v1098 = vunpack.c.l.bf16 %v842
        %v1099 = vunpack.c.l.bf16 %v843
        %v1100 = vunpack.c.l.bf16 %v844
        %v1101 = vunpack.c.l.bf16 %v845
        %v1102 = vunpack.c.l.bf16 %v846
        %v1103 = vunpack.c.l.bf16 %v847
        %v1104 = vunpack.c.l.bf16 %v848
        %v1105 = vunpack.c.l.bf16 %v849
        %v1106 = vunpack.c.l.bf16 %v850
        %v1107 = vunpack.c.l.bf16 %v851
        %v1108 = vunpack.c.l.bf16 %v852
        %v1109 = vunpack.c.l.bf16 %v853
        %v1110 = vunpack.c.l.bf16 %v854
        %v1111 = vunpack.c.l.bf16 %v855
        %v1112 = vunpack.c.l.bf16 %v856
        %v1113 = vunpack.c.l.bf16 %v857
        %v1114 = vunpack.c.l.bf16 %v858
        %v1115 = vunpack.c.l.bf16 %v859
        %v1116 = vunpack.c.l.bf16 %v860
        %v1117 = vunpack.c.l.bf16 %v861
        %v1118 = vunpack.c.l.bf16 %v862
        %v1119 = vunpack.c.l.bf16 %v863
        %v1120 = vunpack.c.l.bf16 %v864
        %v1121 = vunpack.c.l.bf16 %v865
        %v1122 = vunpack.c.l.bf16 %v866
        %v1123 = vunpack.c.l.bf16 %v867
        %v1124 = vunpack.c.l.bf16 %v868
        %v1125 = vunpack.c.l.bf16 %v869
        %v1126 = vunpack.c.l.bf16 %v870
        %v1127 = vld [vmem:[#allocation8] sm:$0x1]
        %v1129 = vlaneseq
        %v1130 = vshrl.u32 %v1129, 7
        %v1131 = vsub.s32 0, %v1130
        %v1132 = vrot.slane %v1127, %v1131
        %v1134 = vmul.f32 %v871, %v1132
        %v1135 = vmul.f32 %v872, %v1132
        %v1136 = vmul.f32 %v873, %v1132
        %v1137 = vmul.f32 %v874, %v1132
        %v1138 = vmul.f32 %v875, %v1132
        %v1139 = vmul.f32 %v876, %v1132
        %v1140 = vmul.f32 %v877, %v1132
        %v1141 = vmul.f32 %v878, %v1132
        %v1142 = vmul.f32 %v879, %v1132
        %v1143 = vmul.f32 %v880, %v1132
        %v1144 = vmul.f32 %v881, %v1132
        %v1145 = vmul.f32 %v882, %v1132
        %v1146 = vmul.f32 %v883, %v1132
        %v1147 = vmul.f32 %v884, %v1132
        %v1148 = vmul.f32 %v885, %v1132
        %v1149 = vmul.f32 %v886, %v1132
        %v1150 = vmul.f32 %v887, %v1132
        %v1151 = vmul.f32 %v888, %v1132
        %v1152 = vmul.f32 %v889, %v1132
        %v1153 = vmul.f32 %v890, %v1132
        %v1154 = vmul.f32 %v891, %v1132
        %v1155 = vmul.f32 %v892, %v1132
        %v1156 = vmul.f32 %v893, %v1132
        %v1157 = vmul.f32 %v894, %v1132
        %v1158 = vmul.f32 %v895, %v1132
        %v1159 = vmul.f32 %v896, %v1132
        %v1160 = vmul.f32 %v897, %v1132
        %v1161 = vmul.f32 %v898, %v1132
        %v1162 = vmul.f32 %v899, %v1132
        %v1163 = vmul.f32 %v900, %v1132
        %v1164 = vmul.f32 %v901, %v1132
        %v1165 = vmul.f32 %v902, %v1132
        %v1166 = vmul.f32 %v903, %v1132
        %v1167 = vmul.f32 %v904, %v1132
        %v1168 = vmul.f32 %v905, %v1132
        %v1169 = vmul.f32 %v906, %v1132
        %v1170 = vmul.f32 %v907, %v1132
        %v1171 = vmul.f32 %v908, %v1132
        %v1172 = vmul.f32 %v909, %v1132
        %v1173 = vmul.f32 %v910, %v1132
        %v1174 = vmul.f32 %v911, %v1132
        %v1175 = vmul.f32 %v912, %v1132
        %v1176 = vmul.f32 %v913, %v1132
        %v1177 = vmul.f32 %v914, %v1132
        %v1178 = vmul.f32 %v915, %v1132
        %v1179 = vmul.f32 %v916, %v1132
        %v1180 = vmul.f32 %v917, %v1132
        %v1181 = vmul.f32 %v918, %v1132
        %v1182 = vmul.f32 %v919, %v1132
        %v1183 = vmul.f32 %v920, %v1132
        %v1184 = vmul.f32 %v921, %v1132
        %v1185 = vmul.f32 %v922, %v1132
        %v1186 = vmul.f32 %v923, %v1132
        %v1187 = vmul.f32 %v924, %v1132
        %v1188 = vmul.f32 %v925, %v1132
        %v1189 = vmul.f32 %v926, %v1132
        %v1190 = vmul.f32 %v927, %v1132
        %v1191 = vmul.f32 %v928, %v1132
        %v1192 = vmul.f32 %v929, %v1132
        %v1193 = vmul.f32 %v930, %v1132
        %v1194 = vmul.f32 %v931, %v1132
        %v1195 = vmul.f32 %v932, %v1132
        %v1196 = vmul.f32 %v933, %v1132
        %v1197 = vmul.f32 %v934, %v1132
        %v1198 = vmul.f32 %v935, %v1132
        %v1199 = vmul.f32 %v936, %v1132
        %v1200 = vmul.f32 %v937, %v1132
        %v1201 = vmul.f32 %v938, %v1132
        %v1202 = vmul.f32 %v939, %v1132
        %v1203 = vmul.f32 %v940, %v1132
        %v1204 = vmul.f32 %v941, %v1132
        %v1205 = vmul.f32 %v942, %v1132
        %v1206 = vmul.f32 %v943, %v1132
        %v1207 = vmul.f32 %v944, %v1132
        %v1208 = vmul.f32 %v945, %v1132
        %v1209 = vmul.f32 %v946, %v1132
        %v1210 = vmul.f32 %v947, %v1132
        %v1211 = vmul.f32 %v948, %v1132
        %v1212 = vmul.f32 %v949, %v1132
        %v1213 = vmul.f32 %v950, %v1132
        %v1214 = vmul.f32 %v951, %v1132
        %v1215 = vmul.f32 %v952, %v1132
        %v1216 = vmul.f32 %v953, %v1132
        %v1217 = vmul.f32 %v954, %v1132
        %v1218 = vmul.f32 %v955, %v1132
        %v1219 = vmul.f32 %v956, %v1132
        %v1220 = vmul.f32 %v957, %v1132
        %v1221 = vmul.f32 %v958, %v1132
        %v1222 = vmul.f32 %v959, %v1132
        %v1223 = vmul.f32 %v960, %v1132
        %v1224 = vmul.f32 %v961, %v1132
        %v1225 = vmul.f32 %v962, %v1132
        %v1226 = vmul.f32 %v963, %v1132
        %v1227 = vmul.f32 %v964, %v1132
        %v1228 = vmul.f32 %v965, %v1132
        %v1229 = vmul.f32 %v966, %v1132
        %v1230 = vmul.f32 %v967, %v1132
        %v1231 = vmul.f32 %v968, %v1132
        %v1232 = vmul.f32 %v969, %v1132
        %v1233 = vmul.f32 %v970, %v1132
        %v1234 = vmul.f32 %v971, %v1132
        %v1235 = vmul.f32 %v972, %v1132
        %v1236 = vmul.f32 %v973, %v1132
        %v1237 = vmul.f32 %v974, %v1132
        %v1238 = vmul.f32 %v975, %v1132
        %v1239 = vmul.f32 %v976, %v1132
        %v1240 = vmul.f32 %v977, %v1132
        %v1241 = vmul.f32 %v978, %v1132
        %v1242 = vmul.f32 %v979, %v1132
        %v1243 = vmul.f32 %v980, %v1132
        %v1244 = vmul.f32 %v981, %v1132
        %v1245 = vmul.f32 %v982, %v1132
        %v1246 = vmul.f32 %v983, %v1132
        %v1247 = vmul.f32 %v984, %v1132
        %v1248 = vmul.f32 %v985, %v1132
        %v1249 = vmul.f32 %v986, %v1132
        %v1250 = vmul.f32 %v987, %v1132
        %v1251 = vmul.f32 %v988, %v1132
        %v1252 = vmul.f32 %v989, %v1132
        %v1253 = vmul.f32 %v990, %v1132
        %v1254 = vmul.f32 %v991, %v1132
        %v1255 = vmul.f32 %v992, %v1132
        %v1256 = vmul.f32 %v993, %v1132
        %v1257 = vmul.f32 %v994, %v1132
        %v1258 = vmul.f32 %v995, %v1132
        %v1259 = vmul.f32 %v996, %v1132
        %v1260 = vmul.f32 %v997, %v1132
        %v1261 = vmul.f32 %v998, %v1132
        %v1262 = vmul.f32 %v999, %v1132
        %v1263 = vmul.f32 %v1000, %v1132
        %v1264 = vmul.f32 %v1001, %v1132
        %v1265 = vmul.f32 %v1002, %v1132
        %v1266 = vmul.f32 %v1003, %v1132
        %v1267 = vmul.f32 %v1004, %v1132
        %v1268 = vmul.f32 %v1005, %v1132
        %v1269 = vmul.f32 %v1006, %v1132
        %v1270 = vmul.f32 %v1007, %v1132
        %v1271 = vmul.f32 %v1008, %v1132
        %v1272 = vmul.f32 %v1009, %v1132
        %v1273 = vmul.f32 %v1010, %v1132
        %v1274 = vmul.f32 %v1011, %v1132
        %v1275 = vmul.f32 %v1012, %v1132
        %v1276 = vmul.f32 %v1013, %v1132
        %v1277 = vmul.f32 %v1014, %v1132
        %v1278 = vmul.f32 %v1015, %v1132
        %v1279 = vmul.f32 %v1016, %v1132
        %v1280 = vmul.f32 %v1017, %v1132
        %v1281 = vmul.f32 %v1018, %v1132
        %v1282 = vmul.f32 %v1019, %v1132
        %v1283 = vmul.f32 %v1020, %v1132
        %v1284 = vmul.f32 %v1021, %v1132
        %v1285 = vmul.f32 %v1022, %v1132
        %v1286 = vmul.f32 %v1023, %v1132
        %v1287 = vmul.f32 %v1024, %v1132
        %v1288 = vmul.f32 %v1025, %v1132
        %v1289 = vmul.f32 %v1026, %v1132
        %v1290 = vmul.f32 %v1027, %v1132
        %v1291 = vmul.f32 %v1028, %v1132
        %v1292 = vmul.f32 %v1029, %v1132
        %v1293 = vmul.f32 %v1030, %v1132
        %v1294 = vmul.f32 %v1031, %v1132
        %v1295 = vmul.f32 %v1032, %v1132
        %v1296 = vmul.f32 %v1033, %v1132
        %v1297 = vmul.f32 %v1034, %v1132
        %v1298 = vmul.f32 %v1035, %v1132
        %v1299 = vmul.f32 %v1036, %v1132
        %v1300 = vmul.f32 %v1037, %v1132
        %v1301 = vmul.f32 %v1038, %v1132
        %v1302 = vmul.f32 %v1039, %v1132
        %v1303 = vmul.f32 %v1040, %v1132
        %v1304 = vmul.f32 %v1041, %v1132
        %v1305 = vmul.f32 %v1042, %v1132
        %v1306 = vmul.f32 %v1043, %v1132
        %v1307 = vmul.f32 %v1044, %v1132
        %v1308 = vmul.f32 %v1045, %v1132
        %v1309 = vmul.f32 %v1046, %v1132
        %v1310 = vmul.f32 %v1047, %v1132
        %v1311 = vmul.f32 %v1048, %v1132
        %v1312 = vmul.f32 %v1049, %v1132
        %v1313 = vmul.f32 %v1050, %v1132
        %v1314 = vmul.f32 %v1051, %v1132
        %v1315 = vmul.f32 %v1052, %v1132
        %v1316 = vmul.f32 %v1053, %v1132
        %v1317 = vmul.f32 %v1054, %v1132
        %v1318 = vmul.f32 %v1055, %v1132
        %v1319 = vmul.f32 %v1056, %v1132
        %v1320 = vmul.f32 %v1057, %v1132
        %v1321 = vmul.f32 %v1058, %v1132
        %v1322 = vmul.f32 %v1059, %v1132
        %v1323 = vmul.f32 %v1060, %v1132
        %v1324 = vmul.f32 %v1061, %v1132
        %v1325 = vmul.f32 %v1062, %v1132
        %v1326 = vmul.f32 %v1063, %v1132
        %v1327 = vmul.f32 %v1064, %v1132
        %v1328 = vmul.f32 %v1065, %v1132
        %v1329 = vmul.f32 %v1066, %v1132
        %v1330 = vmul.f32 %v1067, %v1132
        %v1331 = vmul.f32 %v1068, %v1132
        %v1332 = vmul.f32 %v1069, %v1132
        %v1333 = vmul.f32 %v1070, %v1132
        %v1334 = vmul.f32 %v1071, %v1132
        %v1335 = vmul.f32 %v1072, %v1132
        %v1336 = vmul.f32 %v1073, %v1132
        %v1337 = vmul.f32 %v1074, %v1132
        %v1338 = vmul.f32 %v1075, %v1132
        %v1339 = vmul.f32 %v1076, %v1132
        %v1340 = vmul.f32 %v1077, %v1132
        %v1341 = vmul.f32 %v1078, %v1132
        %v1342 = vmul.f32 %v1079, %v1132
        %v1343 = vmul.f32 %v1080, %v1132
        %v1344 = vmul.f32 %v1081, %v1132
        %v1345 = vmul.f32 %v1082, %v1132
        %v1346 = vmul.f32 %v1083, %v1132
        %v1347 = vmul.f32 %v1084, %v1132
        %v1348 = vmul.f32 %v1085, %v1132
        %v1349 = vmul.f32 %v1086, %v1132
        %v1350 = vmul.f32 %v1087, %v1132
        %v1351 = vmul.f32 %v1088, %v1132
        %v1352 = vmul.f32 %v1089, %v1132
        %v1353 = vmul.f32 %v1090, %v1132
        %v1354 = vmul.f32 %v1091, %v1132
        %v1355 = vmul.f32 %v1092, %v1132
        %v1356 = vmul.f32 %v1093, %v1132
        %v1357 = vmul.f32 %v1094, %v1132
        %v1358 = vmul.f32 %v1095, %v1132
        %v1359 = vmul.f32 %v1096, %v1132
        %v1360 = vmul.f32 %v1097, %v1132
        %v1361 = vmul.f32 %v1098, %v1132
        %v1362 = vmul.f32 %v1099, %v1132
        %v1363 = vmul.f32 %v1100, %v1132
        %v1364 = vmul.f32 %v1101, %v1132
        %v1365 = vmul.f32 %v1102, %v1132
        %v1366 = vmul.f32 %v1103, %v1132
        %v1367 = vmul.f32 %v1104, %v1132
        %v1368 = vmul.f32 %v1105, %v1132
        %v1369 = vmul.f32 %v1106, %v1132
        %v1370 = vmul.f32 %v1107, %v1132
        %v1371 = vmul.f32 %v1108, %v1132
        %v1372 = vmul.f32 %v1109, %v1132
        %v1373 = vmul.f32 %v1110, %v1132
        %v1374 = vmul.f32 %v1111, %v1132
        %v1375 = vmul.f32 %v1112, %v1132
        %v1376 = vmul.f32 %v1113, %v1132
        %v1377 = vmul.f32 %v1114, %v1132
        %v1378 = vmul.f32 %v1115, %v1132
        %v1379 = vmul.f32 %v1116, %v1132
        %v1380 = vmul.f32 %v1117, %v1132
        %v1381 = vmul.f32 %v1118, %v1132
        %v1382 = vmul.f32 %v1119, %v1132
        %v1383 = vmul.f32 %v1120, %v1132
        %v1384 = vmul.f32 %v1121, %v1132
        %v1385 = vmul.f32 %v1122, %v1132
        %v1386 = vmul.f32 %v1123, %v1132
        %v1387 = vmul.f32 %v1124, %v1132
        %v1388 = vmul.f32 %v1125, %v1132
        %v1389 = vmul.f32 %v1126, %v1132
        %v1390 = vld [vmem:[#allocation9] sm:$0x1]
        %v1392 = vlaneseq
        %v1393 = vshrl.u32 %v1392, 7
        %v1394 = vsub.s32 0, %v1393
        %v1395 = vrot.slane %v1390, %v1394
        %v1397 = vadd.f32 %v1134, %v1395
        %v1398 = vadd.f32 %v1135, %v1395
        %v1399 = vadd.f32 %v1136, %v1395
        %v1400 = vadd.f32 %v1137, %v1395
        %v1401 = vadd.f32 %v1138, %v1395
        %v1402 = vadd.f32 %v1139, %v1395
        %v1403 = vadd.f32 %v1140, %v1395
        %v1404 = vadd.f32 %v1141, %v1395
        %v1405 = vadd.f32 %v1142, %v1395
        %v1406 = vadd.f32 %v1143, %v1395
        %v1407 = vadd.f32 %v1144, %v1395
        %v1408 = vadd.f32 %v1145, %v1395
        %v1409 = vadd.f32 %v1146, %v1395
        %v1410 = vadd.f32 %v1147, %v1395
        %v1411 = vadd.f32 %v1148, %v1395
        %v1412 = vadd.f32 %v1149, %v1395
        %v1413 = vadd.f32 %v1150, %v1395
        %v1414 = vadd.f32 %v1151, %v1395
        %v1415 = vadd.f32 %v1152, %v1395
        %v1416 = vadd.f32 %v1153, %v1395
        %v1417 = vadd.f32 %v1154, %v1395
        %v1418 = vadd.f32 %v1155, %v1395
        %v1419 = vadd.f32 %v1156, %v1395
        %v1420 = vadd.f32 %v1157, %v1395
        %v1421 = vadd.f32 %v1158, %v1395
        %v1422 = vadd.f32 %v1159, %v1395
        %v1423 = vadd.f32 %v1160, %v1395
        %v1424 = vadd.f32 %v1161, %v1395
        %v1425 = vadd.f32 %v1162, %v1395
        %v1426 = vadd.f32 %v1163, %v1395
        %v1427 = vadd.f32 %v1164, %v1395
        %v1428 = vadd.f32 %v1165, %v1395
        %v1429 = vadd.f32 %v1166, %v1395
        %v1430 = vadd.f32 %v1167, %v1395
        %v1431 = vadd.f32 %v1168, %v1395
        %v1432 = vadd.f32 %v1169, %v1395
        %v1433 = vadd.f32 %v1170, %v1395
        %v1434 = vadd.f32 %v1171, %v1395
        %v1435 = vadd.f32 %v1172, %v1395
        %v1436 = vadd.f32 %v1173, %v1395
        %v1437 = vadd.f32 %v1174, %v1395
        %v1438 = vadd.f32 %v1175, %v1395
        %v1439 = vadd.f32 %v1176, %v1395
        %v1440 = vadd.f32 %v1177, %v1395
        %v1441 = vadd.f32 %v1178, %v1395
        %v1442 = vadd.f32 %v1179, %v1395
        %v1443 = vadd.f32 %v1180, %v1395
        %v1444 = vadd.f32 %v1181, %v1395
        %v1445 = vadd.f32 %v1182, %v1395
        %v1446 = vadd.f32 %v1183, %v1395
        %v1447 = vadd.f32 %v1184, %v1395
        %v1448 = vadd.f32 %v1185, %v1395
        %v1449 = vadd.f32 %v1186, %v1395
        %v1450 = vadd.f32 %v1187, %v1395
        %v1451 = vadd.f32 %v1188, %v1395
        %v1452 = vadd.f32 %v1189, %v1395
        %v1453 = vadd.f32 %v1190, %v1395
        %v1454 = vadd.f32 %v1191, %v1395
        %v1455 = vadd.f32 %v1192, %v1395
        %v1456 = vadd.f32 %v1193, %v1395
        %v1457 = vadd.f32 %v1194, %v1395
        %v1458 = vadd.f32 %v1195, %v1395
        %v1459 = vadd.f32 %v1196, %v1395
        %v1460 = vadd.f32 %v1197, %v1395
        %v1461 = vadd.f32 %v1198, %v1395
        %v1462 = vadd.f32 %v1199, %v1395
        %v1463 = vadd.f32 %v1200, %v1395
        %v1464 = vadd.f32 %v1201, %v1395
        %v1465 = vadd.f32 %v1202, %v1395
        %v1466 = vadd.f32 %v1203, %v1395
        %v1467 = vadd.f32 %v1204, %v1395
        %v1468 = vadd.f32 %v1205, %v1395
        %v1469 = vadd.f32 %v1206, %v1395
        %v1470 = vadd.f32 %v1207, %v1395
        %v1471 = vadd.f32 %v1208, %v1395
        %v1472 = vadd.f32 %v1209, %v1395
        %v1473 = vadd.f32 %v1210, %v1395
        %v1474 = vadd.f32 %v1211, %v1395
        %v1475 = vadd.f32 %v1212, %v1395
        %v1476 = vadd.f32 %v1213, %v1395
        %v1477 = vadd.f32 %v1214, %v1395
        %v1478 = vadd.f32 %v1215, %v1395
        %v1479 = vadd.f32 %v1216, %v1395
        %v1480 = vadd.f32 %v1217, %v1395
        %v1481 = vadd.f32 %v1218, %v1395
        %v1482 = vadd.f32 %v1219, %v1395
        %v1483 = vadd.f32 %v1220, %v1395
        %v1484 = vadd.f32 %v1221, %v1395
        %v1485 = vadd.f32 %v1222, %v1395
        %v1486 = vadd.f32 %v1223, %v1395
        %v1487 = vadd.f32 %v1224, %v1395
        %v1488 = vadd.f32 %v1225, %v1395
        %v1489 = vadd.f32 %v1226, %v1395
        %v1490 = vadd.f32 %v1227, %v1395
        %v1491 = vadd.f32 %v1228, %v1395
        %v1492 = vadd.f32 %v1229, %v1395
        %v1493 = vadd.f32 %v1230, %v1395
        %v1494 = vadd.f32 %v1231, %v1395
        %v1495 = vadd.f32 %v1232, %v1395
        %v1496 = vadd.f32 %v1233, %v1395
        %v1497 = vadd.f32 %v1234, %v1395
        %v1498 = vadd.f32 %v1235, %v1395
        %v1499 = vadd.f32 %v1236, %v1395
        %v1500 = vadd.f32 %v1237, %v1395
        %v1501 = vadd.f32 %v1238, %v1395
        %v1502 = vadd.f32 %v1239, %v1395
        %v1503 = vadd.f32 %v1240, %v1395
        %v1504 = vadd.f32 %v1241, %v1395
        %v1505 = vadd.f32 %v1242, %v1395
        %v1506 = vadd.f32 %v1243, %v1395
        %v1507 = vadd.f32 %v1244, %v1395
        %v1508 = vadd.f32 %v1245, %v1395
        %v1509 = vadd.f32 %v1246, %v1395
        %v1510 = vadd.f32 %v1247, %v1395
        %v1511 = vadd.f32 %v1248, %v1395
        %v1512 = vadd.f32 %v1249, %v1395
        %v1513 = vadd.f32 %v1250, %v1395
        %v1514 = vadd.f32 %v1251, %v1395
        %v1515 = vadd.f32 %v1252, %v1395
        %v1516 = vadd.f32 %v1253, %v1395
        %v1517 = vadd.f32 %v1254, %v1395
        %v1518 = vadd.f32 %v1255, %v1395
        %v1519 = vadd.f32 %v1256, %v1395
        %v1520 = vadd.f32 %v1257, %v1395
        %v1521 = vadd.f32 %v1258, %v1395
        %v1522 = vadd.f32 %v1259, %v1395
        %v1523 = vadd.f32 %v1260, %v1395
        %v1524 = vadd.f32 %v1261, %v1395
        %v1525 = vadd.f32 %v1262, %v1395
        %v1526 = vadd.f32 %v1263, %v1395
        %v1527 = vadd.f32 %v1264, %v1395
        %v1528 = vadd.f32 %v1265, %v1395
        %v1529 = vadd.f32 %v1266, %v1395
        %v1530 = vadd.f32 %v1267, %v1395
        %v1531 = vadd.f32 %v1268, %v1395
        %v1532 = vadd.f32 %v1269, %v1395
        %v1533 = vadd.f32 %v1270, %v1395
        %v1534 = vadd.f32 %v1271, %v1395
        %v1535 = vadd.f32 %v1272, %v1395
        %v1536 = vadd.f32 %v1273, %v1395
        %v1537 = vadd.f32 %v1274, %v1395
        %v1538 = vadd.f32 %v1275, %v1395
        %v1539 = vadd.f32 %v1276, %v1395
        %v1540 = vadd.f32 %v1277, %v1395
        %v1541 = vadd.f32 %v1278, %v1395
        %v1542 = vadd.f32 %v1279, %v1395
        %v1543 = vadd.f32 %v1280, %v1395
        %v1544 = vadd.f32 %v1281, %v1395
        %v1545 = vadd.f32 %v1282, %v1395
        %v1546 = vadd.f32 %v1283, %v1395
        %v1547 = vadd.f32 %v1284, %v1395
        %v1548 = vadd.f32 %v1285, %v1395
        %v1549 = vadd.f32 %v1286, %v1395
        %v1550 = vadd.f32 %v1287, %v1395
        %v1551 = vadd.f32 %v1288, %v1395
        %v1552 = vadd.f32 %v1289, %v1395
        %v1553 = vadd.f32 %v1290, %v1395
        %v1554 = vadd.f32 %v1291, %v1395
        %v1555 = vadd.f32 %v1292, %v1395
        %v1556 = vadd.f32 %v1293, %v1395
        %v1557 = vadd.f32 %v1294, %v1395
        %v1558 = vadd.f32 %v1295, %v1395
        %v1559 = vadd.f32 %v1296, %v1395
        %v1560 = vadd.f32 %v1297, %v1395
        %v1561 = vadd.f32 %v1298, %v1395
        %v1562 = vadd.f32 %v1299, %v1395
        %v1563 = vadd.f32 %v1300, %v1395
        %v1564 = vadd.f32 %v1301, %v1395
        %v1565 = vadd.f32 %v1302, %v1395
        %v1566 = vadd.f32 %v1303, %v1395
        %v1567 = vadd.f32 %v1304, %v1395
        %v1568 = vadd.f32 %v1305, %v1395
        %v1569 = vadd.f32 %v1306, %v1395
        %v1570 = vadd.f32 %v1307, %v1395
        %v1571 = vadd.f32 %v1308, %v1395
        %v1572 = vadd.f32 %v1309, %v1395
        %v1573 = vadd.f32 %v1310, %v1395
        %v1574 = vadd.f32 %v1311, %v1395
        %v1575 = vadd.f32 %v1312, %v1395
        %v1576 = vadd.f32 %v1313, %v1395
        %v1577 = vadd.f32 %v1314, %v1395
        %v1578 = vadd.f32 %v1315, %v1395
        %v1579 = vadd.f32 %v1316, %v1395
        %v1580 = vadd.f32 %v1317, %v1395
        %v1581 = vadd.f32 %v1318, %v1395
        %v1582 = vadd.f32 %v1319, %v1395
        %v1583 = vadd.f32 %v1320, %v1395
        %v1584 = vadd.f32 %v1321, %v1395
        %v1585 = vadd.f32 %v1322, %v1395
        %v1586 = vadd.f32 %v1323, %v1395
        %v1587 = vadd.f32 %v1324, %v1395
        %v1588 = vadd.f32 %v1325, %v1395
        %v1589 = vadd.f32 %v1326, %v1395
        %v1590 = vadd.f32 %v1327, %v1395
        %v1591 = vadd.f32 %v1328, %v1395
        %v1592 = vadd.f32 %v1329, %v1395
        %v1593 = vadd.f32 %v1330, %v1395
        %v1594 = vadd.f32 %v1331, %v1395
        %v1595 = vadd.f32 %v1332, %v1395
        %v1596 = vadd.f32 %v1333, %v1395
        %v1597 = vadd.f32 %v1334, %v1395
        %v1598 = vadd.f32 %v1335, %v1395
        %v1599 = vadd.f32 %v1336, %v1395
        %v1600 = vadd.f32 %v1337, %v1395
        %v1601 = vadd.f32 %v1338, %v1395
        %v1602 = vadd.f32 %v1339, %v1395
        %v1603 = vadd.f32 %v1340, %v1395
        %v1604 = vadd.f32 %v1341, %v1395
        %v1605 = vadd.f32 %v1342, %v1395
        %v1606 = vadd.f32 %v1343, %v1395
        %v1607 = vadd.f32 %v1344, %v1395
        %v1608 = vadd.f32 %v1345, %v1395
        %v1609 = vadd.f32 %v1346, %v1395
        %v1610 = vadd.f32 %v1347, %v1395
        %v1611 = vadd.f32 %v1348, %v1395
        %v1612 = vadd.f32 %v1349, %v1395
        %v1613 = vadd.f32 %v1350, %v1395
        %v1614 = vadd.f32 %v1351, %v1395
        %v1615 = vadd.f32 %v1352, %v1395
        %v1616 = vadd.f32 %v1353, %v1395
        %v1617 = vadd.f32 %v1354, %v1395
        %v1618 = vadd.f32 %v1355, %v1395
        %v1619 = vadd.f32 %v1356, %v1395
        %v1620 = vadd.f32 %v1357, %v1395
        %v1621 = vadd.f32 %v1358, %v1395
        %v1622 = vadd.f32 %v1359, %v1395
        %v1623 = vadd.f32 %v1360, %v1395
        %v1624 = vadd.f32 %v1361, %v1395
        %v1625 = vadd.f32 %v1362, %v1395
        %v1626 = vadd.f32 %v1363, %v1395
        %v1627 = vadd.f32 %v1364, %v1395
        %v1628 = vadd.f32 %v1365, %v1395
        %v1629 = vadd.f32 %v1366, %v1395
        %v1630 = vadd.f32 %v1367, %v1395
        %v1631 = vadd.f32 %v1368, %v1395
        %v1632 = vadd.f32 %v1369, %v1395
        %v1633 = vadd.f32 %v1370, %v1395
        %v1634 = vadd.f32 %v1371, %v1395
        %v1635 = vadd.f32 %v1372, %v1395
        %v1636 = vadd.f32 %v1373, %v1395
        %v1637 = vadd.f32 %v1374, %v1395
        %v1638 = vadd.f32 %v1375, %v1395
        %v1639 = vadd.f32 %v1376, %v1395
        %v1640 = vadd.f32 %v1377, %v1395
        %v1641 = vadd.f32 %v1378, %v1395
        %v1642 = vadd.f32 %v1379, %v1395
        %v1643 = vadd.f32 %v1380, %v1395
        %v1644 = vadd.f32 %v1381, %v1395
        %v1645 = vadd.f32 %v1382, %v1395
        %v1646 = vadd.f32 %v1383, %v1395
        %v1647 = vadd.f32 %v1384, %v1395
        %v1648 = vadd.f32 %v1385, %v1395
        %v1649 = vadd.f32 %v1386, %v1395
        %v1650 = vadd.f32 %v1387, %v1395
        %v1651 = vadd.f32 %v1388, %v1395
        %v1652 = vadd.f32 %v1389, %v1395
        %vm1653 = vcmp.gt.f32.partialorder %v1397, 0.0
        %vm1654 = vcmp.gt.f32.partialorder %v1398, 0.0
        %vm1655 = vcmp.gt.f32.partialorder %v1399, 0.0
        %vm1656 = vcmp.gt.f32.partialorder %v1400, 0.0
        %vm1657 = vcmp.gt.f32.partialorder %v1401, 0.0
        %vm1658 = vcmp.gt.f32.partialorder %v1402, 0.0
        %vm1659 = vcmp.gt.f32.partialorder %v1403, 0.0
        %vm1660 = vcmp.gt.f32.partialorder %v1404, 0.0
        %vm1661 = vcmp.gt.f32.partialorder %v1405, 0.0
        %vm1662 = vcmp.gt.f32.partialorder %v1406, 0.0
        %vm1663 = vcmp.gt.f32.partialorder %v1407, 0.0
        %vm1664 = vcmp.gt.f32.partialorder %v1408, 0.0
        %vm1665 = vcmp.gt.f32.partialorder %v1409, 0.0
        %vm1666 = vcmp.gt.f32.partialorder %v1410, 0.0
        %vm1667 = vcmp.gt.f32.partialorder %v1411, 0.0
        %vm1668 = vcmp.gt.f32.partialorder %v1412, 0.0
        %vm1669 = vcmp.gt.f32.partialorder %v1413, 0.0
        %vm1670 = vcmp.gt.f32.partialorder %v1414, 0.0
        %vm1671 = vcmp.gt.f32.partialorder %v1415, 0.0
        %vm1672 = vcmp.gt.f32.partialorder %v1416, 0.0
        %vm1673 = vcmp.gt.f32.partialorder %v1417, 0.0
        %vm1674 = vcmp.gt.f32.partialorder %v1418, 0.0
        %vm1675 = vcmp.gt.f32.partialorder %v1419, 0.0
        %vm1676 = vcmp.gt.f32.partialorder %v1420, 0.0
        %vm1677 = vcmp.gt.f32.partialorder %v1421, 0.0
        %vm1678 = vcmp.gt.f32.partialorder %v1422, 0.0
        %vm1679 = vcmp.gt.f32.partialorder %v1423, 0.0
        %vm1680 = vcmp.gt.f32.partialorder %v1424, 0.0
        %vm1681 = vcmp.gt.f32.partialorder %v1425, 0.0
        %vm1682 = vcmp.gt.f32.partialorder %v1426, 0.0
        %vm1683 = vcmp.gt.f32.partialorder %v1427, 0.0
        %vm1684 = vcmp.gt.f32.partialorder %v1428, 0.0
        %vm1685 = vcmp.gt.f32.partialorder %v1429, 0.0
        %vm1686 = vcmp.gt.f32.partialorder %v1430, 0.0
        %vm1687 = vcmp.gt.f32.partialorder %v1431, 0.0
        %vm1688 = vcmp.gt.f32.partialorder %v1432, 0.0
        %vm1689 = vcmp.gt.f32.partialorder %v1433, 0.0
        %vm1690 = vcmp.gt.f32.partialorder %v1434, 0.0
        %vm1691 = vcmp.gt.f32.partialorder %v1435, 0.0
        %vm1692 = vcmp.gt.f32.partialorder %v1436, 0.0
        %vm1693 = vcmp.gt.f32.partialorder %v1437, 0.0
        %vm1694 = vcmp.gt.f32.partialorder %v1438, 0.0
        %vm1695 = vcmp.gt.f32.partialorder %v1439, 0.0
        %vm1696 = vcmp.gt.f32.partialorder %v1440, 0.0
        %vm1697 = vcmp.gt.f32.partialorder %v1441, 0.0
        %vm1698 = vcmp.gt.f32.partialorder %v1442, 0.0
        %vm1699 = vcmp.gt.f32.partialorder %v1443, 0.0
        %vm1700 = vcmp.gt.f32.partialorder %v1444, 0.0
        %vm1701 = vcmp.gt.f32.partialorder %v1445, 0.0
        %vm1702 = vcmp.gt.f32.partialorder %v1446, 0.0
        %vm1703 = vcmp.gt.f32.partialorder %v1447, 0.0
        %vm1704 = vcmp.gt.f32.partialorder %v1448, 0.0
        %vm1705 = vcmp.gt.f32.partialorder %v1449, 0.0
        %vm1706 = vcmp.gt.f32.partialorder %v1450, 0.0
        %vm1707 = vcmp.gt.f32.partialorder %v1451, 0.0
        %vm1708 = vcmp.gt.f32.partialorder %v1452, 0.0
        %vm1709 = vcmp.gt.f32.partialorder %v1453, 0.0
        %vm1710 = vcmp.gt.f32.partialorder %v1454, 0.0
        %vm1711 = vcmp.gt.f32.partialorder %v1455, 0.0
        %vm1712 = vcmp.gt.f32.partialorder %v1456, 0.0
        %vm1713 = vcmp.gt.f32.partialorder %v1457, 0.0
        %vm1714 = vcmp.gt.f32.partialorder %v1458, 0.0
        %vm1715 = vcmp.gt.f32.partialorder %v1459, 0.0
        %vm1716 = vcmp.gt.f32.partialorder %v1460, 0.0
        %vm1717 = vcmp.gt.f32.partialorder %v1461, 0.0
        %vm1718 = vcmp.gt.f32.partialorder %v1462, 0.0
        %vm1719 = vcmp.gt.f32.partialorder %v1463, 0.0
        %vm1720 = vcmp.gt.f32.partialorder %v1464, 0.0
        %vm1721 = vcmp.gt.f32.partialorder %v1465, 0.0
        %vm1722 = vcmp.gt.f32.partialorder %v1466, 0.0
        %vm1723 = vcmp.gt.f32.partialorder %v1467, 0.0
        %vm1724 = vcmp.gt.f32.partialorder %v1468, 0.0
        %vm1725 = vcmp.gt.f32.partialorder %v1469, 0.0
        %vm1726 = vcmp.gt.f32.partialorder %v1470, 0.0
        %vm1727 = vcmp.gt.f32.partialorder %v1471, 0.0
        %vm1728 = vcmp.gt.f32.partialorder %v1472, 0.0
        %vm1729 = vcmp.gt.f32.partialorder %v1473, 0.0
        %vm1730 = vcmp.gt.f32.partialorder %v1474, 0.0
        %vm1731 = vcmp.gt.f32.partialorder %v1475, 0.0
        %vm1732 = vcmp.gt.f32.partialorder %v1476, 0.0
        %vm1733 = vcmp.gt.f32.partialorder %v1477, 0.0
        %vm1734 = vcmp.gt.f32.partialorder %v1478, 0.0
        %vm1735 = vcmp.gt.f32.partialorder %v1479, 0.0
        %vm1736 = vcmp.gt.f32.partialorder %v1480, 0.0
        %vm1737 = vcmp.gt.f32.partialorder %v1481, 0.0
        %vm1738 = vcmp.gt.f32.partialorder %v1482, 0.0
        %vm1739 = vcmp.gt.f32.partialorder %v1483, 0.0
        %vm1740 = vcmp.gt.f32.partialorder %v1484, 0.0
        %vm1741 = vcmp.gt.f32.partialorder %v1485, 0.0
        %vm1742 = vcmp.gt.f32.partialorder %v1486, 0.0
        %vm1743 = vcmp.gt.f32.partialorder %v1487, 0.0
        %vm1744 = vcmp.gt.f32.partialorder %v1488, 0.0
        %vm1745 = vcmp.gt.f32.partialorder %v1489, 0.0
        %vm1746 = vcmp.gt.f32.partialorder %v1490, 0.0
        %vm1747 = vcmp.gt.f32.partialorder %v1491, 0.0
        %vm1748 = vcmp.gt.f32.partialorder %v1492, 0.0
        %vm1749 = vcmp.gt.f32.partialorder %v1493, 0.0
        %vm1750 = vcmp.gt.f32.partialorder %v1494, 0.0
        %vm1751 = vcmp.gt.f32.partialorder %v1495, 0.0
        %vm1752 = vcmp.gt.f32.partialorder %v1496, 0.0
        %vm1753 = vcmp.gt.f32.partialorder %v1497, 0.0
        %vm1754 = vcmp.gt.f32.partialorder %v1498, 0.0
        %vm1755 = vcmp.gt.f32.partialorder %v1499, 0.0
        %vm1756 = vcmp.gt.f32.partialorder %v1500, 0.0
        %vm1757 = vcmp.gt.f32.partialorder %v1501, 0.0
        %vm1758 = vcmp.gt.f32.partialorder %v1502, 0.0
        %vm1759 = vcmp.gt.f32.partialorder %v1503, 0.0
        %vm1760 = vcmp.gt.f32.partialorder %v1504, 0.0
        %vm1761 = vcmp.gt.f32.partialorder %v1505, 0.0
        %vm1762 = vcmp.gt.f32.partialorder %v1506, 0.0
        %vm1763 = vcmp.gt.f32.partialorder %v1507, 0.0
        %vm1764 = vcmp.gt.f32.partialorder %v1508, 0.0
        %vm1765 = vcmp.gt.f32.partialorder %v1509, 0.0
        %vm1766 = vcmp.gt.f32.partialorder %v1510, 0.0
        %vm1767 = vcmp.gt.f32.partialorder %v1511, 0.0
        %vm1768 = vcmp.gt.f32.partialorder %v1512, 0.0
        %vm1769 = vcmp.gt.f32.partialorder %v1513, 0.0
        %vm1770 = vcmp.gt.f32.partialorder %v1514, 0.0
        %vm1771 = vcmp.gt.f32.partialorder %v1515, 0.0
        %vm1772 = vcmp.gt.f32.partialorder %v1516, 0.0
        %vm1773 = vcmp.gt.f32.partialorder %v1517, 0.0
        %vm1774 = vcmp.gt.f32.partialorder %v1518, 0.0
        %vm1775 = vcmp.gt.f32.partialorder %v1519, 0.0
        %vm1776 = vcmp.gt.f32.partialorder %v1520, 0.0
        %vm1777 = vcmp.gt.f32.partialorder %v1521, 0.0
        %vm1778 = vcmp.gt.f32.partialorder %v1522, 0.0
        %vm1779 = vcmp.gt.f32.partialorder %v1523, 0.0
        %vm1780 = vcmp.gt.f32.partialorder %v1524, 0.0
        %vm1781 = vcmp.gt.f32.partialorder %v1525, 0.0
        %vm1782 = vcmp.gt.f32.partialorder %v1526, 0.0
        %vm1783 = vcmp.gt.f32.partialorder %v1527, 0.0
        %vm1784 = vcmp.gt.f32.partialorder %v1528, 0.0
        %vm1785 = vcmp.gt.f32.partialorder %v1529, 0.0
        %vm1786 = vcmp.gt.f32.partialorder %v1530, 0.0
        %vm1787 = vcmp.gt.f32.partialorder %v1531, 0.0
        %vm1788 = vcmp.gt.f32.partialorder %v1532, 0.0
        %vm1789 = vcmp.gt.f32.partialorder %v1533, 0.0
        %vm1790 = vcmp.gt.f32.partialorder %v1534, 0.0
        %vm1791 = vcmp.gt.f32.partialorder %v1535, 0.0
        %vm1792 = vcmp.gt.f32.partialorder %v1536, 0.0
        %vm1793 = vcmp.gt.f32.partialorder %v1537, 0.0
        %vm1794 = vcmp.gt.f32.partialorder %v1538, 0.0
        %vm1795 = vcmp.gt.f32.partialorder %v1539, 0.0
        %vm1796 = vcmp.gt.f32.partialorder %v1540, 0.0
        %vm1797 = vcmp.gt.f32.partialorder %v1541, 0.0
        %vm1798 = vcmp.gt.f32.partialorder %v1542, 0.0
        %vm1799 = vcmp.gt.f32.partialorder %v1543, 0.0
        %vm1800 = vcmp.gt.f32.partialorder %v1544, 0.0
        %vm1801 = vcmp.gt.f32.partialorder %v1545, 0.0
        %vm1802 = vcmp.gt.f32.partialorder %v1546, 0.0
        %vm1803 = vcmp.gt.f32.partialorder %v1547, 0.0
        %vm1804 = vcmp.gt.f32.partialorder %v1548, 0.0
        %vm1805 = vcmp.gt.f32.partialorder %v1549, 0.0
        %vm1806 = vcmp.gt.f32.partialorder %v1550, 0.0
        %vm1807 = vcmp.gt.f32.partialorder %v1551, 0.0
        %vm1808 = vcmp.gt.f32.partialorder %v1552, 0.0
        %vm1809 = vcmp.gt.f32.partialorder %v1553, 0.0
        %vm1810 = vcmp.gt.f32.partialorder %v1554, 0.0
        %vm1811 = vcmp.gt.f32.partialorder %v1555, 0.0
        %vm1812 = vcmp.gt.f32.partialorder %v1556, 0.0
        %vm1813 = vcmp.gt.f32.partialorder %v1557, 0.0
        %vm1814 = vcmp.gt.f32.partialorder %v1558, 0.0
        %vm1815 = vcmp.gt.f32.partialorder %v1559, 0.0
        %vm1816 = vcmp.gt.f32.partialorder %v1560, 0.0
        %vm1817 = vcmp.gt.f32.partialorder %v1561, 0.0
        %vm1818 = vcmp.gt.f32.partialorder %v1562, 0.0
        %vm1819 = vcmp.gt.f32.partialorder %v1563, 0.0
        %vm1820 = vcmp.gt.f32.partialorder %v1564, 0.0
        %vm1821 = vcmp.gt.f32.partialorder %v1565, 0.0
        %vm1822 = vcmp.gt.f32.partialorder %v1566, 0.0
        %vm1823 = vcmp.gt.f32.partialorder %v1567, 0.0
        %vm1824 = vcmp.gt.f32.partialorder %v1568, 0.0
        %vm1825 = vcmp.gt.f32.partialorder %v1569, 0.0
        %vm1826 = vcmp.gt.f32.partialorder %v1570, 0.0
        %vm1827 = vcmp.gt.f32.partialorder %v1571, 0.0
        %vm1828 = vcmp.gt.f32.partialorder %v1572, 0.0
        %vm1829 = vcmp.gt.f32.partialorder %v1573, 0.0
        %vm1830 = vcmp.gt.f32.partialorder %v1574, 0.0
        %vm1831 = vcmp.gt.f32.partialorder %v1575, 0.0
        %vm1832 = vcmp.gt.f32.partialorder %v1576, 0.0
        %vm1833 = vcmp.gt.f32.partialorder %v1577, 0.0
        %vm1834 = vcmp.gt.f32.partialorder %v1578, 0.0
        %vm1835 = vcmp.gt.f32.partialorder %v1579, 0.0
        %vm1836 = vcmp.gt.f32.partialorder %v1580, 0.0
        %vm1837 = vcmp.gt.f32.partialorder %v1581, 0.0
        %vm1838 = vcmp.gt.f32.partialorder %v1582, 0.0
        %vm1839 = vcmp.gt.f32.partialorder %v1583, 0.0
        %vm1840 = vcmp.gt.f32.partialorder %v1584, 0.0
        %vm1841 = vcmp.gt.f32.partialorder %v1585, 0.0
        %vm1842 = vcmp.gt.f32.partialorder %v1586, 0.0
        %vm1843 = vcmp.gt.f32.partialorder %v1587, 0.0
        %vm1844 = vcmp.gt.f32.partialorder %v1588, 0.0
        %vm1845 = vcmp.gt.f32.partialorder %v1589, 0.0
        %vm1846 = vcmp.gt.f32.partialorder %v1590, 0.0
        %vm1847 = vcmp.gt.f32.partialorder %v1591, 0.0
        %vm1848 = vcmp.gt.f32.partialorder %v1592, 0.0
        %vm1849 = vcmp.gt.f32.partialorder %v1593, 0.0
        %vm1850 = vcmp.gt.f32.partialorder %v1594, 0.0
        %vm1851 = vcmp.gt.f32.partialorder %v1595, 0.0
        %vm1852 = vcmp.gt.f32.partialorder %v1596, 0.0
        %vm1853 = vcmp.gt.f32.partialorder %v1597, 0.0
        %vm1854 = vcmp.gt.f32.partialorder %v1598, 0.0
        %vm1855 = vcmp.gt.f32.partialorder %v1599, 0.0
        %vm1856 = vcmp.gt.f32.partialorder %v1600, 0.0
        %vm1857 = vcmp.gt.f32.partialorder %v1601, 0.0
        %vm1858 = vcmp.gt.f32.partialorder %v1602, 0.0
        %vm1859 = vcmp.gt.f32.partialorder %v1603, 0.0
        %vm1860 = vcmp.gt.f32.partialorder %v1604, 0.0
        %vm1861 = vcmp.gt.f32.partialorder %v1605, 0.0
        %vm1862 = vcmp.gt.f32.partialorder %v1606, 0.0
        %vm1863 = vcmp.gt.f32.partialorder %v1607, 0.0
        %vm1864 = vcmp.gt.f32.partialorder %v1608, 0.0
        %vm1865 = vcmp.gt.f32.partialorder %v1609, 0.0
        %vm1866 = vcmp.gt.f32.partialorder %v1610, 0.0
        %vm1867 = vcmp.gt.f32.partialorder %v1611, 0.0
        %vm1868 = vcmp.gt.f32.partialorder %v1612, 0.0
        %vm1869 = vcmp.gt.f32.partialorder %v1613, 0.0
        %vm1870 = vcmp.gt.f32.partialorder %v1614, 0.0
        %vm1871 = vcmp.gt.f32.partialorder %v1615, 0.0
        %vm1872 = vcmp.gt.f32.partialorder %v1616, 0.0
        %vm1873 = vcmp.gt.f32.partialorder %v1617, 0.0
        %vm1874 = vcmp.gt.f32.partialorder %v1618, 0.0
        %vm1875 = vcmp.gt.f32.partialorder %v1619, 0.0
        %vm1876 = vcmp.gt.f32.partialorder %v1620, 0.0
        %vm1877 = vcmp.gt.f32.partialorder %v1621, 0.0
        %vm1878 = vcmp.gt.f32.partialorder %v1622, 0.0
        %vm1879 = vcmp.gt.f32.partialorder %v1623, 0.0
        %vm1880 = vcmp.gt.f32.partialorder %v1624, 0.0
        %vm1881 = vcmp.gt.f32.partialorder %v1625, 0.0
        %vm1882 = vcmp.gt.f32.partialorder %v1626, 0.0
        %vm1883 = vcmp.gt.f32.partialorder %v1627, 0.0
        %vm1884 = vcmp.gt.f32.partialorder %v1628, 0.0
        %vm1885 = vcmp.gt.f32.partialorder %v1629, 0.0
        %vm1886 = vcmp.gt.f32.partialorder %v1630, 0.0
        %vm1887 = vcmp.gt.f32.partialorder %v1631, 0.0
        %vm1888 = vcmp.gt.f32.partialorder %v1632, 0.0
        %vm1889 = vcmp.gt.f32.partialorder %v1633, 0.0
        %vm1890 = vcmp.gt.f32.partialorder %v1634, 0.0
        %vm1891 = vcmp.gt.f32.partialorder %v1635, 0.0
        %vm1892 = vcmp.gt.f32.partialorder %v1636, 0.0
        %vm1893 = vcmp.gt.f32.partialorder %v1637, 0.0
        %vm1894 = vcmp.gt.f32.partialorder %v1638, 0.0
        %vm1895 = vcmp.gt.f32.partialorder %v1639, 0.0
        %vm1896 = vcmp.gt.f32.partialorder %v1640, 0.0
        %vm1897 = vcmp.gt.f32.partialorder %v1641, 0.0
        %vm1898 = vcmp.gt.f32.partialorder %v1642, 0.0
        %vm1899 = vcmp.gt.f32.partialorder %v1643, 0.0
        %vm1900 = vcmp.gt.f32.partialorder %v1644, 0.0
        %vm1901 = vcmp.gt.f32.partialorder %v1645, 0.0
        %vm1902 = vcmp.gt.f32.partialorder %v1646, 0.0
        %vm1903 = vcmp.gt.f32.partialorder %v1647, 0.0
        %vm1904 = vcmp.gt.f32.partialorder %v1648, 0.0
        %vm1905 = vcmp.gt.f32.partialorder %v1649, 0.0
        %vm1906 = vcmp.gt.f32.partialorder %v1650, 0.0
        %vm1907 = vcmp.gt.f32.partialorder %v1651, 0.0
        %vm1908 = vcmp.gt.f32.partialorder %v1652, 0.0
        %v1909 = vld [vmem:[#allocation11] sm:$0x1]
        %v1911 = vlaneseq
        %v1912 = vshrl.u32 %v1911, 7
        %v1913 = vsub.s32 0, %v1912
        %v1914 = vrot.slane %v1909, %v1913
        %v1916 = vmul.f32 %v1914, %v1397
        %v1917 = vmul.f32 %v1914, %v1398
        %v1918 = vmul.f32 %v1914, %v1399
        %v1919 = vmul.f32 %v1914, %v1400
        %v1920 = vmul.f32 %v1914, %v1401
        %v1921 = vmul.f32 %v1914, %v1402
        %v1922 = vmul.f32 %v1914, %v1403
        %v1923 = vmul.f32 %v1914, %v1404
        %v1924 = vmul.f32 %v1914, %v1405
        %v1925 = vmul.f32 %v1914, %v1406
        %v1926 = vmul.f32 %v1914, %v1407
        %v1927 = vmul.f32 %v1914, %v1408
        %v1928 = vmul.f32 %v1914, %v1409
        %v1929 = vmul.f32 %v1914, %v1410
        %v1930 = vmul.f32 %v1914, %v1411
        %v1931 = vmul.f32 %v1914, %v1412
        %v1932 = vmul.f32 %v1914, %v1413
        %v1933 = vmul.f32 %v1914, %v1414
        %v1934 = vmul.f32 %v1914, %v1415
        %v1935 = vmul.f32 %v1914, %v1416
        %v1936 = vmul.f32 %v1914, %v1417
        %v1937 = vmul.f32 %v1914, %v1418
        %v1938 = vmul.f32 %v1914, %v1419
        %v1939 = vmul.f32 %v1914, %v1420
        %v1940 = vmul.f32 %v1914, %v1421
        %v1941 = vmul.f32 %v1914, %v1422
        %v1942 = vmul.f32 %v1914, %v1423
        %v1943 = vmul.f32 %v1914, %v1424
        %v1944 = vmul.f32 %v1914, %v1425
        %v1945 = vmul.f32 %v1914, %v1426
        %v1946 = vmul.f32 %v1914, %v1427
        %v1947 = vmul.f32 %v1914, %v1428
        %v1948 = vmul.f32 %v1914, %v1429
        %v1949 = vmul.f32 %v1914, %v1430
        %v1950 = vmul.f32 %v1914, %v1431
        %v1951 = vmul.f32 %v1914, %v1432
        %v1952 = vmul.f32 %v1914, %v1433
        %v1953 = vmul.f32 %v1914, %v1434
        %v1954 = vmul.f32 %v1914, %v1435
        %v1955 = vmul.f32 %v1914, %v1436
        %v1956 = vmul.f32 %v1914, %v1437
        %v1957 = vmul.f32 %v1914, %v1438
        %v1958 = vmul.f32 %v1914, %v1439
        %v1959 = vmul.f32 %v1914, %v1440
        %v1960 = vmul.f32 %v1914, %v1441
        %v1961 = vmul.f32 %v1914, %v1442
        %v1962 = vmul.f32 %v1914, %v1443
        %v1963 = vmul.f32 %v1914, %v1444
        %v1964 = vmul.f32 %v1914, %v1445
        %v1965 = vmul.f32 %v1914, %v1446
        %v1966 = vmul.f32 %v1914, %v1447
        %v1967 = vmul.f32 %v1914, %v1448
        %v1968 = vmul.f32 %v1914, %v1449
        %v1969 = vmul.f32 %v1914, %v1450
        %v1970 = vmul.f32 %v1914, %v1451
        %v1971 = vmul.f32 %v1914, %v1452
        %v1972 = vmul.f32 %v1914, %v1453
        %v1973 = vmul.f32 %v1914, %v1454
        %v1974 = vmul.f32 %v1914, %v1455
        %v1975 = vmul.f32 %v1914, %v1456
        %v1976 = vmul.f32 %v1914, %v1457
        %v1977 = vmul.f32 %v1914, %v1458
        %v1978 = vmul.f32 %v1914, %v1459
        %v1979 = vmul.f32 %v1914, %v1460
        %v1980 = vmul.f32 %v1914, %v1461
        %v1981 = vmul.f32 %v1914, %v1462
        %v1982 = vmul.f32 %v1914, %v1463
        %v1983 = vmul.f32 %v1914, %v1464
        %v1984 = vmul.f32 %v1914, %v1465
        %v1985 = vmul.f32 %v1914, %v1466
        %v1986 = vmul.f32 %v1914, %v1467
        %v1987 = vmul.f32 %v1914, %v1468
        %v1988 = vmul.f32 %v1914, %v1469
        %v1989 = vmul.f32 %v1914, %v1470
        %v1990 = vmul.f32 %v1914, %v1471
        %v1991 = vmul.f32 %v1914, %v1472
        %v1992 = vmul.f32 %v1914, %v1473
        %v1993 = vmul.f32 %v1914, %v1474
        %v1994 = vmul.f32 %v1914, %v1475
        %v1995 = vmul.f32 %v1914, %v1476
        %v1996 = vmul.f32 %v1914, %v1477
        %v1997 = vmul.f32 %v1914, %v1478
        %v1998 = vmul.f32 %v1914, %v1479
        %v1999 = vmul.f32 %v1914, %v1480
        %v2000 = vmul.f32 %v1914, %v1481
        %v2001 = vmul.f32 %v1914, %v1482
        %v2002 = vmul.f32 %v1914, %v1483
        %v2003 = vmul.f32 %v1914, %v1484
        %v2004 = vmul.f32 %v1914, %v1485
        %v2005 = vmul.f32 %v1914, %v1486
        %v2006 = vmul.f32 %v1914, %v1487
        %v2007 = vmul.f32 %v1914, %v1488
        %v2008 = vmul.f32 %v1914, %v1489
        %v2009 = vmul.f32 %v1914, %v1490
        %v2010 = vmul.f32 %v1914, %v1491
        %v2011 = vmul.f32 %v1914, %v1492
        %v2012 = vmul.f32 %v1914, %v1493
        %v2013 = vmul.f32 %v1914, %v1494
        %v2014 = vmul.f32 %v1914, %v1495
        %v2015 = vmul.f32 %v1914, %v1496
        %v2016 = vmul.f32 %v1914, %v1497
        %v2017 = vmul.f32 %v1914, %v1498
        %v2018 = vmul.f32 %v1914, %v1499
        %v2019 = vmul.f32 %v1914, %v1500
        %v2020 = vmul.f32 %v1914, %v1501
        %v2021 = vmul.f32 %v1914, %v1502
        %v2022 = vmul.f32 %v1914, %v1503
        %v2023 = vmul.f32 %v1914, %v1504
        %v2024 = vmul.f32 %v1914, %v1505
        %v2025 = vmul.f32 %v1914, %v1506
        %v2026 = vmul.f32 %v1914, %v1507
        %v2027 = vmul.f32 %v1914, %v1508
        %v2028 = vmul.f32 %v1914, %v1509
        %v2029 = vmul.f32 %v1914, %v1510
        %v2030 = vmul.f32 %v1914, %v1511
        %v2031 = vmul.f32 %v1914, %v1512
        %v2032 = vmul.f32 %v1914, %v1513
        %v2033 = vmul.f32 %v1914, %v1514
        %v2034 = vmul.f32 %v1914, %v1515
        %v2035 = vmul.f32 %v1914, %v1516
        %v2036 = vmul.f32 %v1914, %v1517
        %v2037 = vmul.f32 %v1914, %v1518
        %v2038 = vmul.f32 %v1914, %v1519
        %v2039 = vmul.f32 %v1914, %v1520
        %v2040 = vmul.f32 %v1914, %v1521
        %v2041 = vmul.f32 %v1914, %v1522
        %v2042 = vmul.f32 %v1914, %v1523
        %v2043 = vmul.f32 %v1914, %v1524
        %v2044 = vmul.f32 %v1914, %v1525
        %v2045 = vmul.f32 %v1914, %v1526
        %v2046 = vmul.f32 %v1914, %v1527
        %v2047 = vmul.f32 %v1914, %v1528
        %v2048 = vmul.f32 %v1914, %v1529
        %v2049 = vmul.f32 %v1914, %v1530
        %v2050 = vmul.f32 %v1914, %v1531
        %v2051 = vmul.f32 %v1914, %v1532
        %v2052 = vmul.f32 %v1914, %v1533
        %v2053 = vmul.f32 %v1914, %v1534
        %v2054 = vmul.f32 %v1914, %v1535
        %v2055 = vmul.f32 %v1914, %v1536
        %v2056 = vmul.f32 %v1914, %v1537
        %v2057 = vmul.f32 %v1914, %v1538
        %v2058 = vmul.f32 %v1914, %v1539
        %v2059 = vmul.f32 %v1914, %v1540
        %v2060 = vmul.f32 %v1914, %v1541
        %v2061 = vmul.f32 %v1914, %v1542
        %v2062 = vmul.f32 %v1914, %v1543
        %v2063 = vmul.f32 %v1914, %v1544
        %v2064 = vmul.f32 %v1914, %v1545
        %v2065 = vmul.f32 %v1914, %v1546
        %v2066 = vmul.f32 %v1914, %v1547
        %v2067 = vmul.f32 %v1914, %v1548
        %v2068 = vmul.f32 %v1914, %v1549
        %v2069 = vmul.f32 %v1914, %v1550
        %v2070 = vmul.f32 %v1914, %v1551
        %v2071 = vmul.f32 %v1914, %v1552
        %v2072 = vmul.f32 %v1914, %v1553
        %v2073 = vmul.f32 %v1914, %v1554
        %v2074 = vmul.f32 %v1914, %v1555
        %v2075 = vmul.f32 %v1914, %v1556
        %v2076 = vmul.f32 %v1914, %v1557
        %v2077 = vmul.f32 %v1914, %v1558
        %v2078 = vmul.f32 %v1914, %v1559
        %v2079 = vmul.f32 %v1914, %v1560
        %v2080 = vmul.f32 %v1914, %v1561
        %v2081 = vmul.f32 %v1914, %v1562
        %v2082 = vmul.f32 %v1914, %v1563
        %v2083 = vmul.f32 %v1914, %v1564
        %v2084 = vmul.f32 %v1914, %v1565
        %v2085 = vmul.f32 %v1914, %v1566
        %v2086 = vmul.f32 %v1914, %v1567
        %v2087 = vmul.f32 %v1914, %v1568
        %v2088 = vmul.f32 %v1914, %v1569
        %v2089 = vmul.f32 %v1914, %v1570
        %v2090 = vmul.f32 %v1914, %v1571
        %v2091 = vmul.f32 %v1914, %v1572
        %v2092 = vmul.f32 %v1914, %v1573
        %v2093 = vmul.f32 %v1914, %v1574
        %v2094 = vmul.f32 %v1914, %v1575
        %v2095 = vmul.f32 %v1914, %v1576
        %v2096 = vmul.f32 %v1914, %v1577
        %v2097 = vmul.f32 %v1914, %v1578
        %v2098 = vmul.f32 %v1914, %v1579
        %v2099 = vmul.f32 %v1914, %v1580
        %v2100 = vmul.f32 %v1914, %v1581
        %v2101 = vmul.f32 %v1914, %v1582
        %v2102 = vmul.f32 %v1914, %v1583
        %v2103 = vmul.f32 %v1914, %v1584
        %v2104 = vmul.f32 %v1914, %v1585
        %v2105 = vmul.f32 %v1914, %v1586
        %v2106 = vmul.f32 %v1914, %v1587
        %v2107 = vmul.f32 %v1914, %v1588
        %v2108 = vmul.f32 %v1914, %v1589
        %v2109 = vmul.f32 %v1914, %v1590
        %v2110 = vmul.f32 %v1914, %v1591
        %v2111 = vmul.f32 %v1914, %v1592
        %v2112 = vmul.f32 %v1914, %v1593
        %v2113 = vmul.f32 %v1914, %v1594
        %v2114 = vmul.f32 %v1914, %v1595
        %v2115 = vmul.f32 %v1914, %v1596
        %v2116 = vmul.f32 %v1914, %v1597
        %v2117 = vmul.f32 %v1914, %v1598
        %v2118 = vmul.f32 %v1914, %v1599
        %v2119 = vmul.f32 %v1914, %v1600
        %v2120 = vmul.f32 %v1914, %v1601
        %v2121 = vmul.f32 %v1914, %v1602
        %v2122 = vmul.f32 %v1914, %v1603
        %v2123 = vmul.f32 %v1914, %v1604
        %v2124 = vmul.f32 %v1914, %v1605
        %v2125 = vmul.f32 %v1914, %v1606
        %v2126 = vmul.f32 %v1914, %v1607
        %v2127 = vmul.f32 %v1914, %v1608
        %v2128 = vmul.f32 %v1914, %v1609
        %v2129 = vmul.f32 %v1914, %v1610
        %v2130 = vmul.f32 %v1914, %v1611
        %v2131 = vmul.f32 %v1914, %v1612
        %v2132 = vmul.f32 %v1914, %v1613
        %v2133 = vmul.f32 %v1914, %v1614
        %v2134 = vmul.f32 %v1914, %v1615
        %v2135 = vmul.f32 %v1914, %v1616
        %v2136 = vmul.f32 %v1914, %v1617
        %v2137 = vmul.f32 %v1914, %v1618
        %v2138 = vmul.f32 %v1914, %v1619
        %v2139 = vmul.f32 %v1914, %v1620
        %v2140 = vmul.f32 %v1914, %v1621
        %v2141 = vmul.f32 %v1914, %v1622
        %v2142 = vmul.f32 %v1914, %v1623
        %v2143 = vmul.f32 %v1914, %v1624
        %v2144 = vmul.f32 %v1914, %v1625
        %v2145 = vmul.f32 %v1914, %v1626
        %v2146 = vmul.f32 %v1914, %v1627
        %v2147 = vmul.f32 %v1914, %v1628
        %v2148 = vmul.f32 %v1914, %v1629
        %v2149 = vmul.f32 %v1914, %v1630
        %v2150 = vmul.f32 %v1914, %v1631
        %v2151 = vmul.f32 %v1914, %v1632
        %v2152 = vmul.f32 %v1914, %v1633
        %v2153 = vmul.f32 %v1914, %v1634
        %v2154 = vmul.f32 %v1914, %v1635
        %v2155 = vmul.f32 %v1914, %v1636
        %v2156 = vmul.f32 %v1914, %v1637
        %v2157 = vmul.f32 %v1914, %v1638
        %v2158 = vmul.f32 %v1914, %v1639
        %v2159 = vmul.f32 %v1914, %v1640
        %v2160 = vmul.f32 %v1914, %v1641
        %v2161 = vmul.f32 %v1914, %v1642
        %v2162 = vmul.f32 %v1914, %v1643
        %v2163 = vmul.f32 %v1914, %v1644
        %v2164 = vmul.f32 %v1914, %v1645
        %v2165 = vmul.f32 %v1914, %v1646
        %v2166 = vmul.f32 %v1914, %v1647
        %v2167 = vmul.f32 %v1914, %v1648
        %v2168 = vmul.f32 %v1914, %v1649
        %v2169 = vmul.f32 %v1914, %v1650
        %v2170 = vmul.f32 %v1914, %v1651
        %v2171 = vmul.f32 %v1914, %v1652
        %v2172 = vsel %vm1653, %v1397, %v1916
        %v2173 = vsel %vm1654, %v1398, %v1917
        %v2174 = vsel %vm1655, %v1399, %v1918
        %v2175 = vsel %vm1656, %v1400, %v1919
        %v2176 = vsel %vm1657, %v1401, %v1920
        %v2177 = vsel %vm1658, %v1402, %v1921
        %v2178 = vsel %vm1659, %v1403, %v1922
        %v2179 = vsel %vm1660, %v1404, %v1923
        %v2180 = vsel %vm1661, %v1405, %v1924
        %v2181 = vsel %vm1662, %v1406, %v1925
        %v2182 = vsel %vm1663, %v1407, %v1926
        %v2183 = vsel %vm1664, %v1408, %v1927
        %v2184 = vsel %vm1665, %v1409, %v1928
        %v2185 = vsel %vm1666, %v1410, %v1929
        %v2186 = vsel %vm1667, %v1411, %v1930
        %v2187 = vsel %vm1668, %v1412, %v1931
        %v2188 = vsel %vm1669, %v1413, %v1932
        %v2189 = vsel %vm1670, %v1414, %v1933
        %v2190 = vsel %vm1671, %v1415, %v1934
        %v2191 = vsel %vm1672, %v1416, %v1935
        %v2192 = vsel %vm1673, %v1417, %v1936
        %v2193 = vsel %vm1674, %v1418, %v1937
        %v2194 = vsel %vm1675, %v1419, %v1938
        %v2195 = vsel %vm1676, %v1420, %v1939
        %v2196 = vsel %vm1677, %v1421, %v1940
        %v2197 = vsel %vm1678, %v1422, %v1941
        %v2198 = vsel %vm1679, %v1423, %v1942
        %v2199 = vsel %vm1680, %v1424, %v1943
        %v2200 = vsel %vm1681, %v1425, %v1944
        %v2201 = vsel %vm1682, %v1426, %v1945
        %v2202 = vsel %vm1683, %v1427, %v1946
        %v2203 = vsel %vm1684, %v1428, %v1947
        %v2204 = vsel %vm1685, %v1429, %v1948
        %v2205 = vsel %vm1686, %v1430, %v1949
        %v2206 = vsel %vm1687, %v1431, %v1950
        %v2207 = vsel %vm1688, %v1432, %v1951
        %v2208 = vsel %vm1689, %v1433, %v1952
        %v2209 = vsel %vm1690, %v1434, %v1953
        %v2210 = vsel %vm1691, %v1435, %v1954
        %v2211 = vsel %vm1692, %v1436, %v1955
        %v2212 = vsel %vm1693, %v1437, %v1956
        %v2213 = vsel %vm1694, %v1438, %v1957
        %v2214 = vsel %vm1695, %v1439, %v1958
        %v2215 = vsel %vm1696, %v1440, %v1959
        %v2216 = vsel %vm1697, %v1441, %v1960
        %v2217 = vsel %vm1698, %v1442, %v1961
        %v2218 = vsel %vm1699, %v1443, %v1962
        %v2219 = vsel %vm1700, %v1444, %v1963
        %v2220 = vsel %vm1701, %v1445, %v1964
        %v2221 = vsel %vm1702, %v1446, %v1965
        %v2222 = vsel %vm1703, %v1447, %v1966
        %v2223 = vsel %vm1704, %v1448, %v1967
        %v2224 = vsel %vm1705, %v1449, %v1968
        %v2225 = vsel %vm1706, %v1450, %v1969
        %v2226 = vsel %vm1707, %v1451, %v1970
        %v2227 = vsel %vm1708, %v1452, %v1971
        %v2228 = vsel %vm1709, %v1453, %v1972
        %v2229 = vsel %vm1710, %v1454, %v1973
        %v2230 = vsel %vm1711, %v1455, %v1974
        %v2231 = vsel %vm1712, %v1456, %v1975
        %v2232 = vsel %vm1713, %v1457, %v1976
        %v2233 = vsel %vm1714, %v1458, %v1977
        %v2234 = vsel %vm1715, %v1459, %v1978
        %v2235 = vsel %vm1716, %v1460, %v1979
        %v2236 = vsel %vm1717, %v1461, %v1980
        %v2237 = vsel %vm1718, %v1462, %v1981
        %v2238 = vsel %vm1719, %v1463, %v1982
        %v2239 = vsel %vm1720, %v1464, %v1983
        %v2240 = vsel %vm1721, %v1465, %v1984
        %v2241 = vsel %vm1722, %v1466, %v1985
        %v2242 = vsel %vm1723, %v1467, %v1986
        %v2243 = vsel %vm1724, %v1468, %v1987
        %v2244 = vsel %vm1725, %v1469, %v1988
        %v2245 = vsel %vm1726, %v1470, %v1989
        %v2246 = vsel %vm1727, %v1471, %v1990
        %v2247 = vsel %vm1728, %v1472, %v1991
        %v2248 = vsel %vm1729, %v1473, %v1992
        %v2249 = vsel %vm1730, %v1474, %v1993
        %v2250 = vsel %vm1731, %v1475, %v1994
        %v2251 = vsel %vm1732, %v1476, %v1995
        %v2252 = vsel %vm1733, %v1477, %v1996
        %v2253 = vsel %vm1734, %v1478, %v1997
        %v2254 = vsel %vm1735, %v1479, %v1998
        %v2255 = vsel %vm1736, %v1480, %v1999
        %v2256 = vsel %vm1737, %v1481, %v2000
        %v2257 = vsel %vm1738, %v1482, %v2001
        %v2258 = vsel %vm1739, %v1483, %v2002
        %v2259 = vsel %vm1740, %v1484, %v2003
        %v2260 = vsel %vm1741, %v1485, %v2004
        %v2261 = vsel %vm1742, %v1486, %v2005
        %v2262 = vsel %vm1743, %v1487, %v2006
        %v2263 = vsel %vm1744, %v1488, %v2007
        %v2264 = vsel %vm1745, %v1489, %v2008
        %v2265 = vsel %vm1746, %v1490, %v2009
        %v2266 = vsel %vm1747, %v1491, %v2010
        %v2267 = vsel %vm1748, %v1492, %v2011
        %v2268 = vsel %vm1749, %v1493, %v2012
        %v2269 = vsel %vm1750, %v1494, %v2013
        %v2270 = vsel %vm1751, %v1495, %v2014
        %v2271 = vsel %vm1752, %v1496, %v2015
        %v2272 = vsel %vm1753, %v1497, %v2016
        %v2273 = vsel %vm1754, %v1498, %v2017
        %v2274 = vsel %vm1755, %v1499, %v2018
        %v2275 = vsel %vm1756, %v1500, %v2019
        %v2276 = vsel %vm1757, %v1501, %v2020
        %v2277 = vsel %vm1758, %v1502, %v2021
        %v2278 = vsel %vm1759, %v1503, %v2022
        %v2279 = vsel %vm1760, %v1504, %v2023
        %v2280 = vsel %vm1761, %v1505, %v2024
        %v2281 = vsel %vm1762, %v1506, %v2025
        %v2282 = vsel %vm1763, %v1507, %v2026
        %v2283 = vsel %vm1764, %v1508, %v2027
        %v2284 = vsel %vm1765, %v1509, %v2028
        %v2285 = vsel %vm1766, %v1510, %v2029
        %v2286 = vsel %vm1767, %v1511, %v2030
        %v2287 = vsel %vm1768, %v1512, %v2031
        %v2288 = vsel %vm1769, %v1513, %v2032
        %v2289 = vsel %vm1770, %v1514, %v2033
        %v2290 = vsel %vm1771, %v1515, %v2034
        %v2291 = vsel %vm1772, %v1516, %v2035
        %v2292 = vsel %vm1773, %v1517, %v2036
        %v2293 = vsel %vm1774, %v1518, %v2037
        %v2294 = vsel %vm1775, %v1519, %v2038
        %v2295 = vsel %vm1776, %v1520, %v2039
        %v2296 = vsel %vm1777, %v1521, %v2040
        %v2297 = vsel %vm1778, %v1522, %v2041
        %v2298 = vsel %vm1779, %v1523, %v2042
        %v2299 = vsel %vm1780, %v1524, %v2043
        %v2300 = vsel %vm1781, %v1525, %v2044
        %v2301 = vsel %vm1782, %v1526, %v2045
        %v2302 = vsel %vm1783, %v1527, %v2046
        %v2303 = vsel %vm1784, %v1528, %v2047
        %v2304 = vsel %vm1785, %v1529, %v2048
        %v2305 = vsel %vm1786, %v1530, %v2049
        %v2306 = vsel %vm1787, %v1531, %v2050
        %v2307 = vsel %vm1788, %v1532, %v2051
        %v2308 = vsel %vm1789, %v1533, %v2052
        %v2309 = vsel %vm1790, %v1534, %v2053
        %v2310 = vsel %vm1791, %v1535, %v2054
        %v2311 = vsel %vm1792, %v1536, %v2055
        %v2312 = vsel %vm1793, %v1537, %v2056
        %v2313 = vsel %vm1794, %v1538, %v2057
        %v2314 = vsel %vm1795, %v1539, %v2058
        %v2315 = vsel %vm1796, %v1540, %v2059
        %v2316 = vsel %vm1797, %v1541, %v2060
        %v2317 = vsel %vm1798, %v1542, %v2061
        %v2318 = vsel %vm1799, %v1543, %v2062
        %v2319 = vsel %vm1800, %v1544, %v2063
        %v2320 = vsel %vm1801, %v1545, %v2064
        %v2321 = vsel %vm1802, %v1546, %v2065
        %v2322 = vsel %vm1803, %v1547, %v2066
        %v2323 = vsel %vm1804, %v1548, %v2067
        %v2324 = vsel %vm1805, %v1549, %v2068
        %v2325 = vsel %vm1806, %v1550, %v2069
        %v2326 = vsel %vm1807, %v1551, %v2070
        %v2327 = vsel %vm1808, %v1552, %v2071
        %v2328 = vsel %vm1809, %v1553, %v2072
        %v2329 = vsel %vm1810, %v1554, %v2073
        %v2330 = vsel %vm1811, %v1555, %v2074
        %v2331 = vsel %vm1812, %v1556, %v2075
        %v2332 = vsel %vm1813, %v1557, %v2076
        %v2333 = vsel %vm1814, %v1558, %v2077
        %v2334 = vsel %vm1815, %v1559, %v2078
        %v2335 = vsel %vm1816, %v1560, %v2079
        %v2336 = vsel %vm1817, %v1561, %v2080
        %v2337 = vsel %vm1818, %v1562, %v2081
        %v2338 = vsel %vm1819, %v1563, %v2082
        %v2339 = vsel %vm1820, %v1564, %v2083
        %v2340 = vsel %vm1821, %v1565, %v2084
        %v2341 = vsel %vm1822, %v1566, %v2085
        %v2342 = vsel %vm1823, %v1567, %v2086
        %v2343 = vsel %vm1824, %v1568, %v2087
        %v2344 = vsel %vm1825, %v1569, %v2088
        %v2345 = vsel %vm1826, %v1570, %v2089
        %v2346 = vsel %vm1827, %v1571, %v2090
        %v2347 = vsel %vm1828, %v1572, %v2091
        %v2348 = vsel %vm1829, %v1573, %v2092
        %v2349 = vsel %vm1830, %v1574, %v2093
        %v2350 = vsel %vm1831, %v1575, %v2094
        %v2351 = vsel %vm1832, %v1576, %v2095
        %v2352 = vsel %vm1833, %v1577, %v2096
        %v2353 = vsel %vm1834, %v1578, %v2097
        %v2354 = vsel %vm1835, %v1579, %v2098
        %v2355 = vsel %vm1836, %v1580, %v2099
        %v2356 = vsel %vm1837, %v1581, %v2100
        %v2357 = vsel %vm1838, %v1582, %v2101
        %v2358 = vsel %vm1839, %v1583, %v2102
        %v2359 = vsel %vm1840, %v1584, %v2103
        %v2360 = vsel %vm1841, %v1585, %v2104
        %v2361 = vsel %vm1842, %v1586, %v2105
        %v2362 = vsel %vm1843, %v1587, %v2106
        %v2363 = vsel %vm1844, %v1588, %v2107
        %v2364 = vsel %vm1845, %v1589, %v2108
        %v2365 = vsel %vm1846, %v1590, %v2109
        %v2366 = vsel %vm1847, %v1591, %v2110
        %v2367 = vsel %vm1848, %v1592, %v2111
        %v2368 = vsel %vm1849, %v1593, %v2112
        %v2369 = vsel %vm1850, %v1594, %v2113
        %v2370 = vsel %vm1851, %v1595, %v2114
        %v2371 = vsel %vm1852, %v1596, %v2115
        %v2372 = vsel %vm1853, %v1597, %v2116
        %v2373 = vsel %vm1854, %v1598, %v2117
        %v2374 = vsel %vm1855, %v1599, %v2118
        %v2375 = vsel %vm1856, %v1600, %v2119
        %v2376 = vsel %vm1857, %v1601, %v2120
        %v2377 = vsel %vm1858, %v1602, %v2121
        %v2378 = vsel %vm1859, %v1603, %v2122
        %v2379 = vsel %vm1860, %v1604, %v2123
        %v2380 = vsel %vm1861, %v1605, %v2124
        %v2381 = vsel %vm1862, %v1606, %v2125
        %v2382 = vsel %vm1863, %v1607, %v2126
        %v2383 = vsel %vm1864, %v1608, %v2127
        %v2384 = vsel %vm1865, %v1609, %v2128
        %v2385 = vsel %vm1866, %v1610, %v2129
        %v2386 = vsel %vm1867, %v1611, %v2130
        %v2387 = vsel %vm1868, %v1612, %v2131
        %v2388 = vsel %vm1869, %v1613, %v2132
        %v2389 = vsel %vm1870, %v1614, %v2133
        %v2390 = vsel %vm1871, %v1615, %v2134
        %v2391 = vsel %vm1872, %v1616, %v2135
        %v2392 = vsel %vm1873, %v1617, %v2136
        %v2393 = vsel %vm1874, %v1618, %v2137
        %v2394 = vsel %vm1875, %v1619, %v2138
        %v2395 = vsel %vm1876, %v1620, %v2139
        %v2396 = vsel %vm1877, %v1621, %v2140
        %v2397 = vsel %vm1878, %v1622, %v2141
        %v2398 = vsel %vm1879, %v1623, %v2142
        %v2399 = vsel %vm1880, %v1624, %v2143
        %v2400 = vsel %vm1881, %v1625, %v2144
        %v2401 = vsel %vm1882, %v1626, %v2145
        %v2402 = vsel %vm1883, %v1627, %v2146
        %v2403 = vsel %vm1884, %v1628, %v2147
        %v2404 = vsel %vm1885, %v1629, %v2148
        %v2405 = vsel %vm1886, %v1630, %v2149
        %v2406 = vsel %vm1887, %v1631, %v2150
        %v2407 = vsel %vm1888, %v1632, %v2151
        %v2408 = vsel %vm1889, %v1633, %v2152
        %v2409 = vsel %vm1890, %v1634, %v2153
        %v2410 = vsel %vm1891, %v1635, %v2154
        %v2411 = vsel %vm1892, %v1636, %v2155
        %v2412 = vsel %vm1893, %v1637, %v2156
        %v2413 = vsel %vm1894, %v1638, %v2157
        %v2414 = vsel %vm1895, %v1639, %v2158
        %v2415 = vsel %vm1896, %v1640, %v2159
        %v2416 = vsel %vm1897, %v1641, %v2160
        %v2417 = vsel %vm1898, %v1642, %v2161
        %v2418 = vsel %vm1899, %v1643, %v2162
        %v2419 = vsel %vm1900, %v1644, %v2163
        %v2420 = vsel %vm1901, %v1645, %v2164
        %v2421 = vsel %vm1902, %v1646, %v2165
        %v2422 = vsel %vm1903, %v1647, %v2166
        %v2423 = vsel %vm1904, %v1648, %v2167
        %v2424 = vsel %vm1905, %v1649, %v2168
        %v2425 = vsel %vm1906, %v1650, %v2169
        %v2426 = vsel %vm1907, %v1651, %v2170
        %v2427 = vsel %vm1908, %v1652, %v2171
        %v2428 = vld [vmem:[#allocation2] sm:$0xff]
        %v2429 = vld [vmem:[#allocation2 + $0x8] sm:$0xff]
        %v2430 = vld [vmem:[#allocation2 + $0x10] sm:$0xff]
        %v2431 = vld [vmem:[#allocation2 + $0x18] sm:$0xff]
        %v2432 = vld [vmem:[#allocation2 + $0x20] sm:$0xff]
        %v2433 = vld [vmem:[#allocation2 + $0x28] sm:$0xff]
        %v2434 = vld [vmem:[#allocation2 + $0x30] sm:$0xff]
        %v2435 = vld [vmem:[#allocation2 + $0x38] sm:$0xff]
        %v2436 = vld [vmem:[#allocation2 + $0x40] sm:$0xff]
        %v2437 = vld [vmem:[#allocation2 + $0x48] sm:$0xff]
        %v2438 = vld [vmem:[#allocation2 + $0x50] sm:$0xff]
        %v2439 = vld [vmem:[#allocation2 + $0x58] sm:$0xff]
        %v2440 = vld [vmem:[#allocation2 + $0x60] sm:$0xff]
        %v2441 = vld [vmem:[#allocation2 + $0x68] sm:$0xff]
        %v2442 = vld [vmem:[#allocation2 + $0x70] sm:$0xff]
        %v2443 = vld [vmem:[#allocation2 + $0x78] sm:$0xff]
        %v2444 = vld [vmem:[#allocation2 + $0x80] sm:$0xff]
        %v2445 = vld [vmem:[#allocation2 + $0x88] sm:$0xff]
        %v2446 = vld [vmem:[#allocation2 + $0x90] sm:$0xff]
        %v2447 = vld [vmem:[#allocation2 + $0x98] sm:$0xff]
        %v2448 = vld [vmem:[#allocation2 + $0xa0] sm:$0xff]
        %v2449 = vld [vmem:[#allocation2 + $0xa8] sm:$0xff]
        %v2450 = vld [vmem:[#allocation2 + $0xb0] sm:$0xff]
        %v2451 = vld [vmem:[#allocation2 + $0xb8] sm:$0xff]
        %v2452 = vld [vmem:[#allocation2 + $0xc0] sm:$0xff]
        %v2453 = vld [vmem:[#allocation2 + $0xc8] sm:$0xff]
        %v2454 = vld [vmem:[#allocation2 + $0xd0] sm:$0xff]
        %v2455 = vld [vmem:[#allocation2 + $0xd8] sm:$0xff]
        %v2456 = vld [vmem:[#allocation2 + $0xe0] sm:$0xff]
        %v2457 = vld [vmem:[#allocation2 + $0xe8] sm:$0xff]
        %v2458 = vld [vmem:[#allocation2 + $0xf0] sm:$0xff]
        %v2459 = vld [vmem:[#allocation2 + $0xf8] sm:$0xff]
        %v2460 = vld [vmem:[#allocation2 + $0x100] sm:$0xff]
        %v2461 = vld [vmem:[#allocation2 + $0x108] sm:$0xff]
        %v2462 = vld [vmem:[#allocation2 + $0x110] sm:$0xff]
        %v2463 = vld [vmem:[#allocation2 + $0x118] sm:$0xff]
        %v2464 = vld [vmem:[#allocation2 + $0x120] sm:$0xff]
        %v2465 = vld [vmem:[#allocation2 + $0x128] sm:$0xff]
        %v2466 = vld [vmem:[#allocation2 + $0x130] sm:$0xff]
        %v2467 = vld [vmem:[#allocation2 + $0x138] sm:$0xff]
        %v2468 = vld [vmem:[#allocation2 + $0x140] sm:$0xff]
        %v2469 = vld [vmem:[#allocation2 + $0x148] sm:$0xff]
        %v2470 = vld [vmem:[#allocation2 + $0x150] sm:$0xff]
        %v2471 = vld [vmem:[#allocation2 + $0x158] sm:$0xff]
        %v2472 = vld [vmem:[#allocation2 + $0x160] sm:$0xff]
        %v2473 = vld [vmem:[#allocation2 + $0x168] sm:$0xff]
        %v2474 = vld [vmem:[#allocation2 + $0x170] sm:$0xff]
        %v2475 = vld [vmem:[#allocation2 + $0x178] sm:$0xff]
        %v2476 = vld [vmem:[#allocation2 + $0x180] sm:$0xff]
        %v2477 = vld [vmem:[#allocation2 + $0x188] sm:$0xff]
        %v2478 = vld [vmem:[#allocation2 + $0x190] sm:$0xff]
        %v2479 = vld [vmem:[#allocation2 + $0x198] sm:$0xff]
        %v2480 = vld [vmem:[#allocation2 + $0x1a0] sm:$0xff]
        %v2481 = vld [vmem:[#allocation2 + $0x1a8] sm:$0xff]
        %v2482 = vld [vmem:[#allocation2 + $0x1b0] sm:$0xff]
        %v2483 = vld [vmem:[#allocation2 + $0x1b8] sm:$0xff]
        %v2484 = vld [vmem:[#allocation2 + $0x1c0] sm:$0xff]
        %v2485 = vld [vmem:[#allocation2 + $0x1c8] sm:$0xff]
        %v2486 = vld [vmem:[#allocation2 + $0x1d0] sm:$0xff]
        %v2487 = vld [vmem:[#allocation2 + $0x1d8] sm:$0xff]
        %v2488 = vld [vmem:[#allocation2 + $0x1e0] sm:$0xff]
        %v2489 = vld [vmem:[#allocation2 + $0x1e8] sm:$0xff]
        %v2490 = vld [vmem:[#allocation2 + $0x1f0] sm:$0xff]
        %v2491 = vld [vmem:[#allocation2 + $0x1f8] sm:$0xff]
        %v2492 = vld [vmem:[#allocation2 + $0x200] sm:$0xff]
        %v2493 = vld [vmem:[#allocation2 + $0x208] sm:$0xff]
        %v2494 = vld [vmem:[#allocation2 + $0x210] sm:$0xff]
        %v2495 = vld [vmem:[#allocation2 + $0x218] sm:$0xff]
        %v2496 = vld [vmem:[#allocation2 + $0x220] sm:$0xff]
        %v2497 = vld [vmem:[#allocation2 + $0x228] sm:$0xff]
        %v2498 = vld [vmem:[#allocation2 + $0x230] sm:$0xff]
        %v2499 = vld [vmem:[#allocation2 + $0x238] sm:$0xff]
        %v2500 = vld [vmem:[#allocation2 + $0x240] sm:$0xff]
        %v2501 = vld [vmem:[#allocation2 + $0x248] sm:$0xff]
        %v2502 = vld [vmem:[#allocation2 + $0x250] sm:$0xff]
        %v2503 = vld [vmem:[#allocation2 + $0x258] sm:$0xff]
        %v2504 = vld [vmem:[#allocation2 + $0x260] sm:$0xff]
        %v2505 = vld [vmem:[#allocation2 + $0x268] sm:$0xff]
        %v2506 = vld [vmem:[#allocation2 + $0x270] sm:$0xff]
        %v2507 = vld [vmem:[#allocation2 + $0x278] sm:$0xff]
        %v2508 = vld [vmem:[#allocation2 + $0x280] sm:$0xff]
        %v2509 = vld [vmem:[#allocation2 + $0x288] sm:$0xff]
        %v2510 = vld [vmem:[#allocation2 + $0x290] sm:$0xff]
        %v2511 = vld [vmem:[#allocation2 + $0x298] sm:$0xff]
        %v2512 = vld [vmem:[#allocation2 + $0x2a0] sm:$0xff]
        %v2513 = vld [vmem:[#allocation2 + $0x2a8] sm:$0xff]
        %v2514 = vld [vmem:[#allocation2 + $0x2b0] sm:$0xff]
        %v2515 = vld [vmem:[#allocation2 + $0x2b8] sm:$0xff]
        %v2516 = vld [vmem:[#allocation2 + $0x2c0] sm:$0xff]
        %v2517 = vld [vmem:[#allocation2 + $0x2c8] sm:$0xff]
        %v2518 = vld [vmem:[#allocation2 + $0x2d0] sm:$0xff]
        %v2519 = vld [vmem:[#allocation2 + $0x2d8] sm:$0xff]
        %v2520 = vld [vmem:[#allocation2 + $0x2e0] sm:$0xff]
        %v2521 = vld [vmem:[#allocation2 + $0x2e8] sm:$0xff]
        %v2522 = vld [vmem:[#allocation2 + $0x2f0] sm:$0xff]
        %v2523 = vld [vmem:[#allocation2 + $0x2f8] sm:$0xff]
        %v2524 = vld [vmem:[#allocation2 + $0x300] sm:$0xff]
        %v2525 = vld [vmem:[#allocation2 + $0x308] sm:$0xff]
        %v2526 = vld [vmem:[#allocation2 + $0x310] sm:$0xff]
        %v2527 = vld [vmem:[#allocation2 + $0x318] sm:$0xff]
        %v2528 = vld [vmem:[#allocation2 + $0x320] sm:$0xff]
        %v2529 = vld [vmem:[#allocation2 + $0x328] sm:$0xff]
        %v2530 = vld [vmem:[#allocation2 + $0x330] sm:$0xff]
        %v2531 = vld [vmem:[#allocation2 + $0x338] sm:$0xff]
        %v2532 = vld [vmem:[#allocation2 + $0x340] sm:$0xff]
        %v2533 = vld [vmem:[#allocation2 + $0x348] sm:$0xff]
        %v2534 = vld [vmem:[#allocation2 + $0x350] sm:$0xff]
        %v2535 = vld [vmem:[#allocation2 + $0x358] sm:$0xff]
        %v2536 = vld [vmem:[#allocation2 + $0x360] sm:$0xff]
        %v2537 = vld [vmem:[#allocation2 + $0x368] sm:$0xff]
        %v2538 = vld [vmem:[#allocation2 + $0x370] sm:$0xff]
        %v2539 = vld [vmem:[#allocation2 + $0x378] sm:$0xff]
        %v2540 = vld [vmem:[#allocation2 + $0x380] sm:$0xff]
        %v2541 = vld [vmem:[#allocation2 + $0x388] sm:$0xff]
        %v2542 = vld [vmem:[#allocation2 + $0x390] sm:$0xff]
        %v2543 = vld [vmem:[#allocation2 + $0x398] sm:$0xff]
        %v2544 = vld [vmem:[#allocation2 + $0x3a0] sm:$0xff]
        %v2545 = vld [vmem:[#allocation2 + $0x3a8] sm:$0xff]
        %v2546 = vld [vmem:[#allocation2 + $0x3b0] sm:$0xff]
        %v2547 = vld [vmem:[#allocation2 + $0x3b8] sm:$0xff]
        %v2548 = vld [vmem:[#allocation2 + $0x3c0] sm:$0xff]
        %v2549 = vld [vmem:[#allocation2 + $0x3c8] sm:$0xff]
        %v2550 = vld [vmem:[#allocation2 + $0x3d0] sm:$0xff]
        %v2551 = vld [vmem:[#allocation2 + $0x3d8] sm:$0xff]
        %v2552 = vld [vmem:[#allocation2 + $0x3e0] sm:$0xff]
        %v2553 = vld [vmem:[#allocation2 + $0x3e8] sm:$0xff]
        %v2554 = vld [vmem:[#allocation2 + $0x3f0] sm:$0xff]
        %v2555 = vld [vmem:[#allocation2 + $0x3f8] sm:$0xff]
        %v2556 = vld [vmem:[#allocation2 + $0x400] sm:$0xff]
        %v2557 = vld [vmem:[#allocation2 + $0x408] sm:$0xff]
        %v2558 = vld [vmem:[#allocation2 + $0x410] sm:$0xff]
        %v2559 = vld [vmem:[#allocation2 + $0x418] sm:$0xff]
        %v2560 = vld [vmem:[#allocation2 + $0x420] sm:$0xff]
        %v2561 = vld [vmem:[#allocation2 + $0x428] sm:$0xff]
        %v2562 = vld [vmem:[#allocation2 + $0x430] sm:$0xff]
        %v2563 = vld [vmem:[#allocation2 + $0x438] sm:$0xff]
        %v2564 = vld [vmem:[#allocation2 + $0x440] sm:$0xff]
        %v2565 = vld [vmem:[#allocation2 + $0x448] sm:$0xff]
        %v2566 = vld [vmem:[#allocation2 + $0x450] sm:$0xff]
        %v2567 = vld [vmem:[#allocation2 + $0x458] sm:$0xff]
        %v2568 = vld [vmem:[#allocation2 + $0x460] sm:$0xff]
        %v2569 = vld [vmem:[#allocation2 + $0x468] sm:$0xff]
        %v2570 = vld [vmem:[#allocation2 + $0x470] sm:$0xff]
        %v2571 = vld [vmem:[#allocation2 + $0x478] sm:$0xff]
        %v2572 = vld [vmem:[#allocation2 + $0x480] sm:$0xff]
        %v2573 = vld [vmem:[#allocation2 + $0x488] sm:$0xff]
        %v2574 = vld [vmem:[#allocation2 + $0x490] sm:$0xff]
        %v2575 = vld [vmem:[#allocation2 + $0x498] sm:$0xff]
        %v2576 = vld [vmem:[#allocation2 + $0x4a0] sm:$0xff]
        %v2577 = vld [vmem:[#allocation2 + $0x4a8] sm:$0xff]
        %v2578 = vld [vmem:[#allocation2 + $0x4b0] sm:$0xff]
        %v2579 = vld [vmem:[#allocation2 + $0x4b8] sm:$0xff]
        %v2580 = vld [vmem:[#allocation2 + $0x4c0] sm:$0xff]
        %v2581 = vld [vmem:[#allocation2 + $0x4c8] sm:$0xff]
        %v2582 = vld [vmem:[#allocation2 + $0x4d0] sm:$0xff]
        %v2583 = vld [vmem:[#allocation2 + $0x4d8] sm:$0xff]
        %v2584 = vld [vmem:[#allocation2 + $0x4e0] sm:$0xff]
        %v2585 = vld [vmem:[#allocation2 + $0x4e8] sm:$0xff]
        %v2586 = vld [vmem:[#allocation2 + $0x4f0] sm:$0xff]
        %v2587 = vld [vmem:[#allocation2 + $0x4f8] sm:$0xff]
        %v2588 = vld [vmem:[#allocation2 + $0x500] sm:$0xff]
        %v2589 = vld [vmem:[#allocation2 + $0x508] sm:$0xff]
        %v2590 = vld [vmem:[#allocation2 + $0x510] sm:$0xff]
        %v2591 = vld [vmem:[#allocation2 + $0x518] sm:$0xff]
        %v2592 = vld [vmem:[#allocation2 + $0x520] sm:$0xff]
        %v2593 = vld [vmem:[#allocation2 + $0x528] sm:$0xff]
        %v2594 = vld [vmem:[#allocation2 + $0x530] sm:$0xff]
        %v2595 = vld [vmem:[#allocation2 + $0x538] sm:$0xff]
        %v2596 = vld [vmem:[#allocation2 + $0x540] sm:$0xff]
        %v2597 = vld [vmem:[#allocation2 + $0x548] sm:$0xff]
        %v2598 = vld [vmem:[#allocation2 + $0x550] sm:$0xff]
        %v2599 = vld [vmem:[#allocation2 + $0x558] sm:$0xff]
        %v2600 = vld [vmem:[#allocation2 + $0x560] sm:$0xff]
        %v2601 = vld [vmem:[#allocation2 + $0x568] sm:$0xff]
        %v2602 = vld [vmem:[#allocation2 + $0x570] sm:$0xff]
        %v2603 = vld [vmem:[#allocation2 + $0x578] sm:$0xff]
        %v2604 = vld [vmem:[#allocation2 + $0x580] sm:$0xff]
        %v2605 = vld [vmem:[#allocation2 + $0x588] sm:$0xff]
        %v2606 = vld [vmem:[#allocation2 + $0x590] sm:$0xff]
        %v2607 = vld [vmem:[#allocation2 + $0x598] sm:$0xff]
        %v2608 = vld [vmem:[#allocation2 + $0x5a0] sm:$0xff]
        %v2609 = vld [vmem:[#allocation2 + $0x5a8] sm:$0xff]
        %v2610 = vld [vmem:[#allocation2 + $0x5b0] sm:$0xff]
        %v2611 = vld [vmem:[#allocation2 + $0x5b8] sm:$0xff]
        %v2612 = vld [vmem:[#allocation2 + $0x5c0] sm:$0xff]
        %v2613 = vld [vmem:[#allocation2 + $0x5c8] sm:$0xff]
        %v2614 = vld [vmem:[#allocation2 + $0x5d0] sm:$0xff]
        %v2615 = vld [vmem:[#allocation2 + $0x5d8] sm:$0xff]
        %v2616 = vld [vmem:[#allocation2 + $0x5e0] sm:$0xff]
        %v2617 = vld [vmem:[#allocation2 + $0x5e8] sm:$0xff]
        %v2618 = vld [vmem:[#allocation2 + $0x5f0] sm:$0xff]
        %v2619 = vld [vmem:[#allocation2 + $0x5f8] sm:$0xff]
        %v2620 = vld [vmem:[#allocation2 + $0x600] sm:$0xff]
        %v2621 = vld [vmem:[#allocation2 + $0x608] sm:$0xff]
        %v2622 = vld [vmem:[#allocation2 + $0x610] sm:$0xff]
        %v2623 = vld [vmem:[#allocation2 + $0x618] sm:$0xff]
        %v2624 = vld [vmem:[#allocation2 + $0x620] sm:$0xff]
        %v2625 = vld [vmem:[#allocation2 + $0x628] sm:$0xff]
        %v2626 = vld [vmem:[#allocation2 + $0x630] sm:$0xff]
        %v2627 = vld [vmem:[#allocation2 + $0x638] sm:$0xff]
        %v2628 = vld [vmem:[#allocation2 + $0x640] sm:$0xff]
        %v2629 = vld [vmem:[#allocation2 + $0x648] sm:$0xff]
        %v2630 = vld [vmem:[#allocation2 + $0x650] sm:$0xff]
        %v2631 = vld [vmem:[#allocation2 + $0x658] sm:$0xff]
        %v2632 = vld [vmem:[#allocation2 + $0x660] sm:$0xff]
        %v2633 = vld [vmem:[#allocation2 + $0x668] sm:$0xff]
        %v2634 = vld [vmem:[#allocation2 + $0x670] sm:$0xff]
        %v2635 = vld [vmem:[#allocation2 + $0x678] sm:$0xff]
        %v2636 = vld [vmem:[#allocation2 + $0x680] sm:$0xff]
        %v2637 = vld [vmem:[#allocation2 + $0x688] sm:$0xff]
        %v2638 = vld [vmem:[#allocation2 + $0x690] sm:$0xff]
        %v2639 = vld [vmem:[#allocation2 + $0x698] sm:$0xff]
        %v2640 = vld [vmem:[#allocation2 + $0x6a0] sm:$0xff]
        %v2641 = vld [vmem:[#allocation2 + $0x6a8] sm:$0xff]
        %v2642 = vld [vmem:[#allocation2 + $0x6b0] sm:$0xff]
        %v2643 = vld [vmem:[#allocation2 + $0x6b8] sm:$0xff]
        %v2644 = vld [vmem:[#allocation2 + $0x6c0] sm:$0xff]
        %v2645 = vld [vmem:[#allocation2 + $0x6c8] sm:$0xff]
        %v2646 = vld [vmem:[#allocation2 + $0x6d0] sm:$0xff]
        %v2647 = vld [vmem:[#allocation2 + $0x6d8] sm:$0xff]
        %v2648 = vld [vmem:[#allocation2 + $0x6e0] sm:$0xff]
        %v2649 = vld [vmem:[#allocation2 + $0x6e8] sm:$0xff]
        %v2650 = vld [vmem:[#allocation2 + $0x6f0] sm:$0xff]
        %v2651 = vld [vmem:[#allocation2 + $0x6f8] sm:$0xff]
        %v2652 = vld [vmem:[#allocation2 + $0x700] sm:$0xff]
        %v2653 = vld [vmem:[#allocation2 + $0x708] sm:$0xff]
        %v2654 = vld [vmem:[#allocation2 + $0x710] sm:$0xff]
        %v2655 = vld [vmem:[#allocation2 + $0x718] sm:$0xff]
        %v2656 = vld [vmem:[#allocation2 + $0x720] sm:$0xff]
        %v2657 = vld [vmem:[#allocation2 + $0x728] sm:$0xff]
        %v2658 = vld [vmem:[#allocation2 + $0x730] sm:$0xff]
        %v2659 = vld [vmem:[#allocation2 + $0x738] sm:$0xff]
        %v2660 = vld [vmem:[#allocation2 + $0x740] sm:$0xff]
        %v2661 = vld [vmem:[#allocation2 + $0x748] sm:$0xff]
        %v2662 = vld [vmem:[#allocation2 + $0x750] sm:$0xff]
        %v2663 = vld [vmem:[#allocation2 + $0x758] sm:$0xff]
        %v2664 = vld [vmem:[#allocation2 + $0x760] sm:$0xff]
        %v2665 = vld [vmem:[#allocation2 + $0x768] sm:$0xff]
        %v2666 = vld [vmem:[#allocation2 + $0x770] sm:$0xff]
        %v2667 = vld [vmem:[#allocation2 + $0x778] sm:$0xff]
        %v2668 = vld [vmem:[#allocation2 + $0x780] sm:$0xff]
        %v2669 = vld [vmem:[#allocation2 + $0x788] sm:$0xff]
        %v2670 = vld [vmem:[#allocation2 + $0x790] sm:$0xff]
        %v2671 = vld [vmem:[#allocation2 + $0x798] sm:$0xff]
        %v2672 = vld [vmem:[#allocation2 + $0x7a0] sm:$0xff]
        %v2673 = vld [vmem:[#allocation2 + $0x7a8] sm:$0xff]
        %v2674 = vld [vmem:[#allocation2 + $0x7b0] sm:$0xff]
        %v2675 = vld [vmem:[#allocation2 + $0x7b8] sm:$0xff]
        %v2676 = vld [vmem:[#allocation2 + $0x7c0] sm:$0xff]
        %v2677 = vld [vmem:[#allocation2 + $0x7c8] sm:$0xff]
        %v2678 = vld [vmem:[#allocation2 + $0x7d0] sm:$0xff]
        %v2679 = vld [vmem:[#allocation2 + $0x7d8] sm:$0xff]
        %v2680 = vld [vmem:[#allocation2 + $0x7e0] sm:$0xff]
        %v2681 = vld [vmem:[#allocation2 + $0x7e8] sm:$0xff]
        %v2682 = vld [vmem:[#allocation2 + $0x7f0] sm:$0xff]
        %v2683 = vld [vmem:[#allocation2 + $0x7f8] sm:$0xff]
        %v2684 = vpack.c.bf16 %v2173, %v2172
        %v2685 = vpack.c.bf16 %v2175, %v2174
        %v2686 = vpack.c.bf16 %v2177, %v2176
        %v2687 = vpack.c.bf16 %v2179, %v2178
        %v2688 = vpack.c.bf16 %v2181, %v2180
        %v2689 = vpack.c.bf16 %v2183, %v2182
        %v2690 = vpack.c.bf16 %v2185, %v2184
        %v2691 = vpack.c.bf16 %v2187, %v2186
        %v2692 = vpack.c.bf16 %v2189, %v2188
        %v2693 = vpack.c.bf16 %v2191, %v2190
        %v2694 = vpack.c.bf16 %v2193, %v2192
        %v2695 = vpack.c.bf16 %v2195, %v2194
        %v2696 = vpack.c.bf16 %v2197, %v2196
        %v2697 = vpack.c.bf16 %v2199, %v2198
        %v2698 = vpack.c.bf16 %v2201, %v2200
        %v2699 = vpack.c.bf16 %v2203, %v2202
        %v2700 = vpack.c.bf16 %v2205, %v2204
        %v2701 = vpack.c.bf16 %v2207, %v2206
        %v2702 = vpack.c.bf16 %v2209, %v2208
        %v2703 = vpack.c.bf16 %v2211, %v2210
        %v2704 = vpack.c.bf16 %v2213, %v2212
        %v2705 = vpack.c.bf16 %v2215, %v2214
        %v2706 = vpack.c.bf16 %v2217, %v2216
        %v2707 = vpack.c.bf16 %v2219, %v2218
        %v2708 = vpack.c.bf16 %v2221, %v2220
        %v2709 = vpack.c.bf16 %v2223, %v2222
        %v2710 = vpack.c.bf16 %v2225, %v2224
        %v2711 = vpack.c.bf16 %v2227, %v2226
        %v2712 = vpack.c.bf16 %v2229, %v2228
        %v2713 = vpack.c.bf16 %v2231, %v2230
        %v2714 = vpack.c.bf16 %v2233, %v2232
        %v2715 = vpack.c.bf16 %v2235, %v2234
        %v2716 = vpack.c.bf16 %v2237, %v2236
        %v2717 = vpack.c.bf16 %v2239, %v2238
        %v2718 = vpack.c.bf16 %v2241, %v2240
        %v2719 = vpack.c.bf16 %v2243, %v2242
        %v2720 = vpack.c.bf16 %v2245, %v2244
        %v2721 = vpack.c.bf16 %v2247, %v2246
        %v2722 = vpack.c.bf16 %v2249, %v2248
        %v2723 = vpack.c.bf16 %v2251, %v2250
        %v2724 = vpack.c.bf16 %v2253, %v2252
        %v2725 = vpack.c.bf16 %v2255, %v2254
        %v2726 = vpack.c.bf16 %v2257, %v2256
        %v2727 = vpack.c.bf16 %v2259, %v2258
        %v2728 = vpack.c.bf16 %v2261, %v2260
        %v2729 = vpack.c.bf16 %v2263, %v2262
        %v2730 = vpack.c.bf16 %v2265, %v2264
        %v2731 = vpack.c.bf16 %v2267, %v2266
        %v2732 = vpack.c.bf16 %v2269, %v2268
        %v2733 = vpack.c.bf16 %v2271, %v2270
        %v2734 = vpack.c.bf16 %v2273, %v2272
        %v2735 = vpack.c.bf16 %v2275, %v2274
        %v2736 = vpack.c.bf16 %v2277, %v2276
        %v2737 = vpack.c.bf16 %v2279, %v2278
        %v2738 = vpack.c.bf16 %v2281, %v2280
        %v2739 = vpack.c.bf16 %v2283, %v2282
        %v2740 = vpack.c.bf16 %v2285, %v2284
        %v2741 = vpack.c.bf16 %v2287, %v2286
        %v2742 = vpack.c.bf16 %v2289, %v2288
        %v2743 = vpack.c.bf16 %v2291, %v2290
        %v2744 = vpack.c.bf16 %v2293, %v2292
        %v2745 = vpack.c.bf16 %v2295, %v2294
        %v2746 = vpack.c.bf16 %v2297, %v2296
        %v2747 = vpack.c.bf16 %v2299, %v2298
        %v2748 = vpack.c.bf16 %v2301, %v2300
        %v2749 = vpack.c.bf16 %v2303, %v2302
        %v2750 = vpack.c.bf16 %v2305, %v2304
        %v2751 = vpack.c.bf16 %v2307, %v2306
        %v2752 = vpack.c.bf16 %v2309, %v2308
        %v2753 = vpack.c.bf16 %v2311, %v2310
        %v2754 = vpack.c.bf16 %v2313, %v2312
        %v2755 = vpack.c.bf16 %v2315, %v2314
        %v2756 = vpack.c.bf16 %v2317, %v2316
        %v2757 = vpack.c.bf16 %v2319, %v2318
        %v2758 = vpack.c.bf16 %v2321, %v2320
        %v2759 = vpack.c.bf16 %v2323, %v2322
        %v2760 = vpack.c.bf16 %v2325, %v2324
        %v2761 = vpack.c.bf16 %v2327, %v2326
        %v2762 = vpack.c.bf16 %v2329, %v2328
        %v2763 = vpack.c.bf16 %v2331, %v2330
        %v2764 = vpack.c.bf16 %v2333, %v2332
        %v2765 = vpack.c.bf16 %v2335, %v2334
        %v2766 = vpack.c.bf16 %v2337, %v2336
        %v2767 = vpack.c.bf16 %v2339, %v2338
        %v2768 = vpack.c.bf16 %v2341, %v2340
        %v2769 = vpack.c.bf16 %v2343, %v2342
        %v2770 = vpack.c.bf16 %v2345, %v2344
        %v2771 = vpack.c.bf16 %v2347, %v2346
        %v2772 = vpack.c.bf16 %v2349, %v2348
        %v2773 = vpack.c.bf16 %v2351, %v2350
        %v2774 = vpack.c.bf16 %v2353, %v2352
        %v2775 = vpack.c.bf16 %v2355, %v2354
        %v2776 = vpack.c.bf16 %v2357, %v2356
        %v2777 = vpack.c.bf16 %v2359, %v2358
        %v2778 = vpack.c.bf16 %v2361, %v2360
        %v2779 = vpack.c.bf16 %v2363, %v2362
        %v2780 = vpack.c.bf16 %v2365, %v2364
        %v2781 = vpack.c.bf16 %v2367, %v2366
        %v2782 = vpack.c.bf16 %v2369, %v2368
        %v2783 = vpack.c.bf16 %v2371, %v2370
        %v2784 = vpack.c.bf16 %v2373, %v2372
        %v2785 = vpack.c.bf16 %v2375, %v2374
        %v2786 = vpack.c.bf16 %v2377, %v2376
        %v2787 = vpack.c.bf16 %v2379, %v2378
        %v2788 = vpack.c.bf16 %v2381, %v2380
        %v2789 = vpack.c.bf16 %v2383, %v2382
        %v2790 = vpack.c.bf16 %v2385, %v2384
        %v2791 = vpack.c.bf16 %v2387, %v2386
        %v2792 = vpack.c.bf16 %v2389, %v2388
        %v2793 = vpack.c.bf16 %v2391, %v2390
        %v2794 = vpack.c.bf16 %v2393, %v2392
        %v2795 = vpack.c.bf16 %v2395, %v2394
        %v2796 = vpack.c.bf16 %v2397, %v2396
        %v2797 = vpack.c.bf16 %v2399, %v2398
        %v2798 = vpack.c.bf16 %v2401, %v2400
        %v2799 = vpack.c.bf16 %v2403, %v2402
        %v2800 = vpack.c.bf16 %v2405, %v2404
        %v2801 = vpack.c.bf16 %v2407, %v2406
        %v2802 = vpack.c.bf16 %v2409, %v2408
        %v2803 = vpack.c.bf16 %v2411, %v2410
        %v2804 = vpack.c.bf16 %v2413, %v2412
        %v2805 = vpack.c.bf16 %v2415, %v2414
        %v2806 = vpack.c.bf16 %v2417, %v2416
        %v2807 = vpack.c.bf16 %v2419, %v2418
        %v2808 = vpack.c.bf16 %v2421, %v2420
        %v2809 = vpack.c.bf16 %v2423, %v2422
        %v2810 = vpack.c.bf16 %v2425, %v2424
        %v2811 = vpack.c.bf16 %v2427, %v2426
        %v2812 = vld [vmem:[#allocation6] sm:$0xf]
        %v2813 = vld [vmem:[#allocation6 + $0x4] sm:$0xf]
        %v2814 = vld [vmem:[#allocation6 + $0x8] sm:$0xf]
        %v2815 = vld [vmem:[#allocation6 + $0xc] sm:$0xf]
        %v2816 = vld [vmem:[#allocation6 + $0x10] sm:$0xf]
        %v2817 = vld [vmem:[#allocation6 + $0x14] sm:$0xf]
        %v2818 = vld [vmem:[#allocation6 + $0x18] sm:$0xf]
        %v2819 = vld [vmem:[#allocation6 + $0x1c] sm:$0xf]
        %v2820 = vld [vmem:[#allocation6 + $0x20] sm:$0xf]
        %v2821 = vld [vmem:[#allocation6 + $0x24] sm:$0xf]
        %v2822 = vld [vmem:[#allocation6 + $0x28] sm:$0xf]
        %v2823 = vld [vmem:[#allocation6 + $0x2c] sm:$0xf]
        %v2824 = vld [vmem:[#allocation6 + $0x30] sm:$0xf]
        %v2825 = vld [vmem:[#allocation6 + $0x34] sm:$0xf]
        %v2826 = vld [vmem:[#allocation6 + $0x38] sm:$0xf]
        %v2827 = vld [vmem:[#allocation6 + $0x3c] sm:$0xf]
        %v2844 = vunpack.c.l.b16 %v2812
        %v2845 = vunpack.c.l.b16 %v2813
        %v2846 = vunpack.c.l.b16 %v2814
        %v2847 = vunpack.c.l.b16 %v2815
        %v2848 = vunpack.c.l.b16 %v2816
        %v2849 = vunpack.c.l.b16 %v2817
        %v2850 = vunpack.c.l.b16 %v2818
        %v2851 = vunpack.c.l.b16 %v2819
        %v2852 = vunpack.c.l.b16 %v2820
        %v2853 = vunpack.c.l.b16 %v2821
        %v2854 = vunpack.c.l.b16 %v2822
        %v2855 = vunpack.c.l.b16 %v2823
        %v2856 = vunpack.c.l.b16 %v2824
        %v2857 = vunpack.c.l.b16 %v2825
        %v2858 = vunpack.c.l.b16 %v2826
        %v2859 = vunpack.c.l.b16 %v2827
        %v2860 = vpack.c.b16 %v2845, %v2844
        %v2861 = vpack.c.b16 %v2847, %v2846
        %v2862 = vpack.c.b16 %v2849, %v2848
        %v2863 = vpack.c.b16 %v2851, %v2850
        %v2864 = vpack.c.b16 %v2853, %v2852
        %v2865 = vpack.c.b16 %v2855, %v2854
        %v2866 = vpack.c.b16 %v2857, %v2856
        %v2867 = vpack.c.b16 %v2859, %v2858
        %2876 = vmatprep.subr.bf16.mxu0 0
        %2877 = vmatpush1.bf16.msra.mxu0 %v2860
        %2878 = vmatprep.subr.bf16.mxu0 0
        %2879 = vmatpush1.bf16.msra.mxu0 %v2861
        %2880 = vmatprep.subr.bf16.mxu0 0
        %2881 = vmatpush1.bf16.msra.mxu0 %v2862
        %2882 = vmatprep.subr.bf16.mxu0 0
        %2883 = vmatpush1.bf16.msra.mxu0 %v2863
        %2884 = vmatprep.subr.bf16.mxu0 0
        %2885 = vmatpush1.bf16.msra.mxu0 %v2864
        %2886 = vmatprep.subr.bf16.mxu0 0
        %2887 = vmatpush1.bf16.msra.mxu0 %v2865
        %2888 = vmatprep.subr.bf16.mxu0 0
        %2889 = vmatpush1.bf16.msra.mxu0 %v2866
        %2890 = vmatprep.subr.bf16.mxu0 0
        %2891 = vmatpush1.bf16.msra.mxu0 %v2867
        %2892 = vmatprep.subr.bf16.mxu0 0
        %2893 = vmatpush1.bf16.msra.mxu0 0
        %2894 = vmatprep.subr.bf16.mxu0 0
        %2895 = vmatpush1.bf16.msra.mxu0 0
        %2896 = vmatprep.subr.bf16.mxu0 0
        %2897 = vmatpush1.bf16.msra.mxu0 0
        %2898 = vmatprep.subr.bf16.mxu0 0
        %2899 = vmatpush1.bf16.msra.mxu0 0
        %2900 = vmatprep.subr.bf16.mxu0 0
        %2901 = vmatpush1.bf16.msra.mxu0 0
        %2902 = vmatprep.subr.bf16.mxu0 0
        %2903 = vmatpush1.bf16.msra.mxu0 0
        %2904 = vmatprep.subr.bf16.mxu0 0
        %2905 = vmatpush1.bf16.msra.mxu0 0
        %2906 = vmatprep.subr.bf16.mxu0 0
        %2907 = vmatpush1.bf16.msra.mxu0 0
        %2908 = vmatprep.mubr.bf16.mxu0 0
        %2909 = vmatmul.mubr.bf16.gmra.mrb[0].mxu0 %v2684
        %v2910 = vpop.f32.mrb[0].mxu0
        %v2911 = vadd.f32 0.0, %v2910
        %v2912 = vpop.f32.mrb[0].mxu0
        %v2913 = vpop.f32.mrb[0].mxu0
        %v2914 = vadd.f32 0.0, %v2913
        %v2915 = vpop.f32.mrb[0].mxu0
        %2916 = vmatprep.mubr.bf16.mxu0 0
        %2917 = vmatmul.mubr.bf16.gmra.mrb[0].mxu0 %v2685
        %v2918 = vpop.f32.mrb[0].mxu0
        %v2919 = vadd.f32 0.0, %v2918
        %v2920 = vpop.f32.mrb[0].mxu0
        %v2921 = vpop.f32.mrb[0].mxu0
        %v2922 = vadd.f32 0.0, %v2921
        %v2923 = vpop.f32.mrb[0].mxu0
        %2924 = vmatprep.mubr.bf16.mxu0 0
        %2925 = vmatmul.mubr.bf16.gmra.mrb[0].mxu0 %v2686
        %v2926 = vpop.f32.mrb[0].mxu0
        %v2927 = vadd.f32 0.0, %v2926
        %v2928 = vpop.f32.mrb[0].mxu0
        %v2929 = vpop.f32.mrb[0].mxu0
        %v2930 = vadd.f32 0.0, %v2929
        %v2931 = vpop.f32.mrb[0].mxu0
        %2932 = vmatprep.mubr.bf16.mxu0 0
        %2933 = vmatmul.mubr.bf16.gmra.mrb[0].mxu0 %v2687
        %v2934 = vpop.f32.mrb[0].mxu0
        %v2935 = vadd.f32 0.0, %v2934
        %v2936 = vpop.f32.mrb[0].mxu0
        %v2937 = vpop.f32.mrb[0].mxu0
        %v2938 = vadd.f32 0.0, %v2937
        %v2939 = vpop.f32.mrb[0].mxu0
        %2940 = vmatprep.mubr.bf16.mxu0 0
        %2941 = vmatmul.mubr.bf16.gmra.mrb[0].mxu0 %v2688
        %v2942 = vpop.f32.mrb[0].mxu0
        %v2943 = vadd.f32 0.0, %v2942
        %v2944 = vpop.f32.mrb[0].mxu0
        %v2945 = vpop.f32.mrb[0].mxu0
        %v2946 = vadd.f32 0.0, %v2945
        %v2947 = vpop.f32.mrb[0].mxu0
        %2948 = vmatprep.mubr.bf16.mxu0 0
        %2949 = vmatmul.mubr.bf16.gmra.mrb[0].mxu0 %v2689
        %v2950 = vpop.f32.mrb[0].mxu0
        %v2951 = vadd.f32 0.0, %v2950
        %v2952 = vpop.f32.mrb[0].mxu0
        %v2953 = vpop.f32.mrb[0].mxu0
        %v2954 = vadd.f32 0.0, %v2953
        %v2955 = vpop.f32.mrb[0].mxu0
        %2956 = vmatprep.mubr.bf16.mxu0 0
        %2957 = vmatmul.mubr.bf16.gmra.mrb[0].mxu0 %v2690
        %v2958 = vpop.f32.mrb[0].mxu0
        %v2959 = vadd.f32 0.0, %v2958
        %v2960 = vpop.f32.mrb[0].mxu0
        %v2961 = vpop.f32.mrb[0].mxu0
        %v2962 = vadd.f32 0.0, %v2961
        %v2963 = vpop.f32.mrb[0].mxu0
        %2964 = vmatprep.mubr.bf16.mxu0 0
        %2965 = vmatmul.mubr.bf16.gmra.mrb[0].mxu0 %v2691
        %v2966 = vpop.f32.mrb[0].mxu0
        %v2967 = vadd.f32 0.0, %v2966
        %v2968 = vpop.f32.mrb[0].mxu0
        %v2969 = vpop.f32.mrb[0].mxu0
        %v2970 = vadd.f32 0.0, %v2969
        %v2971 = vpop.f32.mrb[0].mxu0
        %2972 = vmatprep.mubr.bf16.mxu0 0
        %2973 = vmatmul.mubr.bf16.gmra.mrb[0].mxu0 %v2692
        %v2974 = vpop.f32.mrb[0].mxu0
        %v2975 = vadd.f32 0.0, %v2974
        %v2976 = vpop.f32.mrb[0].mxu0
        %v2977 = vpop.f32.mrb[0].mxu0
        %v2978 = vadd.f32 0.0, %v2977
        %v2979 = vpop.f32.mrb[0].mxu0
        %2980 = vmatprep.mubr.bf16.mxu0 0
        %2981 = vmatmul.mubr.bf16.gmra.mrb[0].mxu0 %v2693
        %v2982 = vpop.f32.mrb[0].mxu0
        %v2983 = vadd.f32 0.0, %v2982
        %v2984 = vpop.f32.mrb[0].mxu0
        %v2985 = vpop.f32.mrb[0].mxu0
        %v2986 = vadd.f32 0.0, %v2985
        %v2987 = vpop.f32.mrb[0].mxu0
        %2988 = vmatprep.mubr.bf16.mxu0 0
        %2989 = vmatmul.mubr.bf16.gmra.mrb[0].mxu0 %v2694
        %v2990 = vpop.f32.mrb[0].mxu0
        %v2991 = vadd.f32 0.0, %v2990
        %v2992 = vpop.f32.mrb[0].mxu0
        %v2993 = vpop.f32.mrb[0].mxu0
        %v2994 = vadd.f32 0.0, %v2993
        %v2995 = vpop.f32.mrb[0].mxu0
        %2996 = vmatprep.mubr.bf16.mxu0 0
        %2997 = vmatmul.mubr.bf16.gmra.mrb[0].mxu0 %v2695
        %v2998 = vpop.f32.mrb[0].mxu0
        %v2999 = vadd.f32 0.0, %v2998
        %v3000 = vpop.f32.mrb[0].mxu0
        %v3001 = vpop.f32.mrb[0].mxu0
        %v3002 = vadd.f32 0.0, %v3001
        %v3003 = vpop.f32.mrb[0].mxu0
        %3004 = vmatprep.mubr.bf16.mxu0 0
        %3005 = vmatmul.mubr.bf16.gmra.mrb[0].mxu0 %v2696
        %v3006 = vpop.f32.mrb[0].mxu0
        %v3007 = vadd.f32 0.0, %v3006
        %v3008 = vpop.f32.mrb[0].mxu0
        %v3009 = vpop.f32.mrb[0].mxu0
        %v3010 = vadd.f32 0.0, %v3009
        %v3011 = vpop.f32.mrb[0].mxu0
        %3012 = vmatprep.mubr.bf16.mxu0 0
        %3013 = vmatmul.mubr.bf16.gmra.mrb[0].mxu0 %v2697
        %v3014 = vpop.f32.mrb[0].mxu0
        %v3015 = vadd.f32 0.0, %v3014
        %v3016 = vpop.f32.mrb[0].mxu0
        %v3017 = vpop.f32.mrb[0].mxu0
        %v3018 = vadd.f32 0.0, %v3017
        %v3019 = vpop.f32.mrb[0].mxu0
        %3020 = vmatprep.mubr.bf16.mxu0 0
        %3021 = vmatmul.mubr.bf16.gmra.mrb[0].mxu0 %v2698
        %v3022 = vpop.f32.mrb[0].mxu0
        %v3023 = vadd.f32 0.0, %v3022
        %v3024 = vpop.f32.mrb[0].mxu0
        %v3025 = vpop.f32.mrb[0].mxu0
        %v3026 = vadd.f32 0.0, %v3025
        %v3027 = vpop.f32.mrb[0].mxu0
        %3028 = vmatprep.mubr.bf16.mxu0 0
        %3029 = vmatmul.mubr.bf16.gmra.mrb[0].mxu0 %v2699
        %v3030 = vpop.f32.mrb[0].mxu0
        %v3031 = vadd.f32 0.0, %v3030
        %v3032 = vpop.f32.mrb[0].mxu0
        %v3033 = vpop.f32.mrb[0].mxu0
        %v3034 = vadd.f32 0.0, %v3033
        %v3035 = vpop.f32.mrb[0].mxu0
        %3036 = vmatprep.mubr.bf16.mxu0 0
        %3037 = vmatmul.mubr.bf16.gmra.mrb[0].mxu0 %v2700
        %v3038 = vpop.f32.mrb[0].mxu0
        %v3039 = vadd.f32 0.0, %v3038
        %v3040 = vpop.f32.mrb[0].mxu0
        %v3041 = vpop.f32.mrb[0].mxu0
        %v3042 = vadd.f32 0.0, %v3041
        %v3043 = vpop.f32.mrb[0].mxu0
        %3044 = vmatprep.mubr.bf16.mxu0 0
        %3045 = vmatmul.mubr.bf16.gmra.mrb[0].mxu0 %v2701
        %v3046 = vpop.f32.mrb[0].mxu0
        %v3047 = vadd.f32 0.0, %v3046
        %v3048 = vpop.f32.mrb[0].mxu0
        %v3049 = vpop.f32.mrb[0].mxu0
        %v3050 = vadd.f32 0.0, %v3049
        %v3051 = vpop.f32.mrb[0].mxu0
        %3052 = vmatprep.mubr.bf16.mxu0 0
        %3053 = vmatmul.mubr.bf16.gmra.mrb[0].mxu0 %v2702
        %v3054 = vpop.f32.mrb[0].mxu0
        %v3055 = vadd.f32 0.0, %v3054
        %v3056 = vpop.f32.mrb[0].mxu0
        %v3057 = vpop.f32.mrb[0].mxu0
        %v3058 = vadd.f32 0.0, %v3057
        %v3059 = vpop.f32.mrb[0].mxu0
        %3060 = vmatprep.mubr.bf16.mxu0 0
        %3061 = vmatmul.mubr.bf16.gmra.mrb[0].mxu0 %v2703
        %v3062 = vpop.f32.mrb[0].mxu0
        %v3063 = vadd.f32 0.0, %v3062
        %v3064 = vpop.f32.mrb[0].mxu0
        %v3065 = vpop.f32.mrb[0].mxu0
        %v3066 = vadd.f32 0.0, %v3065
        %v3067 = vpop.f32.mrb[0].mxu0
        %3068 = vmatprep.mubr.bf16.mxu0 0
        %3069 = vmatmul.mubr.bf16.gmra.mrb[0].mxu0 %v2704
        %v3070 = vpop.f32.mrb[0].mxu0
        %v3071 = vadd.f32 0.0, %v3070
        %v3072 = vpop.f32.mrb[0].mxu0
        %v3073 = vpop.f32.mrb[0].mxu0
        %v3074 = vadd.f32 0.0, %v3073
        %v3075 = vpop.f32.mrb[0].mxu0
        %3076 = vmatprep.mubr.bf16.mxu0 0
        %3077 = vmatmul.mubr.bf16.gmra.mrb[0].mxu0 %v2705
        %v3078 = vpop.f32.mrb[0].mxu0
        %v3079 = vadd.f32 0.0, %v3078
        %v3080 = vpop.f32.mrb[0].mxu0
        %v3081 = vpop.f32.mrb[0].mxu0
        %v3082 = vadd.f32 0.0, %v3081
        %v3083 = vpop.f32.mrb[0].mxu0
        %3084 = vmatprep.mubr.bf16.mxu0 0
        %3085 = vmatmul.mubr.bf16.gmra.mrb[0].mxu0 %v2706
        %v3086 = vpop.f32.mrb[0].mxu0
        %v3087 = vadd.f32 0.0, %v3086
        %v3088 = vpop.f32.mrb[0].mxu0
        %v3089 = vpop.f32.mrb[0].mxu0
        %v3090 = vadd.f32 0.0, %v3089
        %v3091 = vpop.f32.mrb[0].mxu0
        %3092 = vmatprep.mubr.bf16.mxu0 0
        %3093 = vmatmul.mubr.bf16.gmra.mrb[0].mxu0 %v2707
        %v3094 = vpop.f32.mrb[0].mxu0
        %v3095 = vadd.f32 0.0, %v3094
        %v3096 = vpop.f32.mrb[0].mxu0
        %v3097 = vpop.f32.mrb[0].mxu0
        %v3098 = vadd.f32 0.0, %v3097
        %v3099 = vpop.f32.mrb[0].mxu0
        %3100 = vmatprep.mubr.bf16.mxu0 0
        %3101 = vmatmul.mubr.bf16.gmra.mrb[0].mxu0 %v2708
        %v3102 = vpop.f32.mrb[0].mxu0
        %v3103 = vadd.f32 0.0, %v3102
        %v3104 = vpop.f32.mrb[0].mxu0
        %v3105 = vpop.f32.mrb[0].mxu0
        %v3106 = vadd.f32 0.0, %v3105
        %v3107 = vpop.f32.mrb[0].mxu0
        %3108 = vmatprep.mubr.bf16.mxu0 0
        %3109 = vmatmul.mubr.bf16.gmra.mrb[0].mxu0 %v2709
        %v3110 = vpop.f32.mrb[0].mxu0
        %v3111 = vadd.f32 0.0, %v3110
        %v3112 = vpop.f32.mrb[0].mxu0
        %v3113 = vpop.f32.mrb[0].mxu0
        %v3114 = vadd.f32 0.0, %v3113
        %v3115 = vpop.f32.mrb[0].mxu0
        %3116 = vmatprep.mubr.bf16.mxu0 0
        %3117 = vmatmul.mubr.bf16.gmra.mrb[0].mxu0 %v2710
        %v3118 = vpop.f32.mrb[0].mxu0
        %v3119 = vadd.f32 0.0, %v3118
        %v3120 = vpop.f32.mrb[0].mxu0
        %v3121 = vpop.f32.mrb[0].mxu0
        %v3122 = vadd.f32 0.0, %v3121
        %v3123 = vpop.f32.mrb[0].mxu0
        %3124 = vmatprep.mubr.bf16.mxu0 0
        %3125 = vmatmul.mubr.bf16.gmra.mrb[0].mxu0 %v2711
        %v3126 = vpop.f32.mrb[0].mxu0
        %v3127 = vadd.f32 0.0, %v3126
        %v3128 = vpop.f32.mrb[0].mxu0
        %v3129 = vpop.f32.mrb[0].mxu0
        %v3130 = vadd.f32 0.0, %v3129
        %v3131 = vpop.f32.mrb[0].mxu0
        %3132 = vmatprep.mubr.bf16.mxu0 0
        %3133 = vmatmul.mubr.bf16.gmra.mrb[0].mxu0 %v2712
        %v3134 = vpop.f32.mrb[0].mxu0
        %v3135 = vadd.f32 0.0, %v3134
        %v3136 = vpop.f32.mrb[0].mxu0
        %v3137 = vpop.f32.mrb[0].mxu0
        %v3138 = vadd.f32 0.0, %v3137
        %v3139 = vpop.f32.mrb[0].mxu0
        %3140 = vmatprep.mubr.bf16.mxu0 0
        %3141 = vmatmul.mubr.bf16.gmra.mrb[0].mxu0 %v2713
        %v3142 = vpop.f32.mrb[0].mxu0
        %v3143 = vadd.f32 0.0, %v3142
        %v3144 = vpop.f32.mrb[0].mxu0
        %v3145 = vpop.f32.mrb[0].mxu0
        %v3146 = vadd.f32 0.0, %v3145
        %v3147 = vpop.f32.mrb[0].mxu0
        %3148 = vmatprep.mubr.bf16.mxu0 0
        %3149 = vmatmul.mubr.bf16.gmra.mrb[0].mxu0 %v2714
        %v3150 = vpop.f32.mrb[0].mxu0
        %v3151 = vadd.f32 0.0, %v3150
        %v3152 = vpop.f32.mrb[0].mxu0
        %v3153 = vpop.f32.mrb[0].mxu0
        %v3154 = vadd.f32 0.0, %v3153
        %v3155 = vpop.f32.mrb[0].mxu0
        %3156 = vmatprep.mubr.bf16.mxu0 0
        %3157 = vmatmul.mubr.bf16.gmra.mrb[0].mxu0 %v2715
        %v3158 = vpop.f32.mrb[0].mxu0
        %v3159 = vadd.f32 0.0, %v3158
        %v3160 = vpop.f32.mrb[0].mxu0
        %v3161 = vpop.f32.mrb[0].mxu0
        %v3162 = vadd.f32 0.0, %v3161
        %v3163 = vpop.f32.mrb[0].mxu0
        %3164 = vmatprep.mubr.bf16.mxu0 0
        %3165 = vmatmul.mubr.bf16.gmra.mrb[0].mxu0 %v2716
        %v3166 = vpop.f32.mrb[0].mxu0
        %v3167 = vadd.f32 0.0, %v3166
        %v3168 = vpop.f32.mrb[0].mxu0
        %v3169 = vpop.f32.mrb[0].mxu0
        %v3170 = vadd.f32 0.0, %v3169
        %v3171 = vpop.f32.mrb[0].mxu0
        %3172 = vmatprep.mubr.bf16.mxu0 0
        %3173 = vmatmul.mubr.bf16.gmra.mrb[0].mxu0 %v2717
        %v3174 = vpop.f32.mrb[0].mxu0
        %v3175 = vadd.f32 0.0, %v3174
        %v3176 = vpop.f32.mrb[0].mxu0
        %v3177 = vpop.f32.mrb[0].mxu0
        %v3178 = vadd.f32 0.0, %v3177
        %v3179 = vpop.f32.mrb[0].mxu0
        %3180 = vmatprep.mubr.bf16.mxu0 0
        %3181 = vmatmul.mubr.bf16.gmra.mrb[0].mxu0 %v2718
        %v3182 = vpop.f32.mrb[0].mxu0
        %v3183 = vadd.f32 0.0, %v3182
        %v3184 = vpop.f32.mrb[0].mxu0
        %v3185 = vpop.f32.mrb[0].mxu0
        %v3186 = vadd.f32 0.0, %v3185
        %v3187 = vpop.f32.mrb[0].mxu0
        %3188 = vmatprep.mubr.bf16.mxu0 0
        %3189 = vmatmul.mubr.bf16.gmra.mrb[0].mxu0 %v2719
        %v3190 = vpop.f32.mrb[0].mxu0
        %v3191 = vadd.f32 0.0, %v3190
        %v3192 = vpop.f32.mrb[0].mxu0
        %v3193 = vpop.f32.mrb[0].mxu0
        %v3194 = vadd.f32 0.0, %v3193
        %v3195 = vpop.f32.mrb[0].mxu0
        %3196 = vmatprep.mubr.bf16.mxu0 0
        %3197 = vmatmul.mubr.bf16.gmra.mrb[0].mxu0 %v2720
        %v3198 = vpop.f32.mrb[0].mxu0
        %v3199 = vadd.f32 0.0, %v3198
        %v3200 = vpop.f32.mrb[0].mxu0
        %v3201 = vpop.f32.mrb[0].mxu0
        %v3202 = vadd.f32 0.0, %v3201
        %v3203 = vpop.f32.mrb[0].mxu0
        %3204 = vmatprep.mubr.bf16.mxu0 0
        %3205 = vmatmul.mubr.bf16.gmra.mrb[0].mxu0 %v2721
        %v3206 = vpop.f32.mrb[0].mxu0
        %v3207 = vadd.f32 0.0, %v3206
        %v3208 = vpop.f32.mrb[0].mxu0
        %v3209 = vpop.f32.mrb[0].mxu0
        %v3210 = vadd.f32 0.0, %v3209
        %v3211 = vpop.f32.mrb[0].mxu0
        %3212 = vmatprep.mubr.bf16.mxu0 0
        %3213 = vmatmul.mubr.bf16.gmra.mrb[0].mxu0 %v2722
        %v3214 = vpop.f32.mrb[0].mxu0
        %v3215 = vadd.f32 0.0, %v3214
        %v3216 = vpop.f32.mrb[0].mxu0
        %v3217 = vpop.f32.mrb[0].mxu0
        %v3218 = vadd.f32 0.0, %v3217
        %v3219 = vpop.f32.mrb[0].mxu0
        %3220 = vmatprep.mubr.bf16.mxu0 0
        %3221 = vmatmul.mubr.bf16.gmra.mrb[0].mxu0 %v2723
        %v3222 = vpop.f32.mrb[0].mxu0
        %v3223 = vadd.f32 0.0, %v3222
        %v3224 = vpop.f32.mrb[0].mxu0
        %v3225 = vpop.f32.mrb[0].mxu0
        %v3226 = vadd.f32 0.0, %v3225
        %v3227 = vpop.f32.mrb[0].mxu0
        %3228 = vmatprep.mubr.bf16.mxu0 0
        %3229 = vmatmul.mubr.bf16.gmra.mrb[0].mxu0 %v2724
        %v3230 = vpop.f32.mrb[0].mxu0
        %v3231 = vadd.f32 0.0, %v3230
        %v3232 = vpop.f32.mrb[0].mxu0
        %v3233 = vpop.f32.mrb[0].mxu0
        %v3234 = vadd.f32 0.0, %v3233
        %v3235 = vpop.f32.mrb[0].mxu0
        %3236 = vmatprep.mubr.bf16.mxu0 0
        %3237 = vmatmul.mubr.bf16.gmra.mrb[0].mxu0 %v2725
        %v3238 = vpop.f32.mrb[0].mxu0
        %v3239 = vadd.f32 0.0, %v3238
        %v3240 = vpop.f32.mrb[0].mxu0
        %v3241 = vpop.f32.mrb[0].mxu0
        %v3242 = vadd.f32 0.0, %v3241
        %v3243 = vpop.f32.mrb[0].mxu0
        %3244 = vmatprep.mubr.bf16.mxu0 0
        %3245 = vmatmul.mubr.bf16.gmra.mrb[0].mxu0 %v2726
        %v3246 = vpop.f32.mrb[0].mxu0
        %v3247 = vadd.f32 0.0, %v3246
        %v3248 = vpop.f32.mrb[0].mxu0
        %v3249 = vpop.f32.mrb[0].mxu0
        %v3250 = vadd.f32 0.0, %v3249
        %v3251 = vpop.f32.mrb[0].mxu0
        %3252 = vmatprep.mubr.bf16.mxu0 0
        %3253 = vmatmul.mubr.bf16.gmra.mrb[0].mxu0 %v2727
        %v3254 = vpop.f32.mrb[0].mxu0
        %v3255 = vadd.f32 0.0, %v3254
        %v3256 = vpop.f32.mrb[0].mxu0
        %v3257 = vpop.f32.mrb[0].mxu0
        %v3258 = vadd.f32 0.0, %v3257
        %v3259 = vpop.f32.mrb[0].mxu0
        %3260 = vmatprep.mubr.bf16.mxu0 0
        %3261 = vmatmul.mubr.bf16.gmra.mrb[0].mxu0 %v2728
        %v3262 = vpop.f32.mrb[0].mxu0
        %v3263 = vadd.f32 0.0, %v3262
        %v3264 = vpop.f32.mrb[0].mxu0
        %v3265 = vpop.f32.mrb[0].mxu0
        %v3266 = vadd.f32 0.0, %v3265
        %v3267 = vpop.f32.mrb[0].mxu0
        %3268 = vmatprep.mubr.bf16.mxu0 0
        %3269 = vmatmul.mubr.bf16.gmra.mrb[0].mxu0 %v2729
        %v3270 = vpop.f32.mrb[0].mxu0
        %v3271 = vadd.f32 0.0, %v3270
        %v3272 = vpop.f32.mrb[0].mxu0
        %v3273 = vpop.f32.mrb[0].mxu0
        %v3274 = vadd.f32 0.0, %v3273
        %v3275 = vpop.f32.mrb[0].mxu0
        %3276 = vmatprep.mubr.bf16.mxu0 0
        %3277 = vmatmul.mubr.bf16.gmra.mrb[0].mxu0 %v2730
        %v3278 = vpop.f32.mrb[0].mxu0
        %v3279 = vadd.f32 0.0, %v3278
        %v3280 = vpop.f32.mrb[0].mxu0
        %v3281 = vpop.f32.mrb[0].mxu0
        %v3282 = vadd.f32 0.0, %v3281
        %v3283 = vpop.f32.mrb[0].mxu0
        %3284 = vmatprep.mubr.bf16.mxu0 0
        %3285 = vmatmul.mubr.bf16.gmra.mrb[0].mxu0 %v2731
        %v3286 = vpop.f32.mrb[0].mxu0
        %v3287 = vadd.f32 0.0, %v3286
        %v3288 = vpop.f32.mrb[0].mxu0
        %v3289 = vpop.f32.mrb[0].mxu0
        %v3290 = vadd.f32 0.0, %v3289
        %v3291 = vpop.f32.mrb[0].mxu0
        %3292 = vmatprep.mubr.bf16.mxu0 0
        %3293 = vmatmul.mubr.bf16.gmra.mrb[0].mxu0 %v2732
        %v3294 = vpop.f32.mrb[0].mxu0
        %v3295 = vadd.f32 0.0, %v3294
        %v3296 = vpop.f32.mrb[0].mxu0
        %v3297 = vpop.f32.mrb[0].mxu0
        %v3298 = vadd.f32 0.0, %v3297
        %v3299 = vpop.f32.mrb[0].mxu0
        %3300 = vmatprep.mubr.bf16.mxu0 0
        %3301 = vmatmul.mubr.bf16.gmra.mrb[0].mxu0 %v2733
        %v3302 = vpop.f32.mrb[0].mxu0
        %v3303 = vadd.f32 0.0, %v3302
        %v3304 = vpop.f32.mrb[0].mxu0
        %v3305 = vpop.f32.mrb[0].mxu0
        %v3306 = vadd.f32 0.0, %v3305
        %v3307 = vpop.f32.mrb[0].mxu0
        %3308 = vmatprep.mubr.bf16.mxu0 0
        %3309 = vmatmul.mubr.bf16.gmra.mrb[0].mxu0 %v2734
        %v3310 = vpop.f32.mrb[0].mxu0
        %v3311 = vadd.f32 0.0, %v3310
        %v3312 = vpop.f32.mrb[0].mxu0
        %v3313 = vpop.f32.mrb[0].mxu0
        %v3314 = vadd.f32 0.0, %v3313
        %v3315 = vpop.f32.mrb[0].mxu0
        %3316 = vmatprep.mubr.bf16.mxu0 0
        %3317 = vmatmul.mubr.bf16.gmra.mrb[0].mxu0 %v2735
        %v3318 = vpop.f32.mrb[0].mxu0
        %v3319 = vadd.f32 0.0, %v3318
        %v3320 = vpop.f32.mrb[0].mxu0
        %v3321 = vpop.f32.mrb[0].mxu0
        %v3322 = vadd.f32 0.0, %v3321
        %v3323 = vpop.f32.mrb[0].mxu0
        %3324 = vmatprep.mubr.bf16.mxu0 0
        %3325 = vmatmul.mubr.bf16.gmra.mrb[0].mxu0 %v2736
        %v3326 = vpop.f32.mrb[0].mxu0
        %v3327 = vadd.f32 0.0, %v3326
        %v3328 = vpop.f32.mrb[0].mxu0
        %v3329 = vpop.f32.mrb[0].mxu0
        %v3330 = vadd.f32 0.0, %v3329
        %v3331 = vpop.f32.mrb[0].mxu0
        %3332 = vmatprep.mubr.bf16.mxu0 0
        %3333 = vmatmul.mubr.bf16.gmra.mrb[0].mxu0 %v2737
        %v3334 = vpop.f32.mrb[0].mxu0
        %v3335 = vadd.f32 0.0, %v3334
        %v3336 = vpop.f32.mrb[0].mxu0
        %v3337 = vpop.f32.mrb[0].mxu0
        %v3338 = vadd.f32 0.0, %v3337
        %v3339 = vpop.f32.mrb[0].mxu0
        %3340 = vmatprep.mubr.bf16.mxu0 0
        %3341 = vmatmul.mubr.bf16.gmra.mrb[0].mxu0 %v2738
        %v3342 = vpop.f32.mrb[0].mxu0
        %v3343 = vadd.f32 0.0, %v3342
        %v3344 = vpop.f32.mrb[0].mxu0
        %v3345 = vpop.f32.mrb[0].mxu0
        %v3346 = vadd.f32 0.0, %v3345
        %v3347 = vpop.f32.mrb[0].mxu0
        %3348 = vmatprep.mubr.bf16.mxu0 0
        %3349 = vmatmul.mubr.bf16.gmra.mrb[0].mxu0 %v2739
        %v3350 = vpop.f32.mrb[0].mxu0
        %v3351 = vadd.f32 0.0, %v3350
        %v3352 = vpop.f32.mrb[0].mxu0
        %v3353 = vpop.f32.mrb[0].mxu0
        %v3354 = vadd.f32 0.0, %v3353
        %v3355 = vpop.f32.mrb[0].mxu0
        %3356 = vmatprep.mubr.bf16.mxu0 0
        %3357 = vmatmul.mubr.bf16.gmra.mrb[0].mxu0 %v2740
        %v3358 = vpop.f32.mrb[0].mxu0
        %v3359 = vadd.f32 0.0, %v3358
        %v3360 = vpop.f32.mrb[0].mxu0
        %v3361 = vpop.f32.mrb[0].mxu0
        %v3362 = vadd.f32 0.0, %v3361
        %v3363 = vpop.f32.mrb[0].mxu0
        %3364 = vmatprep.mubr.bf16.mxu0 0
        %3365 = vmatmul.mubr.bf16.gmra.mrb[0].mxu0 %v2741
        %v3366 = vpop.f32.mrb[0].mxu0
        %v3367 = vadd.f32 0.0, %v3366
        %v3368 = vpop.f32.mrb[0].mxu0
        %v3369 = vpop.f32.mrb[0].mxu0
        %v3370 = vadd.f32 0.0, %v3369
        %v3371 = vpop.f32.mrb[0].mxu0
        %3372 = vmatprep.mubr.bf16.mxu0 0
        %3373 = vmatmul.mubr.bf16.gmra.mrb[0].mxu0 %v2742
        %v3374 = vpop.f32.mrb[0].mxu0
        %v3375 = vadd.f32 0.0, %v3374
        %v3376 = vpop.f32.mrb[0].mxu0
        %v3377 = vpop.f32.mrb[0].mxu0
        %v3378 = vadd.f32 0.0, %v3377
        %v3379 = vpop.f32.mrb[0].mxu0
        %3380 = vmatprep.mubr.bf16.mxu0 0
        %3381 = vmatmul.mubr.bf16.gmra.mrb[0].mxu0 %v2743
        %v3382 = vpop.f32.mrb[0].mxu0
        %v3383 = vadd.f32 0.0, %v3382
        %v3384 = vpop.f32.mrb[0].mxu0
        %v3385 = vpop.f32.mrb[0].mxu0
        %v3386 = vadd.f32 0.0, %v3385
        %v3387 = vpop.f32.mrb[0].mxu0
        %3388 = vmatprep.mubr.bf16.mxu0 0
        %3389 = vmatmul.mubr.bf16.gmra.mrb[0].mxu0 %v2744
        %v3390 = vpop.f32.mrb[0].mxu0
        %v3391 = vadd.f32 0.0, %v3390
        %v3392 = vpop.f32.mrb[0].mxu0
        %v3393 = vpop.f32.mrb[0].mxu0
        %v3394 = vadd.f32 0.0, %v3393
        %v3395 = vpop.f32.mrb[0].mxu0
        %3396 = vmatprep.mubr.bf16.mxu0 0
        %3397 = vmatmul.mubr.bf16.gmra.mrb[0].mxu0 %v2745
        %v3398 = vpop.f32.mrb[0].mxu0
        %v3399 = vadd.f32 0.0, %v3398
        %v3400 = vpop.f32.mrb[0].mxu0
        %v3401 = vpop.f32.mrb[0].mxu0
        %v3402 = vadd.f32 0.0, %v3401
        %v3403 = vpop.f32.mrb[0].mxu0
        %3404 = vmatprep.mubr.bf16.mxu0 0
        %3405 = vmatmul.mubr.bf16.gmra.mrb[0].mxu0 %v2746
        %v3406 = vpop.f32.mrb[0].mxu0
        %v3407 = vadd.f32 0.0, %v3406
        %v3408 = vpop.f32.mrb[0].mxu0
        %v3409 = vpop.f32.mrb[0].mxu0
        %v3410 = vadd.f32 0.0, %v3409
        %v3411 = vpop.f32.mrb[0].mxu0
        %3412 = vmatprep.mubr.bf16.mxu0 0
        %3413 = vmatmul.mubr.bf16.gmra.mrb[0].mxu0 %v2747
        %v3414 = vpop.f32.mrb[0].mxu0
        %v3415 = vadd.f32 0.0, %v3414
        %v3416 = vpop.f32.mrb[0].mxu0
        %v3417 = vpop.f32.mrb[0].mxu0
        %v3418 = vadd.f32 0.0, %v3417
        %v3419 = vpop.f32.mrb[0].mxu0
        %3420 = vmatprep.mubr.bf16.mxu0 0
        %3421 = vmatmul.mubr.bf16.gmra.mrb[0].mxu0 %v2748
        %v3422 = vpop.f32.mrb[0].mxu0
        %v3423 = vadd.f32 0.0, %v3422
        %v3424 = vpop.f32.mrb[0].mxu0
        %v3425 = vpop.f32.mrb[0].mxu0
        %v3426 = vadd.f32 0.0, %v3425
        %v3427 = vpop.f32.mrb[0].mxu0
        %3428 = vmatprep.mubr.bf16.mxu0 0
        %3429 = vmatmul.mubr.bf16.gmra.mrb[0].mxu0 %v2749
        %v3430 = vpop.f32.mrb[0].mxu0
        %v3431 = vadd.f32 0.0, %v3430
        %v3432 = vpop.f32.mrb[0].mxu0
        %v3433 = vpop.f32.mrb[0].mxu0
        %v3434 = vadd.f32 0.0, %v3433
        %v3435 = vpop.f32.mrb[0].mxu0
        %3436 = vmatprep.mubr.bf16.mxu0 0
        %3437 = vmatmul.mubr.bf16.gmra.mrb[0].mxu0 %v2750
        %v3438 = vpop.f32.mrb[0].mxu0
        %v3439 = vadd.f32 0.0, %v3438
        %v3440 = vpop.f32.mrb[0].mxu0
        %v3441 = vpop.f32.mrb[0].mxu0
        %v3442 = vadd.f32 0.0, %v3441
        %v3443 = vpop.f32.mrb[0].mxu0
        %3444 = vmatprep.mubr.bf16.mxu0 0
        %3445 = vmatmul.mubr.bf16.gmra.mrb[0].mxu0 %v2751
        %v3446 = vpop.f32.mrb[0].mxu0
        %v3447 = vadd.f32 0.0, %v3446
        %v3448 = vpop.f32.mrb[0].mxu0
        %v3449 = vpop.f32.mrb[0].mxu0
        %v3450 = vadd.f32 0.0, %v3449
        %v3451 = vpop.f32.mrb[0].mxu0
        %3452 = vmatprep.mubr.bf16.mxu0 0
        %3453 = vmatmul.mubr.bf16.gmra.mrb[0].mxu0 %v2752
        %v3454 = vpop.f32.mrb[0].mxu0
        %v3455 = vadd.f32 0.0, %v3454
        %v3456 = vpop.f32.mrb[0].mxu0
        %v3457 = vpop.f32.mrb[0].mxu0
        %v3458 = vadd.f32 0.0, %v3457
        %v3459 = vpop.f32.mrb[0].mxu0
        %3460 = vmatprep.mubr.bf16.mxu0 0
        %3461 = vmatmul.mubr.bf16.gmra.mrb[0].mxu0 %v2753
        %v3462 = vpop.f32.mrb[0].mxu0
        %v3463 = vadd.f32 0.0, %v3462
        %v3464 = vpop.f32.mrb[0].mxu0
        %v3465 = vpop.f32.mrb[0].mxu0
        %v3466 = vadd.f32 0.0, %v3465
        %v3467 = vpop.f32.mrb[0].mxu0
        %3468 = vmatprep.mubr.bf16.mxu0 0
        %3469 = vmatmul.mubr.bf16.gmra.mrb[0].mxu0 %v2754
        %v3470 = vpop.f32.mrb[0].mxu0
        %v3471 = vadd.f32 0.0, %v3470
        %v3472 = vpop.f32.mrb[0].mxu0
        %v3473 = vpop.f32.mrb[0].mxu0
        %v3474 = vadd.f32 0.0, %v3473
        %v3475 = vpop.f32.mrb[0].mxu0
        %3476 = vmatprep.mubr.bf16.mxu0 0
        %3477 = vmatmul.mubr.bf16.gmra.mrb[0].mxu0 %v2755
        %v3478 = vpop.f32.mrb[0].mxu0
        %v3479 = vadd.f32 0.0, %v3478
        %v3480 = vpop.f32.mrb[0].mxu0
        %v3481 = vpop.f32.mrb[0].mxu0
        %v3482 = vadd.f32 0.0, %v3481
        %v3483 = vpop.f32.mrb[0].mxu0
        %3484 = vmatprep.mubr.bf16.mxu0 0
        %3485 = vmatmul.mubr.bf16.gmra.mrb[0].mxu0 %v2756
        %v3486 = vpop.f32.mrb[0].mxu0
        %v3487 = vadd.f32 0.0, %v3486
        %v3488 = vpop.f32.mrb[0].mxu0
        %v3489 = vpop.f32.mrb[0].mxu0
        %v3490 = vadd.f32 0.0, %v3489
        %v3491 = vpop.f32.mrb[0].mxu0
        %3492 = vmatprep.mubr.bf16.mxu0 0
        %3493 = vmatmul.mubr.bf16.gmra.mrb[0].mxu0 %v2757
        %v3494 = vpop.f32.mrb[0].mxu0
        %v3495 = vadd.f32 0.0, %v3494
        %v3496 = vpop.f32.mrb[0].mxu0
        %v3497 = vpop.f32.mrb[0].mxu0
        %v3498 = vadd.f32 0.0, %v3497
        %v3499 = vpop.f32.mrb[0].mxu0
        %3500 = vmatprep.mubr.bf16.mxu0 0
        %3501 = vmatmul.mubr.bf16.gmra.mrb[0].mxu0 %v2758
        %v3502 = vpop.f32.mrb[0].mxu0
        %v3503 = vadd.f32 0.0, %v3502
        %v3504 = vpop.f32.mrb[0].mxu0
        %v3505 = vpop.f32.mrb[0].mxu0
        %v3506 = vadd.f32 0.0, %v3505
        %v3507 = vpop.f32.mrb[0].mxu0
        %3508 = vmatprep.mubr.bf16.mxu0 0
        %3509 = vmatmul.mubr.bf16.gmra.mrb[0].mxu0 %v2759
        %v3510 = vpop.f32.mrb[0].mxu0
        %v3511 = vadd.f32 0.0, %v3510
        %v3512 = vpop.f32.mrb[0].mxu0
        %v3513 = vpop.f32.mrb[0].mxu0
        %v3514 = vadd.f32 0.0, %v3513
        %v3515 = vpop.f32.mrb[0].mxu0
        %3516 = vmatprep.mubr.bf16.mxu0 0
        %3517 = vmatmul.mubr.bf16.gmra.mrb[0].mxu0 %v2760
        %v3518 = vpop.f32.mrb[0].mxu0
        %v3519 = vadd.f32 0.0, %v3518
        %v3520 = vpop.f32.mrb[0].mxu0
        %v3521 = vpop.f32.mrb[0].mxu0
        %v3522 = vadd.f32 0.0, %v3521
        %v3523 = vpop.f32.mrb[0].mxu0
        %3524 = vmatprep.mubr.bf16.mxu0 0
        %3525 = vmatmul.mubr.bf16.gmra.mrb[0].mxu0 %v2761
        %v3526 = vpop.f32.mrb[0].mxu0
        %v3527 = vadd.f32 0.0, %v3526
        %v3528 = vpop.f32.mrb[0].mxu0
        %v3529 = vpop.f32.mrb[0].mxu0
        %v3530 = vadd.f32 0.0, %v3529
        %v3531 = vpop.f32.mrb[0].mxu0
        %3532 = vmatprep.mubr.bf16.mxu0 0
        %3533 = vmatmul.mubr.bf16.gmra.mrb[0].mxu0 %v2762
        %v3534 = vpop.f32.mrb[0].mxu0
        %v3535 = vadd.f32 0.0, %v3534
        %v3536 = vpop.f32.mrb[0].mxu0
        %v3537 = vpop.f32.mrb[0].mxu0
        %v3538 = vadd.f32 0.0, %v3537
        %v3539 = vpop.f32.mrb[0].mxu0
        %3540 = vmatprep.mubr.bf16.mxu0 0
        %3541 = vmatmul.mubr.bf16.gmra.mrb[0].mxu0 %v2763
        %v3542 = vpop.f32.mrb[0].mxu0
        %v3543 = vadd.f32 0.0, %v3542
        %v3544 = vpop.f32.mrb[0].mxu0
        %v3545 = vpop.f32.mrb[0].mxu0
        %v3546 = vadd.f32 0.0, %v3545
        %v3547 = vpop.f32.mrb[0].mxu0
        %3548 = vmatprep.mubr.bf16.mxu0 0
        %3549 = vmatmul.mubr.bf16.gmra.mrb[0].mxu0 %v2764
        %v3550 = vpop.f32.mrb[0].mxu0
        %v3551 = vadd.f32 0.0, %v3550
        %v3552 = vpop.f32.mrb[0].mxu0
        %v3553 = vpop.f32.mrb[0].mxu0
        %v3554 = vadd.f32 0.0, %v3553
        %v3555 = vpop.f32.mrb[0].mxu0
        %3556 = vmatprep.mubr.bf16.mxu0 0
        %3557 = vmatmul.mubr.bf16.gmra.mrb[0].mxu0 %v2765
        %v3558 = vpop.f32.mrb[0].mxu0
        %v3559 = vadd.f32 0.0, %v3558
        %v3560 = vpop.f32.mrb[0].mxu0
        %v3561 = vpop.f32.mrb[0].mxu0
        %v3562 = vadd.f32 0.0, %v3561
        %v3563 = vpop.f32.mrb[0].mxu0
        %3564 = vmatprep.mubr.bf16.mxu0 0
        %3565 = vmatmul.mubr.bf16.gmra.mrb[0].mxu0 %v2766
        %v3566 = vpop.f32.mrb[0].mxu0
        %v3567 = vadd.f32 0.0, %v3566
        %v3568 = vpop.f32.mrb[0].mxu0
        %v3569 = vpop.f32.mrb[0].mxu0
        %v3570 = vadd.f32 0.0, %v3569
        %v3571 = vpop.f32.mrb[0].mxu0
        %3572 = vmatprep.mubr.bf16.mxu0 0
        %3573 = vmatmul.mubr.bf16.gmra.mrb[0].mxu0 %v2767
        %v3574 = vpop.f32.mrb[0].mxu0
        %v3575 = vadd.f32 0.0, %v3574
        %v3576 = vpop.f32.mrb[0].mxu0
        %v3577 = vpop.f32.mrb[0].mxu0
        %v3578 = vadd.f32 0.0, %v3577
        %v3579 = vpop.f32.mrb[0].mxu0
        %3580 = vmatprep.mubr.bf16.mxu0 0
        %3581 = vmatmul.mubr.bf16.gmra.mrb[0].mxu0 %v2768
        %v3582 = vpop.f32.mrb[0].mxu0
        %v3583 = vadd.f32 0.0, %v3582
        %v3584 = vpop.f32.mrb[0].mxu0
        %v3585 = vpop.f32.mrb[0].mxu0
        %v3586 = vadd.f32 0.0, %v3585
        %v3587 = vpop.f32.mrb[0].mxu0
        %3588 = vmatprep.mubr.bf16.mxu0 0
        %3589 = vmatmul.mubr.bf16.gmra.mrb[0].mxu0 %v2769
        %v3590 = vpop.f32.mrb[0].mxu0
        %v3591 = vadd.f32 0.0, %v3590
        %v3592 = vpop.f32.mrb[0].mxu0
        %v3593 = vpop.f32.mrb[0].mxu0
        %v3594 = vadd.f32 0.0, %v3593
        %v3595 = vpop.f32.mrb[0].mxu0
        %3596 = vmatprep.mubr.bf16.mxu0 0
        %3597 = vmatmul.mubr.bf16.gmra.mrb[0].mxu0 %v2770
        %v3598 = vpop.f32.mrb[0].mxu0
        %v3599 = vadd.f32 0.0, %v3598
        %v3600 = vpop.f32.mrb[0].mxu0
        %v3601 = vpop.f32.mrb[0].mxu0
        %v3602 = vadd.f32 0.0, %v3601
        %v3603 = vpop.f32.mrb[0].mxu0
        %3604 = vmatprep.mubr.bf16.mxu0 0
        %3605 = vmatmul.mubr.bf16.gmra.mrb[0].mxu0 %v2771
        %v3606 = vpop.f32.mrb[0].mxu0
        %v3607 = vadd.f32 0.0, %v3606
        %v3608 = vpop.f32.mrb[0].mxu0
        %v3609 = vpop.f32.mrb[0].mxu0
        %v3610 = vadd.f32 0.0, %v3609
        %v3611 = vpop.f32.mrb[0].mxu0
        %3612 = vmatprep.mubr.bf16.mxu0 0
        %3613 = vmatmul.mubr.bf16.gmra.mrb[0].mxu0 %v2772
        %v3614 = vpop.f32.mrb[0].mxu0
        %v3615 = vadd.f32 0.0, %v3614
        %v3616 = vpop.f32.mrb[0].mxu0
        %v3617 = vpop.f32.mrb[0].mxu0
        %v3618 = vadd.f32 0.0, %v3617
        %v3619 = vpop.f32.mrb[0].mxu0
        %3620 = vmatprep.mubr.bf16.mxu0 0
        %3621 = vmatmul.mubr.bf16.gmra.mrb[0].mxu0 %v2773
        %v3622 = vpop.f32.mrb[0].mxu0
        %v3623 = vadd.f32 0.0, %v3622
        %v3624 = vpop.f32.mrb[0].mxu0
        %v3625 = vpop.f32.mrb[0].mxu0
        %v3626 = vadd.f32 0.0, %v3625
        %v3627 = vpop.f32.mrb[0].mxu0
        %3628 = vmatprep.mubr.bf16.mxu0 0
        %3629 = vmatmul.mubr.bf16.gmra.mrb[0].mxu0 %v2774
        %v3630 = vpop.f32.mrb[0].mxu0
        %v3631 = vadd.f32 0.0, %v3630
        %v3632 = vpop.f32.mrb[0].mxu0
        %v3633 = vpop.f32.mrb[0].mxu0
        %v3634 = vadd.f32 0.0, %v3633
        %v3635 = vpop.f32.mrb[0].mxu0
        %3636 = vmatprep.mubr.bf16.mxu0 0
        %3637 = vmatmul.mubr.bf16.gmra.mrb[0].mxu0 %v2775
        %v3638 = vpop.f32.mrb[0].mxu0
        %v3639 = vadd.f32 0.0, %v3638
        %v3640 = vpop.f32.mrb[0].mxu0
        %v3641 = vpop.f32.mrb[0].mxu0
        %v3642 = vadd.f32 0.0, %v3641
        %v3643 = vpop.f32.mrb[0].mxu0
        %3644 = vmatprep.mubr.bf16.mxu0 0
        %3645 = vmatmul.mubr.bf16.gmra.mrb[0].mxu0 %v2776
        %v3646 = vpop.f32.mrb[0].mxu0
        %v3647 = vadd.f32 0.0, %v3646
        %v3648 = vpop.f32.mrb[0].mxu0
        %v3649 = vpop.f32.mrb[0].mxu0
        %v3650 = vadd.f32 0.0, %v3649
        %v3651 = vpop.f32.mrb[0].mxu0
        %3652 = vmatprep.mubr.bf16.mxu0 0
        %3653 = vmatmul.mubr.bf16.gmra.mrb[0].mxu0 %v2777
        %v3654 = vpop.f32.mrb[0].mxu0
        %v3655 = vadd.f32 0.0, %v3654
        %v3656 = vpop.f32.mrb[0].mxu0
        %v3657 = vpop.f32.mrb[0].mxu0
        %v3658 = vadd.f32 0.0, %v3657
        %v3659 = vpop.f32.mrb[0].mxu0
        %3660 = vmatprep.mubr.bf16.mxu0 0
        %3661 = vmatmul.mubr.bf16.gmra.mrb[0].mxu0 %v2778
        %v3662 = vpop.f32.mrb[0].mxu0
        %v3663 = vadd.f32 0.0, %v3662
        %v3664 = vpop.f32.mrb[0].mxu0
        %v3665 = vpop.f32.mrb[0].mxu0
        %v3666 = vadd.f32 0.0, %v3665
        %v3667 = vpop.f32.mrb[0].mxu0
        %3668 = vmatprep.mubr.bf16.mxu0 0
        %3669 = vmatmul.mubr.bf16.gmra.mrb[0].mxu0 %v2779
        %v3670 = vpop.f32.mrb[0].mxu0
        %v3671 = vadd.f32 0.0, %v3670
        %v3672 = vpop.f32.mrb[0].mxu0
        %v3673 = vpop.f32.mrb[0].mxu0
        %v3674 = vadd.f32 0.0, %v3673
        %v3675 = vpop.f32.mrb[0].mxu0
        %3676 = vmatprep.mubr.bf16.mxu0 0
        %3677 = vmatmul.mubr.bf16.gmra.mrb[0].mxu0 %v2780
        %v3678 = vpop.f32.mrb[0].mxu0
        %v3679 = vadd.f32 0.0, %v3678
        %v3680 = vpop.f32.mrb[0].mxu0
        %v3681 = vpop.f32.mrb[0].mxu0
        %v3682 = vadd.f32 0.0, %v3681
        %v3683 = vpop.f32.mrb[0].mxu0
        %3684 = vmatprep.mubr.bf16.mxu0 0
        %3685 = vmatmul.mubr.bf16.gmra.mrb[0].mxu0 %v2781
        %v3686 = vpop.f32.mrb[0].mxu0
        %v3687 = vadd.f32 0.0, %v3686
        %v3688 = vpop.f32.mrb[0].mxu0
        %v3689 = vpop.f32.mrb[0].mxu0
        %v3690 = vadd.f32 0.0, %v3689
        %v3691 = vpop.f32.mrb[0].mxu0
        %3692 = vmatprep.mubr.bf16.mxu0 0
        %3693 = vmatmul.mubr.bf16.gmra.mrb[0].mxu0 %v2782
        %v3694 = vpop.f32.mrb[0].mxu0
        %v3695 = vadd.f32 0.0, %v3694
        %v3696 = vpop.f32.mrb[0].mxu0
        %v3697 = vpop.f32.mrb[0].mxu0
        %v3698 = vadd.f32 0.0, %v3697
        %v3699 = vpop.f32.mrb[0].mxu0
        %3700 = vmatprep.mubr.bf16.mxu0 0
        %3701 = vmatmul.mubr.bf16.gmra.mrb[0].mxu0 %v2783
        %v3702 = vpop.f32.mrb[0].mxu0
        %v3703 = vadd.f32 0.0, %v3702
        %v3704 = vpop.f32.mrb[0].mxu0
        %v3705 = vpop.f32.mrb[0].mxu0
        %v3706 = vadd.f32 0.0, %v3705
        %v3707 = vpop.f32.mrb[0].mxu0
        %3708 = vmatprep.mubr.bf16.mxu0 0
        %3709 = vmatmul.mubr.bf16.gmra.mrb[0].mxu0 %v2784
        %v3710 = vpop.f32.mrb[0].mxu0
        %v3711 = vadd.f32 0.0, %v3710
        %v3712 = vpop.f32.mrb[0].mxu0
        %v3713 = vpop.f32.mrb[0].mxu0
        %v3714 = vadd.f32 0.0, %v3713
        %v3715 = vpop.f32.mrb[0].mxu0
        %3716 = vmatprep.mubr.bf16.mxu0 0
        %3717 = vmatmul.mubr.bf16.gmra.mrb[0].mxu0 %v2785
        %v3718 = vpop.f32.mrb[0].mxu0
        %v3719 = vadd.f32 0.0, %v3718
        %v3720 = vpop.f32.mrb[0].mxu0
        %v3721 = vpop.f32.mrb[0].mxu0
        %v3722 = vadd.f32 0.0, %v3721
        %v3723 = vpop.f32.mrb[0].mxu0
        %3724 = vmatprep.mubr.bf16.mxu0 0
        %3725 = vmatmul.mubr.bf16.gmra.mrb[0].mxu0 %v2786
        %v3726 = vpop.f32.mrb[0].mxu0
        %v3727 = vadd.f32 0.0, %v3726
        %v3728 = vpop.f32.mrb[0].mxu0
        %v3729 = vpop.f32.mrb[0].mxu0
        %v3730 = vadd.f32 0.0, %v3729
        %v3731 = vpop.f32.mrb[0].mxu0
        %3732 = vmatprep.mubr.bf16.mxu0 0
        %3733 = vmatmul.mubr.bf16.gmra.mrb[0].mxu0 %v2787
        %v3734 = vpop.f32.mrb[0].mxu0
        %v3735 = vadd.f32 0.0, %v3734
        %v3736 = vpop.f32.mrb[0].mxu0
        %v3737 = vpop.f32.mrb[0].mxu0
        %v3738 = vadd.f32 0.0, %v3737
        %v3739 = vpop.f32.mrb[0].mxu0
        %3740 = vmatprep.mubr.bf16.mxu0 0
        %3741 = vmatmul.mubr.bf16.gmra.mrb[0].mxu0 %v2788
        %v3742 = vpop.f32.mrb[0].mxu0
        %v3743 = vadd.f32 0.0, %v3742
        %v3744 = vpop.f32.mrb[0].mxu0
        %v3745 = vpop.f32.mrb[0].mxu0
        %v3746 = vadd.f32 0.0, %v3745
        %v3747 = vpop.f32.mrb[0].mxu0
        %3748 = vmatprep.mubr.bf16.mxu0 0
        %3749 = vmatmul.mubr.bf16.gmra.mrb[0].mxu0 %v2789
        %v3750 = vpop.f32.mrb[0].mxu0
        %v3751 = vadd.f32 0.0, %v3750
        %v3752 = vpop.f32.mrb[0].mxu0
        %v3753 = vpop.f32.mrb[0].mxu0
        %v3754 = vadd.f32 0.0, %v3753
        %v3755 = vpop.f32.mrb[0].mxu0
        %3756 = vmatprep.mubr.bf16.mxu0 0
        %3757 = vmatmul.mubr.bf16.gmra.mrb[0].mxu0 %v2790
        %v3758 = vpop.f32.mrb[0].mxu0
        %v3759 = vadd.f32 0.0, %v3758
        %v3760 = vpop.f32.mrb[0].mxu0
        %v3761 = vpop.f32.mrb[0].mxu0
        %v3762 = vadd.f32 0.0, %v3761
        %v3763 = vpop.f32.mrb[0].mxu0
        %3764 = vmatprep.mubr.bf16.mxu0 0
        %3765 = vmatmul.mubr.bf16.gmra.mrb[0].mxu0 %v2791
        %v3766 = vpop.f32.mrb[0].mxu0
        %v3767 = vadd.f32 0.0, %v3766
        %v3768 = vpop.f32.mrb[0].mxu0
        %v3769 = vpop.f32.mrb[0].mxu0
        %v3770 = vadd.f32 0.0, %v3769
        %v3771 = vpop.f32.mrb[0].mxu0
        %3772 = vmatprep.mubr.bf16.mxu0 0
        %3773 = vmatmul.mubr.bf16.gmra.mrb[0].mxu0 %v2792
        %v3774 = vpop.f32.mrb[0].mxu0
        %v3775 = vadd.f32 0.0, %v3774
        %v3776 = vpop.f32.mrb[0].mxu0
        %v3777 = vpop.f32.mrb[0].mxu0
        %v3778 = vadd.f32 0.0, %v3777
        %v3779 = vpop.f32.mrb[0].mxu0
        %3780 = vmatprep.mubr.bf16.mxu0 0
        %3781 = vmatmul.mubr.bf16.gmra.mrb[0].mxu0 %v2793
        %v3782 = vpop.f32.mrb[0].mxu0
        %v3783 = vadd.f32 0.0, %v3782
        %v3784 = vpop.f32.mrb[0].mxu0
        %v3785 = vpop.f32.mrb[0].mxu0
        %v3786 = vadd.f32 0.0, %v3785
        %v3787 = vpop.f32.mrb[0].mxu0
        %3788 = vmatprep.mubr.bf16.mxu0 0
        %3789 = vmatmul.mubr.bf16.gmra.mrb[0].mxu0 %v2794
        %v3790 = vpop.f32.mrb[0].mxu0
        %v3791 = vadd.f32 0.0, %v3790
        %v3792 = vpop.f32.mrb[0].mxu0
        %v3793 = vpop.f32.mrb[0].mxu0
        %v3794 = vadd.f32 0.0, %v3793
        %v3795 = vpop.f32.mrb[0].mxu0
        %3796 = vmatprep.mubr.bf16.mxu0 0
        %3797 = vmatmul.mubr.bf16.gmra.mrb[0].mxu0 %v2795
        %v3798 = vpop.f32.mrb[0].mxu0
        %v3799 = vadd.f32 0.0, %v3798
        %v3800 = vpop.f32.mrb[0].mxu0
        %v3801 = vpop.f32.mrb[0].mxu0
        %v3802 = vadd.f32 0.0, %v3801
        %v3803 = vpop.f32.mrb[0].mxu0
        %3804 = vmatprep.mubr.bf16.mxu0 0
        %3805 = vmatmul.mubr.bf16.gmra.mrb[0].mxu0 %v2796
        %v3806 = vpop.f32.mrb[0].mxu0
        %v3807 = vadd.f32 0.0, %v3806
        %v3808 = vpop.f32.mrb[0].mxu0
        %v3809 = vpop.f32.mrb[0].mxu0
        %v3810 = vadd.f32 0.0, %v3809
        %v3811 = vpop.f32.mrb[0].mxu0
        %3812 = vmatprep.mubr.bf16.mxu0 0
        %3813 = vmatmul.mubr.bf16.gmra.mrb[0].mxu0 %v2797
        %v3814 = vpop.f32.mrb[0].mxu0
        %v3815 = vadd.f32 0.0, %v3814
        %v3816 = vpop.f32.mrb[0].mxu0
        %v3817 = vpop.f32.mrb[0].mxu0
        %v3818 = vadd.f32 0.0, %v3817
        %v3819 = vpop.f32.mrb[0].mxu0
        %3820 = vmatprep.mubr.bf16.mxu0 0
        %3821 = vmatmul.mubr.bf16.gmra.mrb[0].mxu0 %v2798
        %v3822 = vpop.f32.mrb[0].mxu0
        %v3823 = vadd.f32 0.0, %v3822
        %v3824 = vpop.f32.mrb[0].mxu0
        %v3825 = vpop.f32.mrb[0].mxu0
        %v3826 = vadd.f32 0.0, %v3825
        %v3827 = vpop.f32.mrb[0].mxu0
        %3828 = vmatprep.mubr.bf16.mxu0 0
        %3829 = vmatmul.mubr.bf16.gmra.mrb[0].mxu0 %v2799
        %v3830 = vpop.f32.mrb[0].mxu0
        %v3831 = vadd.f32 0.0, %v3830
        %v3832 = vpop.f32.mrb[0].mxu0
        %v3833 = vpop.f32.mrb[0].mxu0
        %v3834 = vadd.f32 0.0, %v3833
        %v3835 = vpop.f32.mrb[0].mxu0
        %3836 = vmatprep.mubr.bf16.mxu0 0
        %3837 = vmatmul.mubr.bf16.gmra.mrb[0].mxu0 %v2800
        %v3838 = vpop.f32.mrb[0].mxu0
        %v3839 = vadd.f32 0.0, %v3838
        %v3840 = vpop.f32.mrb[0].mxu0
        %v3841 = vpop.f32.mrb[0].mxu0
        %v3842 = vadd.f32 0.0, %v3841
        %v3843 = vpop.f32.mrb[0].mxu0
        %3844 = vmatprep.mubr.bf16.mxu0 0
        %3845 = vmatmul.mubr.bf16.gmra.mrb[0].mxu0 %v2801
        %v3846 = vpop.f32.mrb[0].mxu0
        %v3847 = vadd.f32 0.0, %v3846
        %v3848 = vpop.f32.mrb[0].mxu0
        %v3849 = vpop.f32.mrb[0].mxu0
        %v3850 = vadd.f32 0.0, %v3849
        %v3851 = vpop.f32.mrb[0].mxu0
        %3852 = vmatprep.mubr.bf16.mxu0 0
        %3853 = vmatmul.mubr.bf16.gmra.mrb[0].mxu0 %v2802
        %v3854 = vpop.f32.mrb[0].mxu0
        %v3855 = vadd.f32 0.0, %v3854
        %v3856 = vpop.f32.mrb[0].mxu0
        %v3857 = vpop.f32.mrb[0].mxu0
        %v3858 = vadd.f32 0.0, %v3857
        %v3859 = vpop.f32.mrb[0].mxu0
        %3860 = vmatprep.mubr.bf16.mxu0 0
        %3861 = vmatmul.mubr.bf16.gmra.mrb[0].mxu0 %v2803
        %v3862 = vpop.f32.mrb[0].mxu0
        %v3863 = vadd.f32 0.0, %v3862
        %v3864 = vpop.f32.mrb[0].mxu0
        %v3865 = vpop.f32.mrb[0].mxu0
        %v3866 = vadd.f32 0.0, %v3865
        %v3867 = vpop.f32.mrb[0].mxu0
        %3868 = vmatprep.mubr.bf16.mxu0 0
        %3869 = vmatmul.mubr.bf16.gmra.mrb[0].mxu0 %v2804
        %v3870 = vpop.f32.mrb[0].mxu0
        %v3871 = vadd.f32 0.0, %v3870
        %v3872 = vpop.f32.mrb[0].mxu0
        %v3873 = vpop.f32.mrb[0].mxu0
        %v3874 = vadd.f32 0.0, %v3873
        %v3875 = vpop.f32.mrb[0].mxu0
        %3876 = vmatprep.mubr.bf16.mxu0 0
        %3877 = vmatmul.mubr.bf16.gmra.mrb[0].mxu0 %v2805
        %v3878 = vpop.f32.mrb[0].mxu0
        %v3879 = vadd.f32 0.0, %v3878
        %v3880 = vpop.f32.mrb[0].mxu0
        %v3881 = vpop.f32.mrb[0].mxu0
        %v3882 = vadd.f32 0.0, %v3881
        %v3883 = vpop.f32.mrb[0].mxu0
        %3884 = vmatprep.mubr.bf16.mxu0 0
        %3885 = vmatmul.mubr.bf16.gmra.mrb[0].mxu0 %v2806
        %v3886 = vpop.f32.mrb[0].mxu0
        %v3887 = vadd.f32 0.0, %v3886
        %v3888 = vpop.f32.mrb[0].mxu0
        %v3889 = vpop.f32.mrb[0].mxu0
        %v3890 = vadd.f32 0.0, %v3889
        %v3891 = vpop.f32.mrb[0].mxu0
        %3892 = vmatprep.mubr.bf16.mxu0 0
        %3893 = vmatmul.mubr.bf16.gmra.mrb[0].mxu0 %v2807
        %v3894 = vpop.f32.mrb[0].mxu0
        %v3895 = vadd.f32 0.0, %v3894
        %v3896 = vpop.f32.mrb[0].mxu0
        %v3897 = vpop.f32.mrb[0].mxu0
        %v3898 = vadd.f32 0.0, %v3897
        %v3899 = vpop.f32.mrb[0].mxu0
        %3900 = vmatprep.mubr.bf16.mxu0 0
        %3901 = vmatmul.mubr.bf16.gmra.mrb[0].mxu0 %v2808
        %v3902 = vpop.f32.mrb[0].mxu0
        %v3903 = vadd.f32 0.0, %v3902
        %v3904 = vpop.f32.mrb[0].mxu0
        %v3905 = vpop.f32.mrb[0].mxu0
        %v3906 = vadd.f32 0.0, %v3905
        %v3907 = vpop.f32.mrb[0].mxu0
        %3908 = vmatprep.mubr.bf16.mxu0 0
        %3909 = vmatmul.mubr.bf16.gmra.mrb[0].mxu0 %v2809
        %v3910 = vpop.f32.mrb[0].mxu0
        %v3911 = vadd.f32 0.0, %v3910
        %v3912 = vpop.f32.mrb[0].mxu0
        %v3913 = vpop.f32.mrb[0].mxu0
        %v3914 = vadd.f32 0.0, %v3913
        %v3915 = vpop.f32.mrb[0].mxu0
        %3916 = vmatprep.mubr.bf16.mxu0 0
        %3917 = vmatmul.mubr.bf16.gmra.mrb[0].mxu0 %v2810
        %v3918 = vpop.f32.mrb[0].mxu0
        %v3919 = vadd.f32 0.0, %v3918
        %v3920 = vpop.f32.mrb[0].mxu0
        %v3921 = vpop.f32.mrb[0].mxu0
        %v3922 = vadd.f32 0.0, %v3921
        %v3923 = vpop.f32.mrb[0].mxu0
        %3924 = vmatprep.mubr.bf16.mxu0 0
        %3925 = vmatmul.mubr.bf16.gmra.mrb[0].mxu0 %v2811
        %v3926 = vpop.f32.mrb[0].mxu0
        %v3927 = vadd.f32 0.0, %v3926
        %v3928 = vpop.f32.mrb[0].mxu0
        %v3929 = vpop.f32.mrb[0].mxu0
        %v3930 = vadd.f32 0.0, %v3929
        %v3931 = vpop.f32.mrb[0].mxu0
        %3932 = vdwg.mxu0
        %v3933 = vadd.f32 %v2428, %v2911
        %v3934 = vadd.f32 %v2429, %v2914
        %v3935 = vadd.f32 %v2430, %v2919
        %v3936 = vadd.f32 %v2431, %v2922
        %v3937 = vadd.f32 %v2432, %v2927
        %v3938 = vadd.f32 %v2433, %v2930
        %v3939 = vadd.f32 %v2434, %v2935
        %v3940 = vadd.f32 %v2435, %v2938
        %v3941 = vadd.f32 %v2436, %v2943
        %v3942 = vadd.f32 %v2437, %v2946
        %v3943 = vadd.f32 %v2438, %v2951
        %v3944 = vadd.f32 %v2439, %v2954
        %v3945 = vadd.f32 %v2440, %v2959
        %v3946 = vadd.f32 %v2441, %v2962
        %v3947 = vadd.f32 %v2442, %v2967
        %v3948 = vadd.f32 %v2443, %v2970
        %v3949 = vadd.f32 %v2444, %v2975
        %v3950 = vadd.f32 %v2445, %v2978
        %v3951 = vadd.f32 %v2446, %v2983
        %v3952 = vadd.f32 %v2447, %v2986
        %v3953 = vadd.f32 %v2448, %v2991
        %v3954 = vadd.f32 %v2449, %v2994
        %v3955 = vadd.f32 %v2450, %v2999
        %v3956 = vadd.f32 %v2451, %v3002
        %v3957 = vadd.f32 %v2452, %v3007
        %v3958 = vadd.f32 %v2453, %v3010
        %v3959 = vadd.f32 %v2454, %v3015
        %v3960 = vadd.f32 %v2455, %v3018
        %v3961 = vadd.f32 %v2456, %v3023
        %v3962 = vadd.f32 %v2457, %v3026
        %v3963 = vadd.f32 %v2458, %v3031
        %v3964 = vadd.f32 %v2459, %v3034
        %v3965 = vadd.f32 %v2460, %v3039
        %v3966 = vadd.f32 %v2461, %v3042
        %v3967 = vadd.f32 %v2462, %v3047
        %v3968 = vadd.f32 %v2463, %v3050
        %v3969 = vadd.f32 %v2464, %v3055
        %v3970 = vadd.f32 %v2465, %v3058
        %v3971 = vadd.f32 %v2466, %v3063
        %v3972 = vadd.f32 %v2467, %v3066
        %v3973 = vadd.f32 %v2468, %v3071
        %v3974 = vadd.f32 %v2469, %v3074
        %v3975 = vadd.f32 %v2470, %v3079
        %v3976 = vadd.f32 %v2471, %v3082
        %v3977 = vadd.f32 %v2472, %v3087
        %v3978 = vadd.f32 %v2473, %v3090
        %v3979 = vadd.f32 %v2474, %v3095
        %v3980 = vadd.f32 %v2475, %v3098
        %v3981 = vadd.f32 %v2476, %v3103
        %v3982 = vadd.f32 %v2477, %v3106
        %v3983 = vadd.f32 %v2478, %v3111
        %v3984 = vadd.f32 %v2479, %v3114
        %v3985 = vadd.f32 %v2480, %v3119
        %v3986 = vadd.f32 %v2481, %v3122
        %v3987 = vadd.f32 %v2482, %v3127
        %v3988 = vadd.f32 %v2483, %v3130
        %v3989 = vadd.f32 %v2484, %v3135
        %v3990 = vadd.f32 %v2485, %v3138
        %v3991 = vadd.f32 %v2486, %v3143
        %v3992 = vadd.f32 %v2487, %v3146
        %v3993 = vadd.f32 %v2488, %v3151
        %v3994 = vadd.f32 %v2489, %v3154
        %v3995 = vadd.f32 %v2490, %v3159
        %v3996 = vadd.f32 %v2491, %v3162
        %v3997 = vadd.f32 %v2492, %v3167
        %v3998 = vadd.f32 %v2493, %v3170
        %v3999 = vadd.f32 %v2494, %v3175
        %v4000 = vadd.f32 %v2495, %v3178
        %v4001 = vadd.f32 %v2496, %v3183
        %v4002 = vadd.f32 %v2497, %v3186
        %v4003 = vadd.f32 %v2498, %v3191
        %v4004 = vadd.f32 %v2499, %v3194
        %v4005 = vadd.f32 %v2500, %v3199
        %v4006 = vadd.f32 %v2501, %v3202
        %v4007 = vadd.f32 %v2502, %v3207
        %v4008 = vadd.f32 %v2503, %v3210
        %v4009 = vadd.f32 %v2504, %v3215
        %v4010 = vadd.f32 %v2505, %v3218
        %v4011 = vadd.f32 %v2506, %v3223
        %v4012 = vadd.f32 %v2507, %v3226
        %v4013 = vadd.f32 %v2508, %v3231
        %v4014 = vadd.f32 %v2509, %v3234
        %v4015 = vadd.f32 %v2510, %v3239
        %v4016 = vadd.f32 %v2511, %v3242
        %v4017 = vadd.f32 %v2512, %v3247
        %v4018 = vadd.f32 %v2513, %v3250
        %v4019 = vadd.f32 %v2514, %v3255
        %v4020 = vadd.f32 %v2515, %v3258
        %v4021 = vadd.f32 %v2516, %v3263
        %v4022 = vadd.f32 %v2517, %v3266
        %v4023 = vadd.f32 %v2518, %v3271
        %v4024 = vadd.f32 %v2519, %v3274
        %v4025 = vadd.f32 %v2520, %v3279
        %v4026 = vadd.f32 %v2521, %v3282
        %v4027 = vadd.f32 %v2522, %v3287
        %v4028 = vadd.f32 %v2523, %v3290
        %v4029 = vadd.f32 %v2524, %v3295
        %v4030 = vadd.f32 %v2525, %v3298
        %v4031 = vadd.f32 %v2526, %v3303
        %v4032 = vadd.f32 %v2527, %v3306
        %v4033 = vadd.f32 %v2528, %v3311
        %v4034 = vadd.f32 %v2529, %v3314
        %v4035 = vadd.f32 %v2530, %v3319
        %v4036 = vadd.f32 %v2531, %v3322
        %v4037 = vadd.f32 %v2532, %v3327
        %v4038 = vadd.f32 %v2533, %v3330
        %v4039 = vadd.f32 %v2534, %v3335
        %v4040 = vadd.f32 %v2535, %v3338
        %v4041 = vadd.f32 %v2536, %v3343
        %v4042 = vadd.f32 %v2537, %v3346
        %v4043 = vadd.f32 %v2538, %v3351
        %v4044 = vadd.f32 %v2539, %v3354
        %v4045 = vadd.f32 %v2540, %v3359
        %v4046 = vadd.f32 %v2541, %v3362
        %v4047 = vadd.f32 %v2542, %v3367
        %v4048 = vadd.f32 %v2543, %v3370
        %v4049 = vadd.f32 %v2544, %v3375
        %v4050 = vadd.f32 %v2545, %v3378
        %v4051 = vadd.f32 %v2546, %v3383
        %v4052 = vadd.f32 %v2547, %v3386
        %v4053 = vadd.f32 %v2548, %v3391
        %v4054 = vadd.f32 %v2549, %v3394
        %v4055 = vadd.f32 %v2550, %v3399
        %v4056 = vadd.f32 %v2551, %v3402
        %v4057 = vadd.f32 %v2552, %v3407
        %v4058 = vadd.f32 %v2553, %v3410
        %v4059 = vadd.f32 %v2554, %v3415
        %v4060 = vadd.f32 %v2555, %v3418
        %v4061 = vadd.f32 %v2556, %v3423
        %v4062 = vadd.f32 %v2557, %v3426
        %v4063 = vadd.f32 %v2558, %v3431
        %v4064 = vadd.f32 %v2559, %v3434
        %v4065 = vadd.f32 %v2560, %v3439
        %v4066 = vadd.f32 %v2561, %v3442
        %v4067 = vadd.f32 %v2562, %v3447
        %v4068 = vadd.f32 %v2563, %v3450
        %v4069 = vadd.f32 %v2564, %v3455
        %v4070 = vadd.f32 %v2565, %v3458
        %v4071 = vadd.f32 %v2566, %v3463
        %v4072 = vadd.f32 %v2567, %v3466
        %v4073 = vadd.f32 %v2568, %v3471
        %v4074 = vadd.f32 %v2569, %v3474
        %v4075 = vadd.f32 %v2570, %v3479
        %v4076 = vadd.f32 %v2571, %v3482
        %v4077 = vadd.f32 %v2572, %v3487
        %v4078 = vadd.f32 %v2573, %v3490
        %v4079 = vadd.f32 %v2574, %v3495
        %v4080 = vadd.f32 %v2575, %v3498
        %v4081 = vadd.f32 %v2576, %v3503
        %v4082 = vadd.f32 %v2577, %v3506
        %v4083 = vadd.f32 %v2578, %v3511
        %v4084 = vadd.f32 %v2579, %v3514
        %v4085 = vadd.f32 %v2580, %v3519
        %v4086 = vadd.f32 %v2581, %v3522
        %v4087 = vadd.f32 %v2582, %v3527
        %v4088 = vadd.f32 %v2583, %v3530
        %v4089 = vadd.f32 %v2584, %v3535
        %v4090 = vadd.f32 %v2585, %v3538
        %v4091 = vadd.f32 %v2586, %v3543
        %v4092 = vadd.f32 %v2587, %v3546
        %v4093 = vadd.f32 %v2588, %v3551
        %v4094 = vadd.f32 %v2589, %v3554
        %v4095 = vadd.f32 %v2590, %v3559
        %v4096 = vadd.f32 %v2591, %v3562
        %v4097 = vadd.f32 %v2592, %v3567
        %v4098 = vadd.f32 %v2593, %v3570
        %v4099 = vadd.f32 %v2594, %v3575
        %v4100 = vadd.f32 %v2595, %v3578
        %v4101 = vadd.f32 %v2596, %v3583
        %v4102 = vadd.f32 %v2597, %v3586
        %v4103 = vadd.f32 %v2598, %v3591
        %v4104 = vadd.f32 %v2599, %v3594
        %v4105 = vadd.f32 %v2600, %v3599
        %v4106 = vadd.f32 %v2601, %v3602
        %v4107 = vadd.f32 %v2602, %v3607
        %v4108 = vadd.f32 %v2603, %v3610
        %v4109 = vadd.f32 %v2604, %v3615
        %v4110 = vadd.f32 %v2605, %v3618
        %v4111 = vadd.f32 %v2606, %v3623
        %v4112 = vadd.f32 %v2607, %v3626
        %v4113 = vadd.f32 %v2608, %v3631
        %v4114 = vadd.f32 %v2609, %v3634
        %v4115 = vadd.f32 %v2610, %v3639
        %v4116 = vadd.f32 %v2611, %v3642
        %v4117 = vadd.f32 %v2612, %v3647
        %v4118 = vadd.f32 %v2613, %v3650
        %v4119 = vadd.f32 %v2614, %v3655
        %v4120 = vadd.f32 %v2615, %v3658
        %v4121 = vadd.f32 %v2616, %v3663
        %v4122 = vadd.f32 %v2617, %v3666
        %v4123 = vadd.f32 %v2618, %v3671
        %v4124 = vadd.f32 %v2619, %v3674
        %v4125 = vadd.f32 %v2620, %v3679
        %v4126 = vadd.f32 %v2621, %v3682
        %v4127 = vadd.f32 %v2622, %v3687
        %v4128 = vadd.f32 %v2623, %v3690
        %v4129 = vadd.f32 %v2624, %v3695
        %v4130 = vadd.f32 %v2625, %v3698
        %v4131 = vadd.f32 %v2626, %v3703
        %v4132 = vadd.f32 %v2627, %v3706
        %v4133 = vadd.f32 %v2628, %v3711
        %v4134 = vadd.f32 %v2629, %v3714
        %v4135 = vadd.f32 %v2630, %v3719
        %v4136 = vadd.f32 %v2631, %v3722
        %v4137 = vadd.f32 %v2632, %v3727
        %v4138 = vadd.f32 %v2633, %v3730
        %v4139 = vadd.f32 %v2634, %v3735
        %v4140 = vadd.f32 %v2635, %v3738
        %v4141 = vadd.f32 %v2636, %v3743
        %v4142 = vadd.f32 %v2637, %v3746
        %v4143 = vadd.f32 %v2638, %v3751
        %v4144 = vadd.f32 %v2639, %v3754
        %v4145 = vadd.f32 %v2640, %v3759
        %v4146 = vadd.f32 %v2641, %v3762
        %v4147 = vadd.f32 %v2642, %v3767
        %v4148 = vadd.f32 %v2643, %v3770
        %v4149 = vadd.f32 %v2644, %v3775
        %v4150 = vadd.f32 %v2645, %v3778
        %v4151 = vadd.f32 %v2646, %v3783
        %v4152 = vadd.f32 %v2647, %v3786
        %v4153 = vadd.f32 %v2648, %v3791
        %v4154 = vadd.f32 %v2649, %v3794
        %v4155 = vadd.f32 %v2650, %v3799
        %v4156 = vadd.f32 %v2651, %v3802
        %v4157 = vadd.f32 %v2652, %v3807
        %v4158 = vadd.f32 %v2653, %v3810
        %v4159 = vadd.f32 %v2654, %v3815
        %v4160 = vadd.f32 %v2655, %v3818
        %v4161 = vadd.f32 %v2656, %v3823
        %v4162 = vadd.f32 %v2657, %v3826
        %v4163 = vadd.f32 %v2658, %v3831
        %v4164 = vadd.f32 %v2659, %v3834
        %v4165 = vadd.f32 %v2660, %v3839
        %v4166 = vadd.f32 %v2661, %v3842
        %v4167 = vadd.f32 %v2662, %v3847
        %v4168 = vadd.f32 %v2663, %v3850
        %v4169 = vadd.f32 %v2664, %v3855
        %v4170 = vadd.f32 %v2665, %v3858
        %v4171 = vadd.f32 %v2666, %v3863
        %v4172 = vadd.f32 %v2667, %v3866
        %v4173 = vadd.f32 %v2668, %v3871
        %v4174 = vadd.f32 %v2669, %v3874
        %v4175 = vadd.f32 %v2670, %v3879
        %v4176 = vadd.f32 %v2671, %v3882
        %v4177 = vadd.f32 %v2672, %v3887
        %v4178 = vadd.f32 %v2673, %v3890
        %v4179 = vadd.f32 %v2674, %v3895
        %v4180 = vadd.f32 %v2675, %v3898
        %v4181 = vadd.f32 %v2676, %v3903
        %v4182 = vadd.f32 %v2677, %v3906
        %v4183 = vadd.f32 %v2678, %v3911
        %v4184 = vadd.f32 %v2679, %v3914
        %v4185 = vadd.f32 %v2680, %v3919
        %v4186 = vadd.f32 %v2681, %v3922
        %v4187 = vadd.f32 %v2682, %v3927
        %v4188 = vadd.f32 %v2683, %v3930
        %4189 = vst [vmem:[#allocation2] sm:$0xff] %v3933
        %4190 = vst [vmem:[#allocation2 + $0x8] sm:$0xff] %v3934
        %4191 = vst [vmem:[#allocation2 + $0x10] sm:$0xff] %v3935
        %4192 = vst [vmem:[#allocation2 + $0x18] sm:$0xff] %v3936
        %4193 = vst [vmem:[#allocation2 + $0x20] sm:$0xff] %v3937
        %4194 = vst [vmem:[#allocation2 + $0x28] sm:$0xff] %v3938
        %4195 = vst [vmem:[#allocation2 + $0x30] sm:$0xff] %v3939
        %4196 = vst [vmem:[#allocation2 + $0x38] sm:$0xff] %v3940
        %4197 = vst [vmem:[#allocation2 + $0x40] sm:$0xff] %v3941
        %4198 = vst [vmem:[#allocation2 + $0x48] sm:$0xff] %v3942
        %4199 = vst [vmem:[#allocation2 + $0x50] sm:$0xff] %v3943
        %4200 = vst [vmem:[#allocation2 + $0x58] sm:$0xff] %v3944
        %4201 = vst [vmem:[#allocation2 + $0x60] sm:$0xff] %v3945
        %4202 = vst [vmem:[#allocation2 + $0x68] sm:$0xff] %v3946
        %4203 = vst [vmem:[#allocation2 + $0x70] sm:$0xff] %v3947
        %4204 = vst [vmem:[#allocation2 + $0x78] sm:$0xff] %v3948
        %4205 = vst [vmem:[#allocation2 + $0x80] sm:$0xff] %v3949
        %4206 = vst [vmem:[#allocation2 + $0x88] sm:$0xff] %v3950
        %4207 = vst [vmem:[#allocation2 + $0x90] sm:$0xff] %v3951
        %4208 = vst [vmem:[#allocation2 + $0x98] sm:$0xff] %v3952
        %4209 = vst [vmem:[#allocation2 + $0xa0] sm:$0xff] %v3953
        %4210 = vst [vmem:[#allocation2 + $0xa8] sm:$0xff] %v3954
        %4211 = vst [vmem:[#allocation2 + $0xb0] sm:$0xff] %v3955
        %4212 = vst [vmem:[#allocation2 + $0xb8] sm:$0xff] %v3956
        %4213 = vst [vmem:[#allocation2 + $0xc0] sm:$0xff] %v3957
        %4214 = vst [vmem:[#allocation2 + $0xc8] sm:$0xff] %v3958
        %4215 = vst [vmem:[#allocation2 + $0xd0] sm:$0xff] %v3959
        %4216 = vst [vmem:[#allocation2 + $0xd8] sm:$0xff] %v3960
        %4217 = vst [vmem:[#allocation2 + $0xe0] sm:$0xff] %v3961
        %4218 = vst [vmem:[#allocation2 + $0xe8] sm:$0xff] %v3962
        %4219 = vst [vmem:[#allocation2 + $0xf0] sm:$0xff] %v3963
        %4220 = vst [vmem:[#allocation2 + $0xf8] sm:$0xff] %v3964
        %4221 = vst [vmem:[#allocation2 + $0x100] sm:$0xff] %v3965
        %4222 = vst [vmem:[#allocation2 + $0x108] sm:$0xff] %v3966
        %4223 = vst [vmem:[#allocation2 + $0x110] sm:$0xff] %v3967
        %4224 = vst [vmem:[#allocation2 + $0x118] sm:$0xff] %v3968
        %4225 = vst [vmem:[#allocation2 + $0x120] sm:$0xff] %v3969
        %4226 = vst [vmem:[#allocation2 + $0x128] sm:$0xff] %v3970
        %4227 = vst [vmem:[#allocation2 + $0x130] sm:$0xff] %v3971
        %4228 = vst [vmem:[#allocation2 + $0x138] sm:$0xff] %v3972
        %4229 = vst [vmem:[#allocation2 + $0x140] sm:$0xff] %v3973
        %4230 = vst [vmem:[#allocation2 + $0x148] sm:$0xff] %v3974
        %4231 = vst [vmem:[#allocation2 + $0x150] sm:$0xff] %v3975
        %4232 = vst [vmem:[#allocation2 + $0x158] sm:$0xff] %v3976
        %4233 = vst [vmem:[#allocation2 + $0x160] sm:$0xff] %v3977
        %4234 = vst [vmem:[#allocation2 + $0x168] sm:$0xff] %v3978
        %4235 = vst [vmem:[#allocation2 + $0x170] sm:$0xff] %v3979
        %4236 = vst [vmem:[#allocation2 + $0x178] sm:$0xff] %v3980
        %4237 = vst [vmem:[#allocation2 + $0x180] sm:$0xff] %v3981
        %4238 = vst [vmem:[#allocation2 + $0x188] sm:$0xff] %v3982
        %4239 = vst [vmem:[#allocation2 + $0x190] sm:$0xff] %v3983
        %4240 = vst [vmem:[#allocation2 + $0x198] sm:$0xff] %v3984
        %4241 = vst [vmem:[#allocation2 + $0x1a0] sm:$0xff] %v3985
        %4242 = vst [vmem:[#allocation2 + $0x1a8] sm:$0xff] %v3986
        %4243 = vst [vmem:[#allocation2 + $0x1b0] sm:$0xff] %v3987
        %4244 = vst [vmem:[#allocation2 + $0x1b8] sm:$0xff] %v3988
        %4245 = vst [vmem:[#allocation2 + $0x1c0] sm:$0xff] %v3989
        %4246 = vst [vmem:[#allocation2 + $0x1c8] sm:$0xff] %v3990
        %4247 = vst [vmem:[#allocation2 + $0x1d0] sm:$0xff] %v3991
        %4248 = vst [vmem:[#allocation2 + $0x1d8] sm:$0xff] %v3992
        %4249 = vst [vmem:[#allocation2 + $0x1e0] sm:$0xff] %v3993
        %4250 = vst [vmem:[#allocation2 + $0x1e8] sm:$0xff] %v3994
        %4251 = vst [vmem:[#allocation2 + $0x1f0] sm:$0xff] %v3995
        %4252 = vst [vmem:[#allocation2 + $0x1f8] sm:$0xff] %v3996
        %4253 = vst [vmem:[#allocation2 + $0x200] sm:$0xff] %v3997
        %4254 = vst [vmem:[#allocation2 + $0x208] sm:$0xff] %v3998
        %4255 = vst [vmem:[#allocation2 + $0x210] sm:$0xff] %v3999
        %4256 = vst [vmem:[#allocation2 + $0x218] sm:$0xff] %v4000
        %4257 = vst [vmem:[#allocation2 + $0x220] sm:$0xff] %v4001
        %4258 = vst [vmem:[#allocation2 + $0x228] sm:$0xff] %v4002
        %4259 = vst [vmem:[#allocation2 + $0x230] sm:$0xff] %v4003
        %4260 = vst [vmem:[#allocation2 + $0x238] sm:$0xff] %v4004
        %4261 = vst [vmem:[#allocation2 + $0x240] sm:$0xff] %v4005
        %4262 = vst [vmem:[#allocation2 + $0x248] sm:$0xff] %v4006
        %4263 = vst [vmem:[#allocation2 + $0x250] sm:$0xff] %v4007
        %4264 = vst [vmem:[#allocation2 + $0x258] sm:$0xff] %v4008
        %4265 = vst [vmem:[#allocation2 + $0x260] sm:$0xff] %v4009
        %4266 = vst [vmem:[#allocation2 + $0x268] sm:$0xff] %v4010
        %4267 = vst [vmem:[#allocation2 + $0x270] sm:$0xff] %v4011
        %4268 = vst [vmem:[#allocation2 + $0x278] sm:$0xff] %v4012
        %4269 = vst [vmem:[#allocation2 + $0x280] sm:$0xff] %v4013
        %4270 = vst [vmem:[#allocation2 + $0x288] sm:$0xff] %v4014
        %4271 = vst [vmem:[#allocation2 + $0x290] sm:$0xff] %v4015
        %4272 = vst [vmem:[#allocation2 + $0x298] sm:$0xff] %v4016
        %4273 = vst [vmem:[#allocation2 + $0x2a0] sm:$0xff] %v4017
        %4274 = vst [vmem:[#allocation2 + $0x2a8] sm:$0xff] %v4018
        %4275 = vst [vmem:[#allocation2 + $0x2b0] sm:$0xff] %v4019
        %4276 = vst [vmem:[#allocation2 + $0x2b8] sm:$0xff] %v4020
        %4277 = vst [vmem:[#allocation2 + $0x2c0] sm:$0xff] %v4021
        %4278 = vst [vmem:[#allocation2 + $0x2c8] sm:$0xff] %v4022
        %4279 = vst [vmem:[#allocation2 + $0x2d0] sm:$0xff] %v4023
        %4280 = vst [vmem:[#allocation2 + $0x2d8] sm:$0xff] %v4024
        %4281 = vst [vmem:[#allocation2 + $0x2e0] sm:$0xff] %v4025
        %4282 = vst [vmem:[#allocation2 + $0x2e8] sm:$0xff] %v4026
        %4283 = vst [vmem:[#allocation2 + $0x2f0] sm:$0xff] %v4027
        %4284 = vst [vmem:[#allocation2 + $0x2f8] sm:$0xff] %v4028
        %4285 = vst [vmem:[#allocation2 + $0x300] sm:$0xff] %v4029
        %4286 = vst [vmem:[#allocation2 + $0x308] sm:$0xff] %v4030
        %4287 = vst [vmem:[#allocation2 + $0x310] sm:$0xff] %v4031
        %4288 = vst [vmem:[#allocation2 + $0x318] sm:$0xff] %v4032
        %4289 = vst [vmem:[#allocation2 + $0x320] sm:$0xff] %v4033
        %4290 = vst [vmem:[#allocation2 + $0x328] sm:$0xff] %v4034
        %4291 = vst [vmem:[#allocation2 + $0x330] sm:$0xff] %v4035
        %4292 = vst [vmem:[#allocation2 + $0x338] sm:$0xff] %v4036
        %4293 = vst [vmem:[#allocation2 + $0x340] sm:$0xff] %v4037
        %4294 = vst [vmem:[#allocation2 + $0x348] sm:$0xff] %v4038
        %4295 = vst [vmem:[#allocation2 + $0x350] sm:$0xff] %v4039
        %4296 = vst [vmem:[#allocation2 + $0x358] sm:$0xff] %v4040
        %4297 = vst [vmem:[#allocation2 + $0x360] sm:$0xff] %v4041
        %4298 = vst [vmem:[#allocation2 + $0x368] sm:$0xff] %v4042
        %4299 = vst [vmem:[#allocation2 + $0x370] sm:$0xff] %v4043
        %4300 = vst [vmem:[#allocation2 + $0x378] sm:$0xff] %v4044
        %4301 = vst [vmem:[#allocation2 + $0x380] sm:$0xff] %v4045
        %4302 = vst [vmem:[#allocation2 + $0x388] sm:$0xff] %v4046
        %4303 = vst [vmem:[#allocation2 + $0x390] sm:$0xff] %v4047
        %4304 = vst [vmem:[#allocation2 + $0x398] sm:$0xff] %v4048
        %4305 = vst [vmem:[#allocation2 + $0x3a0] sm:$0xff] %v4049
        %4306 = vst [vmem:[#allocation2 + $0x3a8] sm:$0xff] %v4050
        %4307 = vst [vmem:[#allocation2 + $0x3b0] sm:$0xff] %v4051
        %4308 = vst [vmem:[#allocation2 + $0x3b8] sm:$0xff] %v4052
        %4309 = vst [vmem:[#allocation2 + $0x3c0] sm:$0xff] %v4053
        %4310 = vst [vmem:[#allocation2 + $0x3c8] sm:$0xff] %v4054
        %4311 = vst [vmem:[#allocation2 + $0x3d0] sm:$0xff] %v4055
        %4312 = vst [vmem:[#allocation2 + $0x3d8] sm:$0xff] %v4056
        %4313 = vst [vmem:[#allocation2 + $0x3e0] sm:$0xff] %v4057
        %4314 = vst [vmem:[#allocation2 + $0x3e8] sm:$0xff] %v4058
        %4315 = vst [vmem:[#allocation2 + $0x3f0] sm:$0xff] %v4059
        %4316 = vst [vmem:[#allocation2 + $0x3f8] sm:$0xff] %v4060
        %4317 = vst [vmem:[#allocation2 + $0x400] sm:$0xff] %v4061
        %4318 = vst [vmem:[#allocation2 + $0x408] sm:$0xff] %v4062
        %4319 = vst [vmem:[#allocation2 + $0x410] sm:$0xff] %v4063
        %4320 = vst [vmem:[#allocation2 + $0x418] sm:$0xff] %v4064
        %4321 = vst [vmem:[#allocation2 + $0x420] sm:$0xff] %v4065
        %4322 = vst [vmem:[#allocation2 + $0x428] sm:$0xff] %v4066
        %4323 = vst [vmem:[#allocation2 + $0x430] sm:$0xff] %v4067
        %4324 = vst [vmem:[#allocation2 + $0x438] sm:$0xff] %v4068
        %4325 = vst [vmem:[#allocation2 + $0x440] sm:$0xff] %v4069
        %4326 = vst [vmem:[#allocation2 + $0x448] sm:$0xff] %v4070
        %4327 = vst [vmem:[#allocation2 + $0x450] sm:$0xff] %v4071
        %4328 = vst [vmem:[#allocation2 + $0x458] sm:$0xff] %v4072
        %4329 = vst [vmem:[#allocation2 + $0x460] sm:$0xff] %v4073
        %4330 = vst [vmem:[#allocation2 + $0x468] sm:$0xff] %v4074
        %4331 = vst [vmem:[#allocation2 + $0x470] sm:$0xff] %v4075
        %4332 = vst [vmem:[#allocation2 + $0x478] sm:$0xff] %v4076
        %4333 = vst [vmem:[#allocation2 + $0x480] sm:$0xff] %v4077
        %4334 = vst [vmem:[#allocation2 + $0x488] sm:$0xff] %v4078
        %4335 = vst [vmem:[#allocation2 + $0x490] sm:$0xff] %v4079
        %4336 = vst [vmem:[#allocation2 + $0x498] sm:$0xff] %v4080
        %4337 = vst [vmem:[#allocation2 + $0x4a0] sm:$0xff] %v4081
        %4338 = vst [vmem:[#allocation2 + $0x4a8] sm:$0xff] %v4082
        %4339 = vst [vmem:[#allocation2 + $0x4b0] sm:$0xff] %v4083
        %4340 = vst [vmem:[#allocation2 + $0x4b8] sm:$0xff] %v4084
        %4341 = vst [vmem:[#allocation2 + $0x4c0] sm:$0xff] %v4085
        %4342 = vst [vmem:[#allocation2 + $0x4c8] sm:$0xff] %v4086
        %4343 = vst [vmem:[#allocation2 + $0x4d0] sm:$0xff] %v4087
        %4344 = vst [vmem:[#allocation2 + $0x4d8] sm:$0xff] %v4088
        %4345 = vst [vmem:[#allocation2 + $0x4e0] sm:$0xff] %v4089
        %4346 = vst [vmem:[#allocation2 + $0x4e8] sm:$0xff] %v4090
        %4347 = vst [vmem:[#allocation2 + $0x4f0] sm:$0xff] %v4091
        %4348 = vst [vmem:[#allocation2 + $0x4f8] sm:$0xff] %v4092
        %4349 = vst [vmem:[#allocation2 + $0x500] sm:$0xff] %v4093
        %4350 = vst [vmem:[#allocation2 + $0x508] sm:$0xff] %v4094
        %4351 = vst [vmem:[#allocation2 + $0x510] sm:$0xff] %v4095
        %4352 = vst [vmem:[#allocation2 + $0x518] sm:$0xff] %v4096
        %4353 = vst [vmem:[#allocation2 + $0x520] sm:$0xff] %v4097
        %4354 = vst [vmem:[#allocation2 + $0x528] sm:$0xff] %v4098
        %4355 = vst [vmem:[#allocation2 + $0x530] sm:$0xff] %v4099
        %4356 = vst [vmem:[#allocation2 + $0x538] sm:$0xff] %v4100
        %4357 = vst [vmem:[#allocation2 + $0x540] sm:$0xff] %v4101
        %4358 = vst [vmem:[#allocation2 + $0x548] sm:$0xff] %v4102
        %4359 = vst [vmem:[#allocation2 + $0x550] sm:$0xff] %v4103
        %4360 = vst [vmem:[#allocation2 + $0x558] sm:$0xff] %v4104
        %4361 = vst [vmem:[#allocation2 + $0x560] sm:$0xff] %v4105
        %4362 = vst [vmem:[#allocation2 + $0x568] sm:$0xff] %v4106
        %4363 = vst [vmem:[#allocation2 + $0x570] sm:$0xff] %v4107
        %4364 = vst [vmem:[#allocation2 + $0x578] sm:$0xff] %v4108
        %4365 = vst [vmem:[#allocation2 + $0x580] sm:$0xff] %v4109
        %4366 = vst [vmem:[#allocation2 + $0x588] sm:$0xff] %v4110
        %4367 = vst [vmem:[#allocation2 + $0x590] sm:$0xff] %v4111
        %4368 = vst [vmem:[#allocation2 + $0x598] sm:$0xff] %v4112
        %4369 = vst [vmem:[#allocation2 + $0x5a0] sm:$0xff] %v4113
        %4370 = vst [vmem:[#allocation2 + $0x5a8] sm:$0xff] %v4114
        %4371 = vst [vmem:[#allocation2 + $0x5b0] sm:$0xff] %v4115
        %4372 = vst [vmem:[#allocation2 + $0x5b8] sm:$0xff] %v4116
        %4373 = vst [vmem:[#allocation2 + $0x5c0] sm:$0xff] %v4117
        %4374 = vst [vmem:[#allocation2 + $0x5c8] sm:$0xff] %v4118
        %4375 = vst [vmem:[#allocation2 + $0x5d0] sm:$0xff] %v4119
        %4376 = vst [vmem:[#allocation2 + $0x5d8] sm:$0xff] %v4120
        %4377 = vst [vmem:[#allocation2 + $0x5e0] sm:$0xff] %v4121
        %4378 = vst [vmem:[#allocation2 + $0x5e8] sm:$0xff] %v4122
        %4379 = vst [vmem:[#allocation2 + $0x5f0] sm:$0xff] %v4123
        %4380 = vst [vmem:[#allocation2 + $0x5f8] sm:$0xff] %v4124
        %4381 = vst [vmem:[#allocation2 + $0x600] sm:$0xff] %v4125
        %4382 = vst [vmem:[#allocation2 + $0x608] sm:$0xff] %v4126
        %4383 = vst [vmem:[#allocation2 + $0x610] sm:$0xff] %v4127
        %4384 = vst [vmem:[#allocation2 + $0x618] sm:$0xff] %v4128
        %4385 = vst [vmem:[#allocation2 + $0x620] sm:$0xff] %v4129
        %4386 = vst [vmem:[#allocation2 + $0x628] sm:$0xff] %v4130
        %4387 = vst [vmem:[#allocation2 + $0x630] sm:$0xff] %v4131
        %4388 = vst [vmem:[#allocation2 + $0x638] sm:$0xff] %v4132
        %4389 = vst [vmem:[#allocation2 + $0x640] sm:$0xff] %v4133
        %4390 = vst [vmem:[#allocation2 + $0x648] sm:$0xff] %v4134
        %4391 = vst [vmem:[#allocation2 + $0x650] sm:$0xff] %v4135
        %4392 = vst [vmem:[#allocation2 + $0x658] sm:$0xff] %v4136
        %4393 = vst [vmem:[#allocation2 + $0x660] sm:$0xff] %v4137
        %4394 = vst [vmem:[#allocation2 + $0x668] sm:$0xff] %v4138
        %4395 = vst [vmem:[#allocation2 + $0x670] sm:$0xff] %v4139
        %4396 = vst [vmem:[#allocation2 + $0x678] sm:$0xff] %v4140
        %4397 = vst [vmem:[#allocation2 + $0x680] sm:$0xff] %v4141
        %4398 = vst [vmem:[#allocation2 + $0x688] sm:$0xff] %v4142
        %4399 = vst [vmem:[#allocation2 + $0x690] sm:$0xff] %v4143
        %4400 = vst [vmem:[#allocation2 + $0x698] sm:$0xff] %v4144
        %4401 = vst [vmem:[#allocation2 + $0x6a0] sm:$0xff] %v4145
        %4402 = vst [vmem:[#allocation2 + $0x6a8] sm:$0xff] %v4146
        %4403 = vst [vmem:[#allocation2 + $0x6b0] sm:$0xff] %v4147
        %4404 = vst [vmem:[#allocation2 + $0x6b8] sm:$0xff] %v4148
        %4405 = vst [vmem:[#allocation2 + $0x6c0] sm:$0xff] %v4149
        %4406 = vst [vmem:[#allocation2 + $0x6c8] sm:$0xff] %v4150
        %4407 = vst [vmem:[#allocation2 + $0x6d0] sm:$0xff] %v4151
        %4408 = vst [vmem:[#allocation2 + $0x6d8] sm:$0xff] %v4152
        %4409 = vst [vmem:[#allocation2 + $0x6e0] sm:$0xff] %v4153
        %4410 = vst [vmem:[#allocation2 + $0x6e8] sm:$0xff] %v4154
        %4411 = vst [vmem:[#allocation2 + $0x6f0] sm:$0xff] %v4155
        %4412 = vst [vmem:[#allocation2 + $0x6f8] sm:$0xff] %v4156
        %4413 = vst [vmem:[#allocation2 + $0x700] sm:$0xff] %v4157
        %4414 = vst [vmem:[#allocation2 + $0x708] sm:$0xff] %v4158
        %4415 = vst [vmem:[#allocation2 + $0x710] sm:$0xff] %v4159
        %4416 = vst [vmem:[#allocation2 + $0x718] sm:$0xff] %v4160
        %4417 = vst [vmem:[#allocation2 + $0x720] sm:$0xff] %v4161
        %4418 = vst [vmem:[#allocation2 + $0x728] sm:$0xff] %v4162
        %4419 = vst [vmem:[#allocation2 + $0x730] sm:$0xff] %v4163
        %4420 = vst [vmem:[#allocation2 + $0x738] sm:$0xff] %v4164
        %4421 = vst [vmem:[#allocation2 + $0x740] sm:$0xff] %v4165
        %4422 = vst [vmem:[#allocation2 + $0x748] sm:$0xff] %v4166
        %4423 = vst [vmem:[#allocation2 + $0x750] sm:$0xff] %v4167
        %4424 = vst [vmem:[#allocation2 + $0x758] sm:$0xff] %v4168
        %4425 = vst [vmem:[#allocation2 + $0x760] sm:$0xff] %v4169
        %4426 = vst [vmem:[#allocation2 + $0x768] sm:$0xff] %v4170
        %4427 = vst [vmem:[#allocation2 + $0x770] sm:$0xff] %v4171
        %4428 = vst [vmem:[#allocation2 + $0x778] sm:$0xff] %v4172
        %4429 = vst [vmem:[#allocation2 + $0x780] sm:$0xff] %v4173
        %4430 = vst [vmem:[#allocation2 + $0x788] sm:$0xff] %v4174
        %4431 = vst [vmem:[#allocation2 + $0x790] sm:$0xff] %v4175
        %4432 = vst [vmem:[#allocation2 + $0x798] sm:$0xff] %v4176
        %4433 = vst [vmem:[#allocation2 + $0x7a0] sm:$0xff] %v4177
        %4434 = vst [vmem:[#allocation2 + $0x7a8] sm:$0xff] %v4178
        %4435 = vst [vmem:[#allocation2 + $0x7b0] sm:$0xff] %v4179
        %4436 = vst [vmem:[#allocation2 + $0x7b8] sm:$0xff] %v4180
        %4437 = vst [vmem:[#allocation2 + $0x7c0] sm:$0xff] %v4181
        %4438 = vst [vmem:[#allocation2 + $0x7c8] sm:$0xff] %v4182
        %4439 = vst [vmem:[#allocation2 + $0x7d0] sm:$0xff] %v4183
        %4440 = vst [vmem:[#allocation2 + $0x7d8] sm:$0xff] %v4184
        %4441 = vst [vmem:[#allocation2 + $0x7e0] sm:$0xff] %v4185
        %4442 = vst [vmem:[#allocation2 + $0x7e8] sm:$0xff] %v4186
        %4443 = vst [vmem:[#allocation2 + $0x7f0] sm:$0xff] %v4187
        %4444 = vst [vmem:[#allocation2 + $0x7f8] sm:$0xff] %v4188
        // Predicated region
        $region65: #{tpu_custom_call.1} parent=39 // pred_check
          %p4445 = pneg %p355
        $region66: #{tpu_custom_call.1} parent=39 // pred_check_branch
          %4447 = sbr.rel (%p4445) target = $region68
        $region67: #{tpu_custom_call.1} parent=39 // pred_region
          %v4448 = vld [vmem:[#allocation2] sm:$0xff]
          %v4449 = vld [vmem:[#allocation2 + $0x8] sm:$0xff]
          %v4450 = vld [vmem:[#allocation2 + $0x10] sm:$0xff]
          %v4451 = vld [vmem:[#allocation2 + $0x18] sm:$0xff]
          %v4452 = vld [vmem:[#allocation2 + $0x20] sm:$0xff]
          %v4453 = vld [vmem:[#allocation2 + $0x28] sm:$0xff]
          %v4454 = vld [vmem:[#allocation2 + $0x30] sm:$0xff]
          %v4455 = vld [vmem:[#allocation2 + $0x38] sm:$0xff]
          %v4456 = vld [vmem:[#allocation2 + $0x40] sm:$0xff]
          %v4457 = vld [vmem:[#allocation2 + $0x48] sm:$0xff]
          %v4458 = vld [vmem:[#allocation2 + $0x50] sm:$0xff]
          %v4459 = vld [vmem:[#allocation2 + $0x58] sm:$0xff]
          %v4460 = vld [vmem:[#allocation2 + $0x60] sm:$0xff]
          %v4461 = vld [vmem:[#allocation2 + $0x68] sm:$0xff]
          %v4462 = vld [vmem:[#allocation2 + $0x70] sm:$0xff]
          %v4463 = vld [vmem:[#allocation2 + $0x78] sm:$0xff]
          %v4464 = vld [vmem:[#allocation2 + $0x80] sm:$0xff]
          %v4465 = vld [vmem:[#allocation2 + $0x88] sm:$0xff]
          %v4466 = vld [vmem:[#allocation2 + $0x90] sm:$0xff]
          %v4467 = vld [vmem:[#allocation2 + $0x98] sm:$0xff]
          %v4468 = vld [vmem:[#allocation2 + $0xa0] sm:$0xff]
          %v4469 = vld [vmem:[#allocation2 + $0xa8] sm:$0xff]
          %v4470 = vld [vmem:[#allocation2 + $0xb0] sm:$0xff]
          %v4471 = vld [vmem:[#allocation2 + $0xb8] sm:$0xff]
          %v4472 = vld [vmem:[#allocation2 + $0xc0] sm:$0xff]
          %v4473 = vld [vmem:[#allocation2 + $0xc8] sm:$0xff]
          %v4474 = vld [vmem:[#allocation2 + $0xd0] sm:$0xff]
          %v4475 = vld [vmem:[#allocation2 + $0xd8] sm:$0xff]
          %v4476 = vld [vmem:[#allocation2 + $0xe0] sm:$0xff]
          %v4477 = vld [vmem:[#allocation2 + $0xe8] sm:$0xff]
          %v4478 = vld [vmem:[#allocation2 + $0xf0] sm:$0xff]
          %v4479 = vld [vmem:[#allocation2 + $0xf8] sm:$0xff]
          %v4480 = vld [vmem:[#allocation2 + $0x100] sm:$0xff]
          %v4481 = vld [vmem:[#allocation2 + $0x108] sm:$0xff]
          %v4482 = vld [vmem:[#allocation2 + $0x110] sm:$0xff]
          %v4483 = vld [vmem:[#allocation2 + $0x118] sm:$0xff]
          %v4484 = vld [vmem:[#allocation2 + $0x120] sm:$0xff]
          %v4485 = vld [vmem:[#allocation2 + $0x128] sm:$0xff]
          %v4486 = vld [vmem:[#allocation2 + $0x130] sm:$0xff]
          %v4487 = vld [vmem:[#allocation2 + $0x138] sm:$0xff]
          %v4488 = vld [vmem:[#allocation2 + $0x140] sm:$0xff]
          %v4489 = vld [vmem:[#allocation2 + $0x148] sm:$0xff]
          %v4490 = vld [vmem:[#allocation2 + $0x150] sm:$0xff]
          %v4491 = vld [vmem:[#allocation2 + $0x158] sm:$0xff]
          %v4492 = vld [vmem:[#allocation2 + $0x160] sm:$0xff]
          %v4493 = vld [vmem:[#allocation2 + $0x168] sm:$0xff]
          %v4494 = vld [vmem:[#allocation2 + $0x170] sm:$0xff]
          %v4495 = vld [vmem:[#allocation2 + $0x178] sm:$0xff]
          %v4496 = vld [vmem:[#allocation2 + $0x180] sm:$0xff]
          %v4497 = vld [vmem:[#allocation2 + $0x188] sm:$0xff]
          %v4498 = vld [vmem:[#allocation2 + $0x190] sm:$0xff]
          %v4499 = vld [vmem:[#allocation2 + $0x198] sm:$0xff]
          %v4500 = vld [vmem:[#allocation2 + $0x1a0] sm:$0xff]
          %v4501 = vld [vmem:[#allocation2 + $0x1a8] sm:$0xff]
          %v4502 = vld [vmem:[#allocation2 + $0x1b0] sm:$0xff]
          %v4503 = vld [vmem:[#allocation2 + $0x1b8] sm:$0xff]
          %v4504 = vld [vmem:[#allocation2 + $0x1c0] sm:$0xff]
          %v4505 = vld [vmem:[#allocation2 + $0x1c8] sm:$0xff]
          %v4506 = vld [vmem:[#allocation2 + $0x1d0] sm:$0xff]
          %v4507 = vld [vmem:[#allocation2 + $0x1d8] sm:$0xff]
          %v4508 = vld [vmem:[#allocation2 + $0x1e0] sm:$0xff]
          %v4509 = vld [vmem:[#allocation2 + $0x1e8] sm:$0xff]
          %v4510 = vld [vmem:[#allocation2 + $0x1f0] sm:$0xff]
          %v4511 = vld [vmem:[#allocation2 + $0x1f8] sm:$0xff]
          %v4512 = vld [vmem:[#allocation2 + $0x200] sm:$0xff]
          %v4513 = vld [vmem:[#allocation2 + $0x208] sm:$0xff]
          %v4514 = vld [vmem:[#allocation2 + $0x210] sm:$0xff]
          %v4515 = vld [vmem:[#allocation2 + $0x218] sm:$0xff]
          %v4516 = vld [vmem:[#allocation2 + $0x220] sm:$0xff]
          %v4517 = vld [vmem:[#allocation2 + $0x228] sm:$0xff]
          %v4518 = vld [vmem:[#allocation2 + $0x230] sm:$0xff]
          %v4519 = vld [vmem:[#allocation2 + $0x238] sm:$0xff]
          %v4520 = vld [vmem:[#allocation2 + $0x240] sm:$0xff]
          %v4521 = vld [vmem:[#allocation2 + $0x248] sm:$0xff]
          %v4522 = vld [vmem:[#allocation2 + $0x250] sm:$0xff]
          %v4523 = vld [vmem:[#allocation2 + $0x258] sm:$0xff]
          %v4524 = vld [vmem:[#allocation2 + $0x260] sm:$0xff]
          %v4525 = vld [vmem:[#allocation2 + $0x268] sm:$0xff]
          %v4526 = vld [vmem:[#allocation2 + $0x270] sm:$0xff]
          %v4527 = vld [vmem:[#allocation2 + $0x278] sm:$0xff]
          %v4528 = vld [vmem:[#allocation2 + $0x280] sm:$0xff]
          %v4529 = vld [vmem:[#allocation2 + $0x288] sm:$0xff]
          %v4530 = vld [vmem:[#allocation2 + $0x290] sm:$0xff]
          %v4531 = vld [vmem:[#allocation2 + $0x298] sm:$0xff]
          %v4532 = vld [vmem:[#allocation2 + $0x2a0] sm:$0xff]
          %v4533 = vld [vmem:[#allocation2 + $0x2a8] sm:$0xff]
          %v4534 = vld [vmem:[#allocation2 + $0x2b0] sm:$0xff]
          %v4535 = vld [vmem:[#allocation2 + $0x2b8] sm:$0xff]
          %v4536 = vld [vmem:[#allocation2 + $0x2c0] sm:$0xff]
          %v4537 = vld [vmem:[#allocation2 + $0x2c8] sm:$0xff]
          %v4538 = vld [vmem:[#allocation2 + $0x2d0] sm:$0xff]
          %v4539 = vld [vmem:[#allocation2 + $0x2d8] sm:$0xff]
          %v4540 = vld [vmem:[#allocation2 + $0x2e0] sm:$0xff]
          %v4541 = vld [vmem:[#allocation2 + $0x2e8] sm:$0xff]
          %v4542 = vld [vmem:[#allocation2 + $0x2f0] sm:$0xff]
          %v4543 = vld [vmem:[#allocation2 + $0x2f8] sm:$0xff]
          %v4544 = vld [vmem:[#allocation2 + $0x300] sm:$0xff]
          %v4545 = vld [vmem:[#allocation2 + $0x308] sm:$0xff]
          %v4546 = vld [vmem:[#allocation2 + $0x310] sm:$0xff]
          %v4547 = vld [vmem:[#allocation2 + $0x318] sm:$0xff]
          %v4548 = vld [vmem:[#allocation2 + $0x320] sm:$0xff]
          %v4549 = vld [vmem:[#allocation2 + $0x328] sm:$0xff]
          %v4550 = vld [vmem:[#allocation2 + $0x330] sm:$0xff]
          %v4551 = vld [vmem:[#allocation2 + $0x338] sm:$0xff]
          %v4552 = vld [vmem:[#allocation2 + $0x340] sm:$0xff]
          %v4553 = vld [vmem:[#allocation2 + $0x348] sm:$0xff]
          %v4554 = vld [vmem:[#allocation2 + $0x350] sm:$0xff]
          %v4555 = vld [vmem:[#allocation2 + $0x358] sm:$0xff]
          %v4556 = vld [vmem:[#allocation2 + $0x360] sm:$0xff]
          %v4557 = vld [vmem:[#allocation2 + $0x368] sm:$0xff]
          %v4558 = vld [vmem:[#allocation2 + $0x370] sm:$0xff]
          %v4559 = vld [vmem:[#allocation2 + $0x378] sm:$0xff]
          %v4560 = vld [vmem:[#allocation2 + $0x380] sm:$0xff]
          %v4561 = vld [vmem:[#allocation2 + $0x388] sm:$0xff]
          %v4562 = vld [vmem:[#allocation2 + $0x390] sm:$0xff]
          %v4563 = vld [vmem:[#allocation2 + $0x398] sm:$0xff]
          %v4564 = vld [vmem:[#allocation2 + $0x3a0] sm:$0xff]
          %v4565 = vld [vmem:[#allocation2 + $0x3a8] sm:$0xff]
          %v4566 = vld [vmem:[#allocation2 + $0x3b0] sm:$0xff]
          %v4567 = vld [vmem:[#allocation2 + $0x3b8] sm:$0xff]
          %v4568 = vld [vmem:[#allocation2 + $0x3c0] sm:$0xff]
          %v4569 = vld [vmem:[#allocation2 + $0x3c8] sm:$0xff]
          %v4570 = vld [vmem:[#allocation2 + $0x3d0] sm:$0xff]
          %v4571 = vld [vmem:[#allocation2 + $0x3d8] sm:$0xff]
          %v4572 = vld [vmem:[#allocation2 + $0x3e0] sm:$0xff]
          %v4573 = vld [vmem:[#allocation2 + $0x3e8] sm:$0xff]
          %v4574 = vld [vmem:[#allocation2 + $0x3f0] sm:$0xff]
          %v4575 = vld [vmem:[#allocation2 + $0x3f8] sm:$0xff]
          %v4576 = vld [vmem:[#allocation2 + $0x400] sm:$0xff]
          %v4577 = vld [vmem:[#allocation2 + $0x408] sm:$0xff]
          %v4578 = vld [vmem:[#allocation2 + $0x410] sm:$0xff]
          %v4579 = vld [vmem:[#allocation2 + $0x418] sm:$0xff]
          %v4580 = vld [vmem:[#allocation2 + $0x420] sm:$0xff]
          %v4581 = vld [vmem:[#allocation2 + $0x428] sm:$0xff]
          %v4582 = vld [vmem:[#allocation2 + $0x430] sm:$0xff]
          %v4583 = vld [vmem:[#allocation2 + $0x438] sm:$0xff]
          %v4584 = vld [vmem:[#allocation2 + $0x440] sm:$0xff]
          %v4585 = vld [vmem:[#allocation2 + $0x448] sm:$0xff]
          %v4586 = vld [vmem:[#allocation2 + $0x450] sm:$0xff]
          %v4587 = vld [vmem:[#allocation2 + $0x458] sm:$0xff]
          %v4588 = vld [vmem:[#allocation2 + $0x460] sm:$0xff]
          %v4589 = vld [vmem:[#allocation2 + $0x468] sm:$0xff]
          %v4590 = vld [vmem:[#allocation2 + $0x470] sm:$0xff]
          %v4591 = vld [vmem:[#allocation2 + $0x478] sm:$0xff]
          %v4592 = vld [vmem:[#allocation2 + $0x480] sm:$0xff]
          %v4593 = vld [vmem:[#allocation2 + $0x488] sm:$0xff]
          %v4594 = vld [vmem:[#allocation2 + $0x490] sm:$0xff]
          %v4595 = vld [vmem:[#allocation2 + $0x498] sm:$0xff]
          %v4596 = vld [vmem:[#allocation2 + $0x4a0] sm:$0xff]
          %v4597 = vld [vmem:[#allocation2 + $0x4a8] sm:$0xff]
          %v4598 = vld [vmem:[#allocation2 + $0x4b0] sm:$0xff]
          %v4599 = vld [vmem:[#allocation2 + $0x4b8] sm:$0xff]
          %v4600 = vld [vmem:[#allocation2 + $0x4c0] sm:$0xff]
          %v4601 = vld [vmem:[#allocation2 + $0x4c8] sm:$0xff]
          %v4602 = vld [vmem:[#allocation2 + $0x4d0] sm:$0xff]
          %v4603 = vld [vmem:[#allocation2 + $0x4d8] sm:$0xff]
          %v4604 = vld [vmem:[#allocation2 + $0x4e0] sm:$0xff]
          %v4605 = vld [vmem:[#allocation2 + $0x4e8] sm:$0xff]
          %v4606 = vld [vmem:[#allocation2 + $0x4f0] sm:$0xff]
          %v4607 = vld [vmem:[#allocation2 + $0x4f8] sm:$0xff]
          %v4608 = vld [vmem:[#allocation2 + $0x500] sm:$0xff]
          %v4609 = vld [vmem:[#allocation2 + $0x508] sm:$0xff]
          %v4610 = vld [vmem:[#allocation2 + $0x510] sm:$0xff]
          %v4611 = vld [vmem:[#allocation2 + $0x518] sm:$0xff]
          %v4612 = vld [vmem:[#allocation2 + $0x520] sm:$0xff]
          %v4613 = vld [vmem:[#allocation2 + $0x528] sm:$0xff]
          %v4614 = vld [vmem:[#allocation2 + $0x530] sm:$0xff]
          %v4615 = vld [vmem:[#allocation2 + $0x538] sm:$0xff]
          %v4616 = vld [vmem:[#allocation2 + $0x540] sm:$0xff]
          %v4617 = vld [vmem:[#allocation2 + $0x548] sm:$0xff]
          %v4618 = vld [vmem:[#allocation2 + $0x550] sm:$0xff]
          %v4619 = vld [vmem:[#allocation2 + $0x558] sm:$0xff]
          %v4620 = vld [vmem:[#allocation2 + $0x560] sm:$0xff]
          %v4621 = vld [vmem:[#allocation2 + $0x568] sm:$0xff]
          %v4622 = vld [vmem:[#allocation2 + $0x570] sm:$0xff]
          %v4623 = vld [vmem:[#allocation2 + $0x578] sm:$0xff]
          %v4624 = vld [vmem:[#allocation2 + $0x580] sm:$0xff]
          %v4625 = vld [vmem:[#allocation2 + $0x588] sm:$0xff]
          %v4626 = vld [vmem:[#allocation2 + $0x590] sm:$0xff]
          %v4627 = vld [vmem:[#allocation2 + $0x598] sm:$0xff]
          %v4628 = vld [vmem:[#allocation2 + $0x5a0] sm:$0xff]
          %v4629 = vld [vmem:[#allocation2 + $0x5a8] sm:$0xff]
          %v4630 = vld [vmem:[#allocation2 + $0x5b0] sm:$0xff]
          %v4631 = vld [vmem:[#allocation2 + $0x5b8] sm:$0xff]
          %v4632 = vld [vmem:[#allocation2 + $0x5c0] sm:$0xff]
          %v4633 = vld [vmem:[#allocation2 + $0x5c8] sm:$0xff]
          %v4634 = vld [vmem:[#allocation2 + $0x5d0] sm:$0xff]
          %v4635 = vld [vmem:[#allocation2 + $0x5d8] sm:$0xff]
          %v4636 = vld [vmem:[#allocation2 + $0x5e0] sm:$0xff]
          %v4637 = vld [vmem:[#allocation2 + $0x5e8] sm:$0xff]
          %v4638 = vld [vmem:[#allocation2 + $0x5f0] sm:$0xff]
          %v4639 = vld [vmem:[#allocation2 + $0x5f8] sm:$0xff]
          %v4640 = vld [vmem:[#allocation2 + $0x600] sm:$0xff]
          %v4641 = vld [vmem:[#allocation2 + $0x608] sm:$0xff]
          %v4642 = vld [vmem:[#allocation2 + $0x610] sm:$0xff]
          %v4643 = vld [vmem:[#allocation2 + $0x618] sm:$0xff]
          %v4644 = vld [vmem:[#allocation2 + $0x620] sm:$0xff]
          %v4645 = vld [vmem:[#allocation2 + $0x628] sm:$0xff]
          %v4646 = vld [vmem:[#allocation2 + $0x630] sm:$0xff]
          %v4647 = vld [vmem:[#allocation2 + $0x638] sm:$0xff]
          %v4648 = vld [vmem:[#allocation2 + $0x640] sm:$0xff]
          %v4649 = vld [vmem:[#allocation2 + $0x648] sm:$0xff]
          %v4650 = vld [vmem:[#allocation2 + $0x650] sm:$0xff]
          %v4651 = vld [vmem:[#allocation2 + $0x658] sm:$0xff]
          %v4652 = vld [vmem:[#allocation2 + $0x660] sm:$0xff]
          %v4653 = vld [vmem:[#allocation2 + $0x668] sm:$0xff]
          %v4654 = vld [vmem:[#allocation2 + $0x670] sm:$0xff]
          %v4655 = vld [vmem:[#allocation2 + $0x678] sm:$0xff]
          %v4656 = vld [vmem:[#allocation2 + $0x680] sm:$0xff]
          %v4657 = vld [vmem:[#allocation2 + $0x688] sm:$0xff]
          %v4658 = vld [vmem:[#allocation2 + $0x690] sm:$0xff]
          %v4659 = vld [vmem:[#allocation2 + $0x698] sm:$0xff]
          %v4660 = vld [vmem:[#allocation2 + $0x6a0] sm:$0xff]
          %v4661 = vld [vmem:[#allocation2 + $0x6a8] sm:$0xff]
          %v4662 = vld [vmem:[#allocation2 + $0x6b0] sm:$0xff]
          %v4663 = vld [vmem:[#allocation2 + $0x6b8] sm:$0xff]
          %v4664 = vld [vmem:[#allocation2 + $0x6c0] sm:$0xff]
          %v4665 = vld [vmem:[#allocation2 + $0x6c8] sm:$0xff]
          %v4666 = vld [vmem:[#allocation2 + $0x6d0] sm:$0xff]
          %v4667 = vld [vmem:[#allocation2 + $0x6d8] sm:$0xff]
          %v4668 = vld [vmem:[#allocation2 + $0x6e0] sm:$0xff]
          %v4669 = vld [vmem:[#allocation2 + $0x6e8] sm:$0xff]
          %v4670 = vld [vmem:[#allocation2 + $0x6f0] sm:$0xff]
          %v4671 = vld [vmem:[#allocation2 + $0x6f8] sm:$0xff]
          %v4672 = vld [vmem:[#allocation2 + $0x700] sm:$0xff]
          %v4673 = vld [vmem:[#allocation2 + $0x708] sm:$0xff]
          %v4674 = vld [vmem:[#allocation2 + $0x710] sm:$0xff]
          %v4675 = vld [vmem:[#allocation2 + $0x718] sm:$0xff]
          %v4676 = vld [vmem:[#allocation2 + $0x720] sm:$0xff]
          %v4677 = vld [vmem:[#allocation2 + $0x728] sm:$0xff]
          %v4678 = vld [vmem:[#allocation2 + $0x730] sm:$0xff]
          %v4679 = vld [vmem:[#allocation2 + $0x738] sm:$0xff]
          %v4680 = vld [vmem:[#allocation2 + $0x740] sm:$0xff]
          %v4681 = vld [vmem:[#allocation2 + $0x748] sm:$0xff]
          %v4682 = vld [vmem:[#allocation2 + $0x750] sm:$0xff]
          %v4683 = vld [vmem:[#allocation2 + $0x758] sm:$0xff]
          %v4684 = vld [vmem:[#allocation2 + $0x760] sm:$0xff]
          %v4685 = vld [vmem:[#allocation2 + $0x768] sm:$0xff]
          %v4686 = vld [vmem:[#allocation2 + $0x770] sm:$0xff]
          %v4687 = vld [vmem:[#allocation2 + $0x778] sm:$0xff]
          %v4688 = vld [vmem:[#allocation2 + $0x780] sm:$0xff]
          %v4689 = vld [vmem:[#allocation2 + $0x788] sm:$0xff]
          %v4690 = vld [vmem:[#allocation2 + $0x790] sm:$0xff]
          %v4691 = vld [vmem:[#allocation2 + $0x798] sm:$0xff]
          %v4692 = vld [vmem:[#allocation2 + $0x7a0] sm:$0xff]
          %v4693 = vld [vmem:[#allocation2 + $0x7a8] sm:$0xff]
          %v4694 = vld [vmem:[#allocation2 + $0x7b0] sm:$0xff]
          %v4695 = vld [vmem:[#allocation2 + $0x7b8] sm:$0xff]
          %v4696 = vld [vmem:[#allocation2 + $0x7c0] sm:$0xff]
          %v4697 = vld [vmem:[#allocation2 + $0x7c8] sm:$0xff]
          %v4698 = vld [vmem:[#allocation2 + $0x7d0] sm:$0xff]
          %v4699 = vld [vmem:[#allocation2 + $0x7d8] sm:$0xff]
          %v4700 = vld [vmem:[#allocation2 + $0x7e0] sm:$0xff]
          %v4701 = vld [vmem:[#allocation2 + $0x7e8] sm:$0xff]
          %v4702 = vld [vmem:[#allocation2 + $0x7f0] sm:$0xff]
          %v4703 = vld [vmem:[#allocation2 + $0x7f8] sm:$0xff]
          %4704 = vst [vmem:[%s350] sm:$0xff] %v4448
          %4705 = vst [vmem:[%s350 + $0x8] sm:$0xff] %v4449
          %4706 = vst [vmem:[%s350 + $0x10] sm:$0xff] %v4450
          %4707 = vst [vmem:[%s350 + $0x18] sm:$0xff] %v4451
          %4708 = vst [vmem:[%s350 + $0x20] sm:$0xff] %v4452
          %4709 = vst [vmem:[%s350 + $0x28] sm:$0xff] %v4453
          %4710 = vst [vmem:[%s350 + $0x30] sm:$0xff] %v4454
          %4711 = vst [vmem:[%s350 + $0x38] sm:$0xff] %v4455
          %4712 = vst [vmem:[%s350 + $0x40] sm:$0xff] %v4456
          %4713 = vst [vmem:[%s350 + $0x48] sm:$0xff] %v4457
          %4714 = vst [vmem:[%s350 + $0x50] sm:$0xff] %v4458
          %4715 = vst [vmem:[%s350 + $0x58] sm:$0xff] %v4459
          %4716 = vst [vmem:[%s350 + $0x60] sm:$0xff] %v4460
          %4717 = vst [vmem:[%s350 + $0x68] sm:$0xff] %v4461
          %4718 = vst [vmem:[%s350 + $0x70] sm:$0xff] %v4462
          %4719 = vst [vmem:[%s350 + $0x78] sm:$0xff] %v4463
          %4720 = vst [vmem:[%s350 + $0x80] sm:$0xff] %v4464
          %4721 = vst [vmem:[%s350 + $0x88] sm:$0xff] %v4465
          %4722 = vst [vmem:[%s350 + $0x90] sm:$0xff] %v4466
          %4723 = vst [vmem:[%s350 + $0x98] sm:$0xff] %v4467
          %4724 = vst [vmem:[%s350 + $0xa0] sm:$0xff] %v4468
          %4725 = vst [vmem:[%s350 + $0xa8] sm:$0xff] %v4469
          %4726 = vst [vmem:[%s350 + $0xb0] sm:$0xff] %v4470
          %4727 = vst [vmem:[%s350 + $0xb8] sm:$0xff] %v4471
          %4728 = vst [vmem:[%s350 + $0xc0] sm:$0xff] %v4472
          %4729 = vst [vmem:[%s350 + $0xc8] sm:$0xff] %v4473
          %4730 = vst [vmem:[%s350 + $0xd0] sm:$0xff] %v4474
          %4731 = vst [vmem:[%s350 + $0xd8] sm:$0xff] %v4475
          %4732 = vst [vmem:[%s350 + $0xe0] sm:$0xff] %v4476
          %4733 = vst [vmem:[%s350 + $0xe8] sm:$0xff] %v4477
          %4734 = vst [vmem:[%s350 + $0xf0] sm:$0xff] %v4478
          %4735 = vst [vmem:[%s350 + $0xf8] sm:$0xff] %v4479
          %4736 = vst [vmem:[%s350 + $0x100] sm:$0xff] %v4480
          %4737 = vst [vmem:[%s350 + $0x108] sm:$0xff] %v4481
          %4738 = vst [vmem:[%s350 + $0x110] sm:$0xff] %v4482
          %4739 = vst [vmem:[%s350 + $0x118] sm:$0xff] %v4483
          %4740 = vst [vmem:[%s350 + $0x120] sm:$0xff] %v4484
          %4741 = vst [vmem:[%s350 + $0x128] sm:$0xff] %v4485
          %4742 = vst [vmem:[%s350 + $0x130] sm:$0xff] %v4486
          %4743 = vst [vmem:[%s350 + $0x138] sm:$0xff] %v4487
          %4744 = vst [vmem:[%s350 + $0x140] sm:$0xff] %v4488
          %4745 = vst [vmem:[%s350 + $0x148] sm:$0xff] %v4489
          %4746 = vst [vmem:[%s350 + $0x150] sm:$0xff] %v4490
          %4747 = vst [vmem:[%s350 + $0x158] sm:$0xff] %v4491
          %4748 = vst [vmem:[%s350 + $0x160] sm:$0xff] %v4492
          %4749 = vst [vmem:[%s350 + $0x168] sm:$0xff] %v4493
          %4750 = vst [vmem:[%s350 + $0x170] sm:$0xff] %v4494
          %4751 = vst [vmem:[%s350 + $0x178] sm:$0xff] %v4495
          %4752 = vst [vmem:[%s350 + $0x180] sm:$0xff] %v4496
          %4753 = vst [vmem:[%s350 + $0x188] sm:$0xff] %v4497
          %4754 = vst [vmem:[%s350 + $0x190] sm:$0xff] %v4498
          %4755 = vst [vmem:[%s350 + $0x198] sm:$0xff] %v4499
          %4756 = vst [vmem:[%s350 + $0x1a0] sm:$0xff] %v4500
          %4757 = vst [vmem:[%s350 + $0x1a8] sm:$0xff] %v4501
          %4758 = vst [vmem:[%s350 + $0x1b0] sm:$0xff] %v4502
          %4759 = vst [vmem:[%s350 + $0x1b8] sm:$0xff] %v4503
          %4760 = vst [vmem:[%s350 + $0x1c0] sm:$0xff] %v4504
          %4761 = vst [vmem:[%s350 + $0x1c8] sm:$0xff] %v4505
          %4762 = vst [vmem:[%s350 + $0x1d0] sm:$0xff] %v4506
          %4763 = vst [vmem:[%s350 + $0x1d8] sm:$0xff] %v4507
          %4764 = vst [vmem:[%s350 + $0x1e0] sm:$0xff] %v4508
          %4765 = vst [vmem:[%s350 + $0x1e8] sm:$0xff] %v4509
          %4766 = vst [vmem:[%s350 + $0x1f0] sm:$0xff] %v4510
          %4767 = vst [vmem:[%s350 + $0x1f8] sm:$0xff] %v4511
          %4768 = vst [vmem:[%s350 + $0x200] sm:$0xff] %v4512
          %4769 = vst [vmem:[%s350 + $0x208] sm:$0xff] %v4513
          %4770 = vst [vmem:[%s350 + $0x210] sm:$0xff] %v4514
          %4771 = vst [vmem:[%s350 + $0x218] sm:$0xff] %v4515
          %4772 = vst [vmem:[%s350 + $0x220] sm:$0xff] %v4516
          %4773 = vst [vmem:[%s350 + $0x228] sm:$0xff] %v4517
          %4774 = vst [vmem:[%s350 + $0x230] sm:$0xff] %v4518
          %4775 = vst [vmem:[%s350 + $0x238] sm:$0xff] %v4519
          %4776 = vst [vmem:[%s350 + $0x240] sm:$0xff] %v4520
          %4777 = vst [vmem:[%s350 + $0x248] sm:$0xff] %v4521
          %4778 = vst [vmem:[%s350 + $0x250] sm:$0xff] %v4522
          %4779 = vst [vmem:[%s350 + $0x258] sm:$0xff] %v4523
          %4780 = vst [vmem:[%s350 + $0x260] sm:$0xff] %v4524
          %4781 = vst [vmem:[%s350 + $0x268] sm:$0xff] %v4525
          %4782 = vst [vmem:[%s350 + $0x270] sm:$0xff] %v4526
          %4783 = vst [vmem:[%s350 + $0x278] sm:$0xff] %v4527
          %4784 = vst [vmem:[%s350 + $0x280] sm:$0xff] %v4528
          %4785 = vst [vmem:[%s350 + $0x288] sm:$0xff] %v4529
          %4786 = vst [vmem:[%s350 + $0x290] sm:$0xff] %v4530
          %4787 = vst [vmem:[%s350 + $0x298] sm:$0xff] %v4531
          %4788 = vst [vmem:[%s350 + $0x2a0] sm:$0xff] %v4532
          %4789 = vst [vmem:[%s350 + $0x2a8] sm:$0xff] %v4533
          %4790 = vst [vmem:[%s350 + $0x2b0] sm:$0xff] %v4534
          %4791 = vst [vmem:[%s350 + $0x2b8] sm:$0xff] %v4535
          %4792 = vst [vmem:[%s350 + $0x2c0] sm:$0xff] %v4536
          %4793 = vst [vmem:[%s350 + $0x2c8] sm:$0xff] %v4537
          %4794 = vst [vmem:[%s350 + $0x2d0] sm:$0xff] %v4538
          %4795 = vst [vmem:[%s350 + $0x2d8] sm:$0xff] %v4539
          %4796 = vst [vmem:[%s350 + $0x2e0] sm:$0xff] %v4540
          %4797 = vst [vmem:[%s350 + $0x2e8] sm:$0xff] %v4541
          %4798 = vst [vmem:[%s350 + $0x2f0] sm:$0xff] %v4542
          %4799 = vst [vmem:[%s350 + $0x2f8] sm:$0xff] %v4543
          %4800 = vst [vmem:[%s350 + $0x300] sm:$0xff] %v4544
          %4801 = vst [vmem:[%s350 + $0x308] sm:$0xff] %v4545
          %4802 = vst [vmem:[%s350 + $0x310] sm:$0xff] %v4546
          %4803 = vst [vmem:[%s350 + $0x318] sm:$0xff] %v4547
          %4804 = vst [vmem:[%s350 + $0x320] sm:$0xff] %v4548
          %4805 = vst [vmem:[%s350 + $0x328] sm:$0xff] %v4549
          %4806 = vst [vmem:[%s350 + $0x330] sm:$0xff] %v4550
          %4807 = vst [vmem:[%s350 + $0x338] sm:$0xff] %v4551
          %4808 = vst [vmem:[%s350 + $0x340] sm:$0xff] %v4552
          %4809 = vst [vmem:[%s350 + $0x348] sm:$0xff] %v4553
          %4810 = vst [vmem:[%s350 + $0x350] sm:$0xff] %v4554
          %4811 = vst [vmem:[%s350 + $0x358] sm:$0xff] %v4555
          %4812 = vst [vmem:[%s350 + $0x360] sm:$0xff] %v4556
          %4813 = vst [vmem:[%s350 + $0x368] sm:$0xff] %v4557
          %4814 = vst [vmem:[%s350 + $0x370] sm:$0xff] %v4558
          %4815 = vst [vmem:[%s350 + $0x378] sm:$0xff] %v4559
          %4816 = vst [vmem:[%s350 + $0x380] sm:$0xff] %v4560
          %4817 = vst [vmem:[%s350 + $0x388] sm:$0xff] %v4561
          %4818 = vst [vmem:[%s350 + $0x390] sm:$0xff] %v4562
          %4819 = vst [vmem:[%s350 + $0x398] sm:$0xff] %v4563
          %4820 = vst [vmem:[%s350 + $0x3a0] sm:$0xff] %v4564
          %4821 = vst [vmem:[%s350 + $0x3a8] sm:$0xff] %v4565
          %4822 = vst [vmem:[%s350 + $0x3b0] sm:$0xff] %v4566
          %4823 = vst [vmem:[%s350 + $0x3b8] sm:$0xff] %v4567
          %4824 = vst [vmem:[%s350 + $0x3c0] sm:$0xff] %v4568
          %4825 = vst [vmem:[%s350 + $0x3c8] sm:$0xff] %v4569
          %4826 = vst [vmem:[%s350 + $0x3d0] sm:$0xff] %v4570
          %4827 = vst [vmem:[%s350 + $0x3d8] sm:$0xff] %v4571
          %4828 = vst [vmem:[%s350 + $0x3e0] sm:$0xff] %v4572
          %4829 = vst [vmem:[%s350 + $0x3e8] sm:$0xff] %v4573
          %4830 = vst [vmem:[%s350 + $0x3f0] sm:$0xff] %v4574
          %4831 = vst [vmem:[%s350 + $0x3f8] sm:$0xff] %v4575
          %4832 = vst [vmem:[%s350 + $0x400] sm:$0xff] %v4576
          %4833 = vst [vmem:[%s350 + $0x408] sm:$0xff] %v4577
          %4834 = vst [vmem:[%s350 + $0x410] sm:$0xff] %v4578
          %4835 = vst [vmem:[%s350 + $0x418] sm:$0xff] %v4579
          %4836 = vst [vmem:[%s350 + $0x420] sm:$0xff] %v4580
          %4837 = vst [vmem:[%s350 + $0x428] sm:$0xff] %v4581
          %4838 = vst [vmem:[%s350 + $0x430] sm:$0xff] %v4582
          %4839 = vst [vmem:[%s350 + $0x438] sm:$0xff] %v4583
          %4840 = vst [vmem:[%s350 + $0x440] sm:$0xff] %v4584
          %4841 = vst [vmem:[%s350 + $0x448] sm:$0xff] %v4585
          %4842 = vst [vmem:[%s350 + $0x450] sm:$0xff] %v4586
          %4843 = vst [vmem:[%s350 + $0x458] sm:$0xff] %v4587
          %4844 = vst [vmem:[%s350 + $0x460] sm:$0xff] %v4588
          %4845 = vst [vmem:[%s350 + $0x468] sm:$0xff] %v4589
          %4846 = vst [vmem:[%s350 + $0x470] sm:$0xff] %v4590
          %4847 = vst [vmem:[%s350 + $0x478] sm:$0xff] %v4591
          %4848 = vst [vmem:[%s350 + $0x480] sm:$0xff] %v4592
          %4849 = vst [vmem:[%s350 + $0x488] sm:$0xff] %v4593
          %4850 = vst [vmem:[%s350 + $0x490] sm:$0xff] %v4594
          %4851 = vst [vmem:[%s350 + $0x498] sm:$0xff] %v4595
          %4852 = vst [vmem:[%s350 + $0x4a0] sm:$0xff] %v4596
          %4853 = vst [vmem:[%s350 + $0x4a8] sm:$0xff] %v4597
          %4854 = vst [vmem:[%s350 + $0x4b0] sm:$0xff] %v4598
          %4855 = vst [vmem:[%s350 + $0x4b8] sm:$0xff] %v4599
          %4856 = vst [vmem:[%s350 + $0x4c0] sm:$0xff] %v4600
          %4857 = vst [vmem:[%s350 + $0x4c8] sm:$0xff] %v4601
          %4858 = vst [vmem:[%s350 + $0x4d0] sm:$0xff] %v4602
          %4859 = vst [vmem:[%s350 + $0x4d8] sm:$0xff] %v4603
          %4860 = vst [vmem:[%s350 + $0x4e0] sm:$0xff] %v4604
          %4861 = vst [vmem:[%s350 + $0x4e8] sm:$0xff] %v4605
          %4862 = vst [vmem:[%s350 + $0x4f0] sm:$0xff] %v4606
          %4863 = vst [vmem:[%s350 + $0x4f8] sm:$0xff] %v4607
          %4864 = vst [vmem:[%s350 + $0x500] sm:$0xff] %v4608
          %4865 = vst [vmem:[%s350 + $0x508] sm:$0xff] %v4609
          %4866 = vst [vmem:[%s350 + $0x510] sm:$0xff] %v4610
          %4867 = vst [vmem:[%s350 + $0x518] sm:$0xff] %v4611
          %4868 = vst [vmem:[%s350 + $0x520] sm:$0xff] %v4612
          %4869 = vst [vmem:[%s350 + $0x528] sm:$0xff] %v4613
          %4870 = vst [vmem:[%s350 + $0x530] sm:$0xff] %v4614
          %4871 = vst [vmem:[%s350 + $0x538] sm:$0xff] %v4615
          %4872 = vst [vmem:[%s350 + $0x540] sm:$0xff] %v4616
          %4873 = vst [vmem:[%s350 + $0x548] sm:$0xff] %v4617
          %4874 = vst [vmem:[%s350 + $0x550] sm:$0xff] %v4618
          %4875 = vst [vmem:[%s350 + $0x558] sm:$0xff] %v4619
          %4876 = vst [vmem:[%s350 + $0x560] sm:$0xff] %v4620
          %4877 = vst [vmem:[%s350 + $0x568] sm:$0xff] %v4621
          %4878 = vst [vmem:[%s350 + $0x570] sm:$0xff] %v4622
          %4879 = vst [vmem:[%s350 + $0x578] sm:$0xff] %v4623
          %4880 = vst [vmem:[%s350 + $0x580] sm:$0xff] %v4624
          %4881 = vst [vmem:[%s350 + $0x588] sm:$0xff] %v4625
          %4882 = vst [vmem:[%s350 + $0x590] sm:$0xff] %v4626
          %4883 = vst [vmem:[%s350 + $0x598] sm:$0xff] %v4627
          %4884 = vst [vmem:[%s350 + $0x5a0] sm:$0xff] %v4628
          %4885 = vst [vmem:[%s350 + $0x5a8] sm:$0xff] %v4629
          %4886 = vst [vmem:[%s350 + $0x5b0] sm:$0xff] %v4630
          %4887 = vst [vmem:[%s350 + $0x5b8] sm:$0xff] %v4631
          %4888 = vst [vmem:[%s350 + $0x5c0] sm:$0xff] %v4632
          %4889 = vst [vmem:[%s350 + $0x5c8] sm:$0xff] %v4633
          %4890 = vst [vmem:[%s350 + $0x5d0] sm:$0xff] %v4634
          %4891 = vst [vmem:[%s350 + $0x5d8] sm:$0xff] %v4635
          %4892 = vst [vmem:[%s350 + $0x5e0] sm:$0xff] %v4636
          %4893 = vst [vmem:[%s350 + $0x5e8] sm:$0xff] %v4637
          %4894 = vst [vmem:[%s350 + $0x5f0] sm:$0xff] %v4638
          %4895 = vst [vmem:[%s350 + $0x5f8] sm:$0xff] %v4639
          %4896 = vst [vmem:[%s350 + $0x600] sm:$0xff] %v4640
          %4897 = vst [vmem:[%s350 + $0x608] sm:$0xff] %v4641
          %4898 = vst [vmem:[%s350 + $0x610] sm:$0xff] %v4642
          %4899 = vst [vmem:[%s350 + $0x618] sm:$0xff] %v4643
          %4900 = vst [vmem:[%s350 + $0x620] sm:$0xff] %v4644
          %4901 = vst [vmem:[%s350 + $0x628] sm:$0xff] %v4645
          %4902 = vst [vmem:[%s350 + $0x630] sm:$0xff] %v4646
          %4903 = vst [vmem:[%s350 + $0x638] sm:$0xff] %v4647
          %4904 = vst [vmem:[%s350 + $0x640] sm:$0xff] %v4648
          %4905 = vst [vmem:[%s350 + $0x648] sm:$0xff] %v4649
          %4906 = vst [vmem:[%s350 + $0x650] sm:$0xff] %v4650
          %4907 = vst [vmem:[%s350 + $0x658] sm:$0xff] %v4651
          %4908 = vst [vmem:[%s350 + $0x660] sm:$0xff] %v4652
          %4909 = vst [vmem:[%s350 + $0x668] sm:$0xff] %v4653
          %4910 = vst [vmem:[%s350 + $0x670] sm:$0xff] %v4654
          %4911 = vst [vmem:[%s350 + $0x678] sm:$0xff] %v4655
          %4912 = vst [vmem:[%s350 + $0x680] sm:$0xff] %v4656
          %4913 = vst [vmem:[%s350 + $0x688] sm:$0xff] %v4657
          %4914 = vst [vmem:[%s350 + $0x690] sm:$0xff] %v4658
          %4915 = vst [vmem:[%s350 + $0x698] sm:$0xff] %v4659
          %4916 = vst [vmem:[%s350 + $0x6a0] sm:$0xff] %v4660
          %4917 = vst [vmem:[%s350 + $0x6a8] sm:$0xff] %v4661
          %4918 = vst [vmem:[%s350 + $0x6b0] sm:$0xff] %v4662
          %4919 = vst [vmem:[%s350 + $0x6b8] sm:$0xff] %v4663
          %4920 = vst [vmem:[%s350 + $0x6c0] sm:$0xff] %v4664
          %4921 = vst [vmem:[%s350 + $0x6c8] sm:$0xff] %v4665
          %4922 = vst [vmem:[%s350 + $0x6d0] sm:$0xff] %v4666
          %4923 = vst [vmem:[%s350 + $0x6d8] sm:$0xff] %v4667
          %4924 = vst [vmem:[%s350 + $0x6e0] sm:$0xff] %v4668
          %4925 = vst [vmem:[%s350 + $0x6e8] sm:$0xff] %v4669
          %4926 = vst [vmem:[%s350 + $0x6f0] sm:$0xff] %v4670
          %4927 = vst [vmem:[%s350 + $0x6f8] sm:$0xff] %v4671
          %4928 = vst [vmem:[%s350 + $0x700] sm:$0xff] %v4672
          %4929 = vst [vmem:[%s350 + $0x708] sm:$0xff] %v4673
          %4930 = vst [vmem:[%s350 + $0x710] sm:$0xff] %v4674
          %4931 = vst [vmem:[%s350 + $0x718] sm:$0xff] %v4675
          %4932 = vst [vmem:[%s350 + $0x720] sm:$0xff] %v4676
          %4933 = vst [vmem:[%s350 + $0x728] sm:$0xff] %v4677
          %4934 = vst [vmem:[%s350 + $0x730] sm:$0xff] %v4678
          %4935 = vst [vmem:[%s350 + $0x738] sm:$0xff] %v4679
          %4936 = vst [vmem:[%s350 + $0x740] sm:$0xff] %v4680
          %4937 = vst [vmem:[%s350 + $0x748] sm:$0xff] %v4681
          %4938 = vst [vmem:[%s350 + $0x750] sm:$0xff] %v4682
          %4939 = vst [vmem:[%s350 + $0x758] sm:$0xff] %v4683
          %4940 = vst [vmem:[%s350 + $0x760] sm:$0xff] %v4684
          %4941 = vst [vmem:[%s350 + $0x768] sm:$0xff] %v4685
          %4942 = vst [vmem:[%s350 + $0x770] sm:$0xff] %v4686
          %4943 = vst [vmem:[%s350 + $0x778] sm:$0xff] %v4687
          %4944 = vst [vmem:[%s350 + $0x780] sm:$0xff] %v4688
          %4945 = vst [vmem:[%s350 + $0x788] sm:$0xff] %v4689
          %4946 = vst [vmem:[%s350 + $0x790] sm:$0xff] %v4690
          %4947 = vst [vmem:[%s350 + $0x798] sm:$0xff] %v4691
          %4948 = vst [vmem:[%s350 + $0x7a0] sm:$0xff] %v4692
          %4949 = vst [vmem:[%s350 + $0x7a8] sm:$0xff] %v4693
          %4950 = vst [vmem:[%s350 + $0x7b0] sm:$0xff] %v4694
          %4951 = vst [vmem:[%s350 + $0x7b8] sm:$0xff] %v4695
          %4952 = vst [vmem:[%s350 + $0x7c0] sm:$0xff] %v4696
          %4953 = vst [vmem:[%s350 + $0x7c8] sm:$0xff] %v4697
          %4954 = vst [vmem:[%s350 + $0x7d0] sm:$0xff] %v4698
          %4955 = vst [vmem:[%s350 + $0x7d8] sm:$0xff] %v4699
          %4956 = vst [vmem:[%s350 + $0x7e0] sm:$0xff] %v4700
          %4957 = vst [vmem:[%s350 + $0x7e8] sm:$0xff] %v4701
          %4958 = vst [vmem:[%s350 + $0x7f0] sm:$0xff] %v4702
          %4959 = vst [vmem:[%s350 + $0x7f8] sm:$0xff] %v4703
        $region68: #{tpu_custom_call.1} parent=39 // pred_fallthru
          _
        %s4960 = sand.u32 %s187, 1
        %s4961 = scalar_lea.sflag [#allocation5], %s4960
        %s4962 = sand.u32 %s187, 1
        %s4963 = smul.addr %s4962, 2048
        %s4964 = scalar_lea.vmem [#allocation12], %s4963
        // Predicated region
        $region69: #{tpu_custom_call.1} parent=39 // pred_check
          %p4965 = pneg %p197
        $region70: #{tpu_custom_call.1} parent=39 // pred_check_branch
          %4967 = sbr.rel (%p4965) target = $region72
        $region71: #{tpu_custom_call.1} parent=39 // pred_region
          %s4968 = smul.u32 256, %s29
          %s4970 = ssub.s32 32768, 32768
          %4971 = vsyncadd %s4961, %s4970
          %s4972 = sadd.s32 %s30, %s4968
          %s4973 = smul.addr %s4972, 128
          %s4974 = scalar_lea.hbm %s5, %s4973
          %s4975 = sshll.u32 %s4964, 4
          %s4976 = int_to_ptr.vmem [resolvable:$true] %s4975
          %4981 = dma.vmem_to_hbm [thread:$0]  %s4976, 32768, %s4974, %s4961, 128, 128, 8
        $region72: #{tpu_custom_call.1} parent=39 // pred_fallthru
          _
      $region40: #{tpu_custom_call.1} parent=5 // pred_fallthru
        _
      %p4982 = scmp.le.s32.totalorder 2, %s19
      // Predicated region
      $region73: #{tpu_custom_call.1} parent=5 // pred_check
        %p4983 = pneg %p4982
      $region74: #{tpu_custom_call.1} parent=5 // pred_check_branch
        %4985 = sbr.rel (%p4983) target = $region76
      $region75: #{tpu_custom_call.1} parent=5 // pred_region
        %s4986 = ssub.s32 %s19, 2
        // Predicated region
        $region77: #{tpu_custom_call.1} parent=75 // pred_check
          %p4987 = pneg %p203
        $region78: #{tpu_custom_call.1} parent=75 // pred_check_branch
          %4989 = sbr.rel (%p4987) target = $region80
        $region79: #{tpu_custom_call.1} parent=75 // pred_region
          %s4990 = sand.u32 %s188, 1
          %s4991 = scalar_lea.sflag [#allocation5], %s4990
          %s4992 = sand.u32 %s188, 1
          %s4993 = smul.addr %s4992, 2048
          %s4994 = scalar_lea.vmem [#allocation12], %s4993
          %4995 = dma.done %s4991, 32768
        $region80: #{tpu_custom_call.1} parent=75 // pred_fallthru
          _
      $region76: #{tpu_custom_call.1} parent=5 // pred_fallthru
        _
    $region6: #{tpu_custom_call.1} parent=1 // loop_footer
      %s23 = sadd.s32 1, %s19
    $region7: #{tpu_custom_call.1} parent=1 // loop_footer_branch
      %18 = sbr.rel target = $region3
    $region8: #{tpu_custom_call.1} parent=1 // loop_exit
      _
    %4996 = vsyncpa [#allocation4], 1
    %s4997 = scalar_lea.sflag [#allocation4], 1
    %4998 = vsyncpa %s4997, 1
    %4999 = vsyncpa [#allocation7], 1
    %5000 = vsyncpa [#allocation10], 1
    %5001 = vsyncpa [#allocation5], 1
    %s5002 = scalar_lea.sflag [#allocation5], 1
    %5003 = vsyncpa %s5002, 1

</llo_original>
